<compile_context>
chip_gen: v5e
topology: v5e:2x2
jax: 0.10.0
libtpu: 0.0.40
codegen_flags: <defaults>
</compile_context>

<pallas_src>
import functools

import jax
import jax.numpy as jnp
from jax import lax
from jax.experimental import pallas as pl
from jax.experimental.pallas import tpu as pltpu

C = 64        # num_channels (module hard-codes 64 for GCB / convg)
PLANES = 16   # GCB bottleneck: int(64 * 0.25)
EPS = 1e-5
# Tiles below are sized to stay a few MiB per buffer, which fits the default
# scoped VMEM on v5e/v6e (128 MiB physical) and v7x (64 MiB physical).
VMEM_LIMIT = 32 * 1024 * 1024


def _pick_hw_tile(hw):
    """Lane-tile over flattened spatial: full HW unless large and 128-divisible."""
    if hw % 128 != 0 or hw <= 1024:
        return hw
    for t in (1024, 896, 768, 640, 512, 384, 256, 128):
        if hw % t == 0:
            return t
    return hw


# ---------------------------------------------------------------------------
# Plain-JAX glue
# ---------------------------------------------------------------------------
def bilinear_resize(x, out_h, out_w):
    """torch F.interpolate(mode='bilinear', align_corners=False) on NCHW."""
    _, _, H, W = x.shape

    def coords(out, inp):
        d = (jnp.arange(out, dtype=jnp.float32) + 0.5) * (inp / out) - 0.5
        d = jnp.clip(d, 0.0, inp - 1.0)
        i0 = jnp.floor(d).astype(jnp.int32)
        i1 = jnp.minimum(i0 + 1, inp - 1)
        return i0, i1, d - i0.astype(jnp.float32)

    hi0, hi1, hw1 = coords(out_h, H)
    wi0, wi1, ww1 = coords(out_w, W)
    x00 = x[:, :, hi0][:, :, :, wi0]
    x01 = x[:, :, hi0][:, :, :, wi1]
    x10 = x[:, :, hi1][:, :, :, wi0]
    x11 = x[:, :, hi1][:, :, :, wi1]
    hw1 = hw1[:, None]
    ww1 = ww1[None, :]
    top = x00 * (1.0 - ww1) + x01 * ww1
    bot = x10 * (1.0 - ww1) + x11 * ww1
    return top * (1.0 - hw1) + bot * hw1


def im2col_taps(xcat):
    """(B, Cin, H, W) -> (B, Cin*9, H*W); K index = cin*9 + kh*3 + kw (bf16 in/out)."""
    B, Cin, H, W = xcat.shape
    xp = jnp.pad(xcat, ((0, 0), (0, 0), (1, 1), (1, 1)))
    taps = [xp[:, :, kh:kh + H, kw:kw + W] for kh in range(3) for kw in range(3)]
    col = jnp.stack(taps, axis=2)                      # (B, Cin, 9, H, W)
    return col.reshape(B, Cin * 9, H * W)


def gate_scale(src, wg, bg):
    """softmax(convg(gap(src))) * C  ->  (B, C, 1) f32 (tiny pre-pass, BxC values)."""
    g = jnp.mean(src, axis=(2, 3))                     # (B, C)
    c = g @ wg.T + bg
    s = jax.nn.softmax(c, axis=1) * C
    return s[:, :, None].astype(jnp.float32)


# ---------------------------------------------------------------------------
# Pallas kernels
# ---------------------------------------------------------------------------
def _gate3_kernel(s_ref, x1_ref, x2_ref, x3_ref, o_ref):
    """x = cat(in1, s*in2, in3*sigmoid(in2)); s precomputed.  bf16 output."""
    s = s_ref[0]                                       # (C, 1) f32
    x1 = x1_ref[0]                                     # (C, thw) f32
    x2 = x2_ref[0]
    x3 = x3_ref[0]
    o_ref[0, 0:C, :] = x1.astype(o_ref.dtype)
    o_ref[0, C:2 * C, :] = (s * x2).astype(o_ref.dtype)
    o_ref[0, 2 * C:3 * C, :] = (x3 * jax.nn.sigmoid(x2)).astype(o_ref.dtype)


def _gate2_kernel(s_ref, u_ref, v_ref, o_ref, *, swap):
    """terms: s*v and u*sigmoid(v); `swap` flips concat order.  bf16 output."""
    s = s_ref[0]
    u = u_ref[0]
    v = v_ref[0]
    t_scale = (s * v).astype(o_ref.dtype)
    t_sig = (u * jax.nn.sigmoid(v)).astype(o_ref.dtype)
    if swap:
        o_ref[0, 0:C, :] = t_sig
        o_ref[0, C:2 * C, :] = t_scale
    else:
        o_ref[0, 0:C, :] = t_scale
        o_ref[0, C:2 * C, :] = t_sig


def _conv_stats_kernel(w_ref, x_ref, y_ref, s1_ref, s2_ref):
    """(Cout, K) bf16 @ (K, thw) bf16 -> (Cout, thw) f32, + partial BN sums."""
    y = jnp.dot(w_ref[...], x_ref[0], preferred_element_type=jnp.float32)
    y_ref[0] = y
    s1_ref[0, 0] = jnp.sum(y, axis=1, keepdims=True)           # (Cout, 1)
    s2_ref[0, 0] = jnp.sum(y * y, axis=1, keepdims=True)


def _gcb_kernel(y_ref, a_ref, b_ref, wm_ref, bm_ref, w1_ref, b1_ref,
                g_ref, bln_ref, w2_ref, b2_ref, o_ref):
    """fused: BN affine + ReLU, GlobalContextBlock(att, channel_add), x*context."""
    y = y_ref[0]                                                 # (C, HW) raw conv
    x = jnp.maximum(y * a_ref[...] + b_ref[...], 0.0)            # BN + ReLU
    # attention logits via VPU multiply + cross-sublane reduce (no 1-row matmul)
    logits = jnp.sum(x * wm_ref[...], axis=0, keepdims=True) + bm_ref[...]   # (1, HW)
    logits = logits - jnp.max(logits, axis=1, keepdims=True)
    e = jnp.exp(logits)
    attn = e / jnp.sum(e, axis=1, keepdims=True)
    context = jnp.sum(x * attn, axis=1, keepdims=True)           # (C, 1)
    h = jnp.dot(w1_ref[...], context, preferred_element_type=jnp.float32) + b1_ref[...]
    mu = jnp.mean(h, keepdims=True)
    var = jnp.mean((h - mu) ** 2, keepdims=True)
    hn = (h - mu) * lax.rsqrt(var + EPS) * g_ref[...] + bln_ref[...]
    hr = jnp.maximum(hn, 0.0)
    add = jnp.dot(w2_ref[...], hr, preferred_element_type=jnp.float32) + b2_ref[...]
    o_ref[0] = x * (x + add)                                     # out = x * Global(x)


# ---------------------------------------------------------------------------
# Pallas wrappers
# ---------------------------------------------------------------------------
def _gate_call(kernel, s, inputs, out_ch, thw):
    B, _, HW = inputs[0].shape
    hwt = HW // thw
    return pl.pallas_call(
        kernel,
        out_shape=jax.ShapeDtypeStruct((B, out_ch, HW), jnp.bfloat16),
        grid=(B, hwt),
        in_specs=[pl.BlockSpec((1, C, 1), lambda b, j: (b, 0, 0))]
        + [pl.BlockSpec((1, C, thw), lambda b, j: (b, 0, j)) for _ in inputs],
        out_specs=pl.BlockSpec((1, out_ch, thw), lambda b, j: (b, 0, j)),
        compiler_params=pltpu.CompilerParams(
            dimension_semantics=("parallel", "parallel"),
            vmem_limit_bytes=VMEM_LIMIT),
    )(s, *inputs)


def conv_cross(w2d, xcol3, thw):
    """Per-(batch, hw-tile) matmul producing (B, Cout, HW) + partial BN stats."""
    B, K, HW = xcol3.shape
    Cout = w2d.shape[0]
    hwt = HW // thw
    return pl.pallas_call(
        _conv_stats_kernel,
        out_shape=(jax.ShapeDtypeStruct((B, Cout, HW), jnp.float32),
                   jax.ShapeDtypeStruct((B, hwt, Cout, 1), jnp.float32),
                   jax.ShapeDtypeStruct((B, hwt, Cout, 1), jnp.float32)),
        grid=(B, hwt),
        in_specs=[pl.BlockSpec((Cout, K), lambda b, j: (0, 0)),
                  pl.BlockSpec((1, K, thw), lambda b, j: (b, 0, j))],
        out_specs=(pl.BlockSpec((1, Cout, thw), lambda b, j: (b, 0, j)),
                   pl.BlockSpec((1, 1, Cout, 1), lambda b, j: (b, j, 0, 0)),
                   pl.BlockSpec((1, 1, Cout, 1), lambda b, j: (b, j, 0, 0))),
        compiler_params=pltpu.CompilerParams(
            dimension_semantics=("parallel", "parallel"),
            vmem_limit_bytes=VMEM_LIMIT),
    )(w2d, xcol3)


def gcb_bn_mul(y3, bn_a, bn_b, g):
    """Fused BN+ReLU + GlobalContextBlock + final x*context, per batch."""
    B, _, HW = y3.shape
    wm_c1 = g["wm"].reshape(C, 1)    # (1, C) -> (C, 1): channels on sublanes
    return pl.pallas_call(
        _gcb_kernel,
        out_shape=jax.ShapeDtypeStruct((B, C, HW), jnp.float32),
        grid=(B,),
        in_specs=[pl.BlockSpec((1, C, HW), lambda b: (b, 0, 0)),
                  pl.BlockSpec((C, 1), lambda b: (0, 0)),        # bn scale
                  pl.BlockSpec((C, 1), lambda b: (0, 0)),        # bn shift
                  pl.BlockSpec((C, 1), lambda b: (0, 0)),        # conv_mask w
                  pl.BlockSpec((1, 1), lambda b: (0, 0)),        # conv_mask b
                  pl.BlockSpec((PLANES, C), lambda b: (0, 0)),
                  pl.BlockSpec((PLANES, 1), lambda b: (0, 0)),
                  pl.BlockSpec((PLANES, 1), lambda b: (0, 0)),
                  pl.BlockSpec((PLANES, 1), lambda b: (0, 0)),
                  pl.BlockSpec((C, PLANES), lambda b: (0, 0)),
                  pl.BlockSpec((C, 1), lambda b: (0, 0))],
        out_specs=pl.BlockSpec((1, C, HW), lambda b: (b, 0, 0)),
        compiler_params=pltpu.CompilerParams(
            dimension_semantics=("parallel",),
            vmem_limit_bytes=VMEM_LIMIT),
    )(y3, bn_a, bn_b, wm_c1, g["bm"], g["w1"], g["b1"], g["ln_g"], g["ln_b"],
      g["w2"], g["b2"])


def haim_forward(params, in1, in2, in3=None):
    B, _, H, W = in1.shape
    HW = H * W
    thw = _pick_hw_tile(HW)
    wg, bg = params["convg_w"], params["convg_b"]
    in2u = bilinear_resize(in2, H, W)

    if in3 is not None:
        in3u = bilinear_resize(in3, H, W)
        s = gate_scale(in3u, wg, bg)
        xcat = _gate_call(_gate3_kernel, s,
                          [in1.reshape(B, C, HW),
                           in2u.reshape(B, C, HW),
                           in3u.reshape(B, C, HW)],
                          3 * C, thw)
        w_conv = params["conv_cross1"]
    else:
        if in1.shape[2] > in2.shape[2]:
            u, v, swap = in1, in2u, False   # scale from in1, cat(s*in2, in1*sig(in2))
        else:
            u, v, swap = in2u, in1, True    # scale from in2, cat(in2*sig(in1), s*in1)
        s = gate_scale(u, wg, bg)
        kernel = functools.partial(_gate2_kernel, swap=swap)
        xcat = _gate_call(kernel, s,
                          [u.reshape(B, C, HW), v.reshape(B, C, HW)],
                          2 * C, thw)
        w_conv = params["conv_cross2"]

    # im2col in bf16, directly in the (B, K, HW) layout the conv kernel consumes.
    xcol3 = im2col_taps(xcat.reshape(B, -1, H, W))               # (B, Cin*9, HW) bf16
    w2d = w_conv.reshape(C, -1).astype(jnp.bfloat16)             # (Cout, Cin*9) bf16

    y3, s1, s2 = conv_cross(w2d, xcol3, thw)                     # (B, C, HW) f32 + stats

    # BatchNorm (training-mode batch statistics, biased variance — matches the
    # nn.BatchNorm2d training forward) finalized from the per-tile partial sums.
    n = float(B * HW)
    ssum = jnp.sum(s1, axis=(0, 1))[:, 0]                        # (C,)
    ssq = jnp.sum(s2, axis=(0, 1))[:, 0]
    mean = ssum / n
    var = jnp.maximum(ssq / n - mean * mean, 0.0)
    a = params["bn_g"] * lax.rsqrt(var + EPS)
    bsh = params["bn_b"] - mean * a

    out = gcb_bn_mul(y3, a.reshape(C, 1), bsh.reshape(C, 1), params["gcb"])
    return out.reshape(B, C, H, W)


# ---------------------------------------------------------------------------
# Pure-JAX reference (for correctness checking).
# The conv operands are rounded to bf16 to mirror the kernel's intended
# mixed precision (bf16 MXU operands, f32 accumulation); everything else f32.
# ---------------------------------------------------------------------------
def haim_ref(params, in1, in2, in3=None):
    B, _, H, W = in1.shape
    wg, bg = params["convg_w"], params["convg_b"]
    in2u = bilinear_resize(in2, H, W)
    if in3 is not None:
        in3u = bilinear_resize(in3, H, W)
        c = in3u.mean(axis=(2, 3)) @ wg.T + bg
        s = jax.nn.softmax(c, axis=1) * C
        xcat = jnp.concatenate([in1, s[:, :, None, None] * in2u,
                                in3u * jax.nn.sigmoid(in2u)], axis=1)
        wconv = params["conv_cross1"]
    else:
        if in1.shape[2] > in2.shape[2]:
            c = in1.mean(axis=(2, 3)) @ wg.T + bg
            s = jax.nn.softmax(c, axis=1) * C
            xcat = jnp.concatenate([s[:, :, None, None] * in2u,
                                    in1 * jax.nn.sigmoid(in2u)], axis=1)
        else:
            c = in2u.mean(axis=(2, 3)) @ wg.T + bg
            s = jax.nn.softmax(c, axis=1) * C
            xcat = jnp.concatenate([in2u * jax.nn.sigmoid(in1),
                                    s[:, :, None, None] * in1], axis=1)
        wconv = params["conv_cross2"]
    xq = xcat.astype(jnp.bfloat16).astype(jnp.float32)
    wq = wconv.astype(jnp.bfloat16).astype(jnp.float32)
    y = lax.conv_general_dilated(xq, wq, (1, 1), ((1, 1), (1, 1)),
                                 dimension_numbers=("NCHW", "OIHW", "NCHW"))
    m = y.mean(axis=(0, 2, 3), keepdims=True)
    v = ((y - m) ** 2).mean(axis=(0, 2, 3), keepdims=True)
    y = (y - m) / jnp.sqrt(v + EPS) * params["bn_g"][None, :, None, None] \
        + params["bn_b"][None, :, None, None]
    x = jnp.maximum(y, 0.0)
    g = params["gcb"]
    xf = x.reshape(B, C, H * W)
    logits = jnp.einsum("c,bcs->bs", g["wm"][0], xf) + g["bm"][0, 0]
    attn = jax.nn.softmax(logits, axis=1)
    context = jnp.einsum("bcs,bs->bc", xf, attn)
    h = context @ g["w1"].T + g["b1"][:, 0]
    mu = h.mean(axis=1, keepdims=True)
    var = ((h - mu) ** 2).mean(axis=1, keepdims=True)
    hn = (h - mu) / jnp.sqrt(var + EPS) * g["ln_g"][:, 0] + g["ln_b"][:, 0]
    add = jnp.maximum(hn, 0.0) @ g["w2"].T + g["b2"][:, 0]
    return x * (x + add[:, :, None, None])


# ---------------------------------------------------------------------------
def make_params(key):
    ks = jax.random.split(key, 16)
    n = lambda k, s, sc=0.1: sc * jax.random.normal(k, s, jnp.float32)
    return {
        "conv_cross1": n(ks[0], (C, 3 * C, 3, 3)),
        "conv_cross2": n(ks[1], (C, 2 * C, 3, 3)),
        "bn_g": 1.0 + n(ks[2], (C,)),
        "bn_b": n(ks[3], (C,)),
        "convg_w": n(ks[4], (C, C)),
        "convg_b": n(ks[5], (C,)),
        "gcb": {
            "wm": n(ks[6], (1, C)),
            "bm": n(ks[7], (1, 1)),
            "w1": n(ks[8], (PLANES, C)),
            "b1": n(ks[9], (PLANES, 1)),
            "ln_g": 1.0 + n(ks[10], (PLANES, 1)),
            "ln_b": n(ks[11], (PLANES, 1)),
            "w2": n(ks[12], (C, PLANES)),
            "b2": n(ks[13], (C, 1)),
        },
    }


if __name__ == "__main__":
    key = jax.random.PRNGKey(0)
    kp, k1, k2, k3 = jax.random.split(key, 4)
    params = make_params(kp)

    B, H, W = 2, 8, 8
    in1 = jax.random.normal(k1, (B, C, H, W), jnp.float32)
    in2 = jax.random.normal(k2, (B, C, 4, 4), jnp.float32)
    in3 = jax.random.normal(k3, (B, C, 4, 4), jnp.float32)

    fwd = jax.jit(haim_forward)

    # 3-input branch
    out3 = fwd(params, in1, in2, in3)
    jax.block_until_ready(out3)
    ref3 = haim_ref(params, in1, in2, in3)
    assert out3.shape == (B, C, H, W)
    assert jnp.allclose(out3, ref3, atol=5e-3, rtol=5e-3), \
        float(jnp.max(jnp.abs(out3 - ref3)))

    # 2-input branch (in3=None, in1 spatial > in2 spatial)
    out2 = fwd(params, in1, in2)
    jax.block_until_ready(out2)
    ref2 = haim_ref(params, in1, in2)
    assert jnp.allclose(out2, ref2, atol=5e-3, rtol=5e-3), \
        float(jnp.max(jnp.abs(out2 - ref2)))

    print("KERNEL_OK")
</pallas_src>

<mosaic_0001>
module attributes {stable_mosaic.version = 11 : i64} {
  func.func @_gate3_kernel(%arg0: i32, %arg1: i32, %arg2: memref<1x64x1xf32, #tpu.memory_space<vmem>>, %arg3: memref<1x64x64xf32, #tpu.memory_space<vmem>>, %arg4: memref<1x64x64xf32, #tpu.memory_space<vmem>>, %arg5: memref<1x64x64xf32, #tpu.memory_space<vmem>>, %arg6: memref<1x192x64xbf16, #tpu.memory_space<vmem>>) attributes {dimension_semantics = [#tpu.dimension_semantics<parallel>, #tpu.dimension_semantics<parallel>], iteration_bounds = array<i64: 2, 1>, scalar_prefetch = 0 : i64, scratch_operands = 0 : i64, tpu.core_type = #tpu.core_type<tc>, window_params = [{transform_indices = @transform_0, window_bounds = array<i64: 1, 64, 1>}, {transform_indices = @transform_1, window_bounds = array<i64: 1, 64, 64>}, {transform_indices = @transform_2, window_bounds = array<i64: 1, 64, 64>}, {transform_indices = @transform_3, window_bounds = array<i64: 1, 64, 64>}, {transform_indices = @transform_4, window_bounds = array<i64: 1, 192, 64>}]} {
    %c0 = arith.constant 0 : index
    %c0_0 = arith.constant 0 : index
    %c0_1 = arith.constant 0 : index
    %0 = vector.load %arg2[%c0, %c0_0, %c0_1] : memref<1x64x1xf32, #tpu.memory_space<vmem>>, vector<1x64x1xf32>
    %1 = vector.shape_cast %0 : vector<1x64x1xf32> to vector<64x1xf32>
    %c0_2 = arith.constant 0 : index
    %c0_3 = arith.constant 0 : index
    %c0_4 = arith.constant 0 : index
    %2 = vector.load %arg3[%c0_2, %c0_3, %c0_4] : memref<1x64x64xf32, #tpu.memory_space<vmem>>, vector<1x64x64xf32>
    %3 = vector.shape_cast %2 : vector<1x64x64xf32> to vector<64x64xf32>
    %c0_5 = arith.constant 0 : index
    %c0_6 = arith.constant 0 : index
    %c0_7 = arith.constant 0 : index
    %4 = vector.load %arg4[%c0_5, %c0_6, %c0_7] : memref<1x64x64xf32, #tpu.memory_space<vmem>>, vector<1x64x64xf32>
    %5 = vector.shape_cast %4 : vector<1x64x64xf32> to vector<64x64xf32>
    %c0_8 = arith.constant 0 : index
    %c0_9 = arith.constant 0 : index
    %c0_10 = arith.constant 0 : index
    %6 = vector.load %arg5[%c0_8, %c0_9, %c0_10] : memref<1x64x64xf32, #tpu.memory_space<vmem>>, vector<1x64x64xf32>
    %7 = vector.shape_cast %6 : vector<1x64x64xf32> to vector<64x64xf32>
    %8 = arith.truncf %3 : vector<64x64xf32> to vector<64x64xbf16>
    %c0_11 = arith.constant 0 : index
    %c0_12 = arith.constant 0 : index
    %c0_13 = arith.constant 0 : index
    %9 = vector.load %arg6[%c0_11, %c0_12, %c0_13] : memref<1x192x64xbf16, #tpu.memory_space<vmem>>, vector<1x64x64xbf16>
    %10 = vector.shape_cast %9 : vector<1x64x64xbf16> to vector<64x64xbf16>
    %11 = vector.shape_cast %8 : vector<64x64xbf16> to vector<1x64x64xbf16>
    tpu.vector_store %arg6[%c0_11, %c0_12, %c0_13], %11 {strides = array<i32>} : memref<1x192x64xbf16, #tpu.memory_space<vmem>>, vector<1x64x64xbf16>,
    %12 = vector.broadcast %1 : vector<64x1xf32> to vector<64x64xf32>
    %13 = arith.mulf %12, %5 : vector<64x64xf32>
    %14 = arith.truncf %13 : vector<64x64xf32> to vector<64x64xbf16>
    %c0_14 = arith.constant 0 : index
    %c64 = arith.constant 64 : index
    %c0_15 = arith.constant 0 : index
    %15 = vector.load %arg6[%c0_14, %c64, %c0_15] : memref<1x192x64xbf16, #tpu.memory_space<vmem>>, vector<1x64x64xbf16>
    %16 = vector.shape_cast %15 : vector<1x64x64xbf16> to vector<64x64xbf16>
    %17 = vector.shape_cast %14 : vector<64x64xbf16> to vector<1x64x64xbf16>
    tpu.vector_store %arg6[%c0_14, %c64, %c0_15], %17 {strides = array<i32>} : memref<1x192x64xbf16, #tpu.memory_space<vmem>>, vector<1x64x64xbf16>,
    %18 = arith.negf %5 : vector<64x64xf32>
    %19 = math.exp %18 : vector<64x64xf32>
    %cst = arith.constant 1.000000e+00 : f32
    %20 = vector.broadcast %cst : f32 to vector<64x64xf32>
    %21 = arith.addf %20, %19 : vector<64x64xf32>
    %22 = arith.divf %20, %21 : vector<64x64xf32>
    %23 = arith.mulf %7, %22 : vector<64x64xf32>
    %24 = arith.truncf %23 : vector<64x64xf32> to vector<64x64xbf16>
    %c0_16 = arith.constant 0 : index
    %c128 = arith.constant 128 : index
    %c0_17 = arith.constant 0 : index
    %25 = vector.load %arg6[%c0_16, %c128, %c0_17] : memref<1x192x64xbf16, #tpu.memory_space<vmem>>, vector<1x64x64xbf16>
    %26 = vector.shape_cast %25 : vector<1x64x64xbf16> to vector<64x64xbf16>
    %27 = vector.shape_cast %24 : vector<64x64xbf16> to vector<1x64x64xbf16>
    tpu.vector_store %arg6[%c0_16, %c128, %c0_17], %27 {strides = array<i32>} : memref<1x192x64xbf16, #tpu.memory_space<vmem>>, vector<1x64x64xbf16>,
    return
  }
  func.func @transform_0(%arg0: i32, %arg1: i32) -> (i32, i32, i32) {
    %c0_i32 = arith.constant 0 : i32
    %c0_i32_0 = arith.constant 0 : i32
    %c0_i32_1 = arith.constant 0 : i32
    return %arg0, %c0_i32, %c0_i32_0 : i32, i32, i32
  }
  func.func @transform_1(%arg0: i32, %arg1: i32) -> (i32, i32, i32) {
    %c0_i32 = arith.constant 0 : i32
    %c0_i32_0 = arith.constant 0 : i32
    return %arg0, %c0_i32, %arg1 : i32, i32, i32
  }
  func.func @transform_2(%arg0: i32, %arg1: i32) -> (i32, i32, i32) {
    %c0_i32 = arith.constant 0 : i32
    %c0_i32_0 = arith.constant 0 : i32
    return %arg0, %c0_i32, %arg1 : i32, i32, i32
  }
  func.func @transform_3(%arg0: i32, %arg1: i32) -> (i32, i32, i32) {
    %c0_i32 = arith.constant 0 : i32
    %c0_i32_0 = arith.constant 0 : i32
    return %arg0, %c0_i32, %arg1 : i32, i32, i32
  }
  func.func @transform_4(%arg0: i32, %arg1: i32) -> (i32, i32, i32) {
    %c0_i32 = arith.constant 0 : i32
    %c0_i32_0 = arith.constant 0 : i32
    return %arg0, %c0_i32, %arg1 : i32, i32, i32
  }
}

module attributes {stable_mosaic.version = 11 : i64} {
  func.func @_conv_stats_kernel(%arg0: i32, %arg1: i32, %arg2: memref<64x1728xbf16, #tpu.memory_space<vmem>>, %arg3: memref<1x1728x64xbf16, #tpu.memory_space<vmem>>, %arg4: memref<1x64x64xf32, #tpu.memory_space<vmem>>, %arg5: memref<1x1x64x1xf32, #tpu.memory_space<vmem>>, %arg6: memref<1x1x64x1xf32, #tpu.memory_space<vmem>>) attributes {dimension_semantics = [#tpu.dimension_semantics<parallel>, #tpu.dimension_semantics<parallel>], iteration_bounds = array<i64: 2, 1>, scalar_prefetch = 0 : i64, scratch_operands = 0 : i64, tpu.core_type = #tpu.core_type<tc>, window_params = [{pipeline_mode = #tpu.pipeline_mode<synchronous>, transform_indices = @transform_0, window_bounds = array<i64: 64, 1728>}, {transform_indices = @transform_1, window_bounds = array<i64: 1, 1728, 64>}, {transform_indices = @transform_2, window_bounds = array<i64: 1, 64, 64>}, {transform_indices = @transform_3, window_bounds = array<i64: 1, 1, 64, 1>}, {transform_indices = @transform_4, window_bounds = array<i64: 1, 1, 64, 1>}]} {
    %c0 = arith.constant 0 : index
    %c0_0 = arith.constant 0 : index
    %0 = vector.load %arg2[%c0, %c0_0] : memref<64x1728xbf16, #tpu.memory_space<vmem>>, vector<64x1728xbf16>
    %c0_1 = arith.constant 0 : index
    %c0_2 = arith.constant 0 : index
    %c0_3 = arith.constant 0 : index
    %1 = vector.load %arg3[%c0_1, %c0_2, %c0_3] : memref<1x1728x64xbf16, #tpu.memory_space<vmem>>, vector<1x1728x64xbf16>
    %2 = vector.shape_cast %1 : vector<1x1728x64xbf16> to vector<1728x64xbf16>
    %cst = arith.constant dense<0.000000e+00> : vector<64x64xf32>
    %3 = tpu.matmul %0, %2, %cst {dimension_numbers = #tpu.dot_dimension_numbers<[1], [0], [0], [1], [0, 0, 1, 1], [], []>} : vector<64x1728xbf16>, vector<1728x64xbf16>, vector<64x64xf32> -> vector<64x64xf32>
    %c0_4 = arith.constant 0 : index
    %c0_5 = arith.constant 0 : index
    %c0_6 = arith.constant 0 : index
    %4 = vector.load %arg4[%c0_4, %c0_5, %c0_6] : memref<1x64x64xf32, #tpu.memory_space<vmem>>, vector<1x64x64xf32>
    %5 = vector.shape_cast %4 : vector<1x64x64xf32> to vector<64x64xf32>
    %6 = vector.shape_cast %3 : vector<64x64xf32> to vector<1x64x64xf32>
    tpu.vector_store %arg4[%c0_4, %c0_5, %c0_6], %6 {strides = array<i32>} : memref<1x64x64xf32, #tpu.memory_space<vmem>>, vector<1x64x64xf32>,
    %cst_7 = arith.constant dense<0.000000e+00> : vector<64xf32>
    %7 = vector.multi_reduction <add>, %3, %cst_7 [1] : vector<64x64xf32> to vector<64xf32>
    %8 = vector.shape_cast %7 : vector<64xf32> to vector<64x1xf32>
    %c0_8 = arith.constant 0 : index
    %c0_9 = arith.constant 0 : index
    %c0_10 = arith.constant 0 : index
    %c0_11 = arith.constant 0 : index
    %9 = vector.load %arg5[%c0_8, %c0_9, %c0_10, %c0_11] : memref<1x1x64x1xf32, #tpu.memory_space<vmem>>, vector<1x1x64x1xf32>
    %10 = vector.shape_cast %9 : vector<1x1x64x1xf32> to vector<64x1xf32>
    %11 = vector.shape_cast %8 : vector<64x1xf32> to vector<1x1x64x1xf32>
    tpu.vector_store %arg5[%c0_8, %c0_9, %c0_10, %c0_11], %11 {strides = array<i32>} : memref<1x1x64x1xf32, #tpu.memory_space<vmem>>, vector<1x1x64x1xf32>,
    %12 = arith.mulf %3, %3 : vector<64x64xf32>
    %cst_12 = arith.constant dense<0.000000e+00> : vector<64xf32>
    %13 = vector.multi_reduction <add>, %12, %cst_12 [1] : vector<64x64xf32> to vector<64xf32>
    %14 = vector.shape_cast %13 : vector<64xf32> to vector<64x1xf32>
    %c0_13 = arith.constant 0 : index
    %c0_14 = arith.constant 0 : index
    %c0_15 = arith.constant 0 : index
    %c0_16 = arith.constant 0 : index
    %15 = vector.load %arg6[%c0_13, %c0_14, %c0_15, %c0_16] : memref<1x1x64x1xf32, #tpu.memory_space<vmem>>, vector<1x1x64x1xf32>
    %16 = vector.shape_cast %15 : vector<1x1x64x1xf32> to vector<64x1xf32>
    %17 = vector.shape_cast %14 : vector<64x1xf32> to vector<1x1x64x1xf32>
    tpu.vector_store %arg6[%c0_13, %c0_14, %c0_15, %c0_16], %17 {strides = array<i32>} : memref<1x1x64x1xf32, #tpu.memory_space<vmem>>, vector<1x1x64x1xf32>,
    return
  }
  func.func @transform_0(%arg0: i32, %arg1: i32) -> (i32, i32) {
    %c0_i32 = arith.constant 0 : i32
    %c0_i32_0 = arith.constant 0 : i32
    %c0_i32_1 = arith.constant 0 : i32
    return %c0_i32, %c0_i32_0 : i32, i32
  }
  func.func @transform_1(%arg0: i32, %arg1: i32) -> (i32, i32, i32) {
    %c0_i32 = arith.constant 0 : i32
    %c0_i32_0 = arith.constant 0 : i32
    return %arg0, %c0_i32, %arg1 : i32, i32, i32
  }
  func.func @transform_2(%arg0: i32, %arg1: i32) -> (i32, i32, i32) {
    %c0_i32 = arith.constant 0 : i32
    %c0_i32_0 = arith.constant 0 : i32
    return %arg0, %c0_i32, %arg1 : i32, i32, i32
  }
  func.func @transform_3(%arg0: i32, %arg1: i32) -> (i32, i32, i32, i32) {
    %c0_i32 = arith.constant 0 : i32
    %c0_i32_0 = arith.constant 0 : i32
    %c0_i32_1 = arith.constant 0 : i32
    return %arg0, %arg1, %c0_i32, %c0_i32_0 : i32, i32, i32, i32
  }
  func.func @transform_4(%arg0: i32, %arg1: i32) -> (i32, i32, i32, i32) {
    %c0_i32 = arith.constant 0 : i32
    %c0_i32_0 = arith.constant 0 : i32
    %c0_i32_1 = arith.constant 0 : i32
    return %arg0, %arg1, %c0_i32, %c0_i32_0 : i32, i32, i32, i32
  }
}

module attributes {stable_mosaic.version = 11 : i64} {
  func.func @_gcb_kernel(%arg0: i32, %arg1: memref<1x64x64xf32, #tpu.memory_space<vmem>>, %arg2: memref<64x1xf32, #tpu.memory_space<vmem>>, %arg3: memref<64x1xf32, #tpu.memory_space<vmem>>, %arg4: memref<64x1xf32, #tpu.memory_space<vmem>>, %arg5: memref<1x1xf32, #tpu.memory_space<vmem>>, %arg6: memref<16x64xf32, #tpu.memory_space<vmem>>, %arg7: memref<16x1xf32, #tpu.memory_space<vmem>>, %arg8: memref<16x1xf32, #tpu.memory_space<vmem>>, %arg9: memref<16x1xf32, #tpu.memory_space<vmem>>, %arg10: memref<64x16xf32, #tpu.memory_space<vmem>>, %arg11: memref<64x1xf32, #tpu.memory_space<vmem>>, %arg12: memref<1x64x64xf32, #tpu.memory_space<vmem>>) attributes {dimension_semantics = [#tpu.dimension_semantics<parallel>], iteration_bounds = array<i64: 2>, scalar_prefetch = 0 : i64, scratch_operands = 0 : i64, tpu.core_type = #tpu.core_type<tc>, window_params = [{transform_indices = @transform_0, window_bounds = array<i64: 1, 64, 64>}, {pipeline_mode = #tpu.pipeline_mode<synchronous>, transform_indices = @transform_1, window_bounds = array<i64: 64, 1>}, {pipeline_mode = #tpu.pipeline_mode<synchronous>, transform_indices = @transform_2, window_bounds = array<i64: 64, 1>}, {pipeline_mode = #tpu.pipeline_mode<synchronous>, transform_indices = @transform_3, window_bounds = array<i64: 64, 1>}, {pipeline_mode = #tpu.pipeline_mode<synchronous>, transform_indices = @transform_4, window_bounds = array<i64: 1, 1>}, {pipeline_mode = #tpu.pipeline_mode<synchronous>, transform_indices = @transform_5, window_bounds = array<i64: 16, 64>}, {pipeline_mode = #tpu.pipeline_mode<synchronous>, transform_indices = @transform_6, window_bounds = array<i64: 16, 1>}, {pipeline_mode = #tpu.pipeline_mode<synchronous>, transform_indices = @transform_7, window_bounds = array<i64: 16, 1>}, {pipeline_mode = #tpu.pipeline_mode<synchronous>, transform_indices = @transform_8, window_bounds = array<i64: 16, 1>}, {pipeline_mode = #tpu.pipeline_mode<synchronous>, transform_indices = @transform_9, window_bounds = array<i64: 64, 16>}, {pipeline_mode = #tpu.pipeline_mode<synchronous>, transform_indices = @transform_10, window_bounds = array<i64: 64, 1>}, {transform_indices = @transform_11, window_bounds = array<i64: 1, 64, 64>}]} {
    %c0 = arith.constant 0 : index
    %c0_0 = arith.constant 0 : index
    %c0_1 = arith.constant 0 : index
    %0 = vector.load %arg1[%c0, %c0_0, %c0_1] : memref<1x64x64xf32, #tpu.memory_space<vmem>>, vector<1x64x64xf32>
    %1 = vector.shape_cast %0 : vector<1x64x64xf32> to vector<64x64xf32>
    %c0_2 = arith.constant 0 : index
    %c0_3 = arith.constant 0 : index
    %2 = vector.load %arg2[%c0_2, %c0_3] : memref<64x1xf32, #tpu.memory_space<vmem>>, vector<64x1xf32>
    %3 = vector.broadcast %2 : vector<64x1xf32> to vector<64x64xf32>
    %4 = arith.mulf %1, %3 : vector<64x64xf32>
    %c0_4 = arith.constant 0 : index
    %c0_5 = arith.constant 0 : index
    %5 = vector.load %arg3[%c0_4, %c0_5] : memref<64x1xf32, #tpu.memory_space<vmem>>, vector<64x1xf32>
    %6 = vector.broadcast %5 : vector<64x1xf32> to vector<64x64xf32>
    %7 = arith.addf %4, %6 : vector<64x64xf32>
    %cst = arith.constant 0.000000e+00 : f32
    %8 = vector.broadcast %cst : f32 to vector<64x64xf32>
    %9 = arith.maximumf %7, %8 : vector<64x64xf32>
    %c0_6 = arith.constant 0 : index
    %c0_7 = arith.constant 0 : index
    %10 = vector.load %arg4[%c0_6, %c0_7] : memref<64x1xf32, #tpu.memory_space<vmem>>, vector<64x1xf32>
    %11 = vector.broadcast %10 : vector<64x1xf32> to vector<64x64xf32>
    %12 = arith.mulf %9, %11 : vector<64x64xf32>
    %cst_8 = arith.constant dense<0.000000e+00> : vector<64xf32>
    %13 = vector.multi_reduction <add>, %12, %cst_8 [0] : vector<64x64xf32> to vector<64xf32>
    %14 = vector.shape_cast %13 : vector<64xf32> to vector<1x64xf32>
    %c0_9 = arith.constant 0 : index
    %c0_10 = arith.constant 0 : index
    %15 = vector.load %arg5[%c0_9, %c0_10] : memref<1x1xf32, #tpu.memory_space<vmem>>, vector<1x1xf32>
    %16 = vector.broadcast %15 : vector<1x1xf32> to vector<1x64xf32>
    %17 = arith.addf %14, %16 : vector<1x64xf32>
    %cst_11 = arith.constant dense<0xFF800000> : vector<1xf32>
    %18 = vector.multi_reduction <maximumf>, %17, %cst_11 [1] : vector<1x64xf32> to vector<1xf32>
    %19 = vector.shape_cast %18 : vector<1xf32> to vector<1x1xf32>
    %20 = vector.broadcast %19 : vector<1x1xf32> to vector<1x64xf32>
    %21 = arith.subf %17, %20 : vector<1x64xf32>
    %22 = math.exp %21 : vector<1x64xf32>
    %cst_12 = arith.constant dense<0.000000e+00> : vector<1xf32>
    %23 = vector.multi_reduction <add>, %22, %cst_12 [1] : vector<1x64xf32> to vector<1xf32>
    %24 = vector.shape_cast %23 : vector<1xf32> to vector<1x1xf32>
    %25 = vector.broadcast %24 : vector<1x1xf32> to vector<1x64xf32>
    %26 = arith.divf %22, %25 : vector<1x64xf32>
    %27 = vector.broadcast %26 : vector<1x64xf32> to vector<64x64xf32>
    %28 = arith.mulf %9, %27 : vector<64x64xf32>
    %cst_13 = arith.constant dense<0.000000e+00> : vector<64xf32>
    %29 = vector.multi_reduction <add>, %28, %cst_13 [1] : vector<64x64xf32> to vector<64xf32>
    %30 = vector.shape_cast %29 : vector<64xf32> to vector<64x1xf32>
    %c0_14 = arith.constant 0 : index
    %c0_15 = arith.constant 0 : index
    %31 = vector.load %arg6[%c0_14, %c0_15] : memref<16x64xf32, #tpu.memory_space<vmem>>, vector<16x64xf32>
    %cst_16 = arith.constant dense<0.000000e+00> : vector<16x1xf32>
    %32 = tpu.matmul %31, %30, %cst_16 {dimension_numbers = #tpu.dot_dimension_numbers<[1], [0], [0], [1], [0, 0, 1, 1], [], []>} : vector<16x64xf32>, vector<64x1xf32>, vector<16x1xf32> -> vector<16x1xf32>
    %c0_17 = arith.constant 0 : index
    %c0_18 = arith.constant 0 : index
    %33 = vector.load %arg7[%c0_17, %c0_18] : memref<16x1xf32, #tpu.memory_space<vmem>>, vector<16x1xf32>
    %34 = arith.addf %32, %33 : vector<16x1xf32>
    %35 = vector.shape_cast %34 : vector<16x1xf32> to vector<1x16x1xf32>
    %cst_19 = arith.constant dense<0.000000e+00> : vector<1xf32>
    %36 = vector.multi_reduction <add>, %35, %cst_19 [1, 2] : vector<1x16x1xf32> to vector<1xf32>
    %37 = vector.shape_cast %36 : vector<1xf32> to vector<1x1x1xf32>
    %38 = vector.extract %37[0, 0, 0] : f32 from vector<1x1x1xf32>
    %39 = vector.broadcast %38 : f32 to vector<1x1xf32>
    %cst_20 = arith.constant 1.600000e+01 : f32
    %40 = vector.broadcast %cst_20 : f32 to vector<1x1xf32>
    %41 = arith.divf %39, %40 : vector<1x1xf32>
    %42 = vector.broadcast %41 : vector<1x1xf32> to vector<16x1xf32>
    %43 = arith.subf %34, %42 : vector<16x1xf32>
    %44 = arith.mulf %43, %43 : vector<16x1xf32>
    %45 = vector.shape_cast %44 : vector<16x1xf32> to vector<1x16x1xf32>
    %cst_21 = arith.constant dense<0.000000e+00> : vector<1xf32>
    %46 = vector.multi_reduction <add>, %45, %cst_21 [1, 2] : vector<1x16x1xf32> to vector<1xf32>
    %47 = vector.shape_cast %46 : vector<1xf32> to vector<1x1x1xf32>
    %48 = vector.extract %47[0, 0, 0] : f32 from vector<1x1x1xf32>
    %49 = vector.broadcast %48 : f32 to vector<1x1xf32>
    %cst_22 = arith.constant 1.600000e+01 : f32
    %50 = vector.broadcast %cst_22 : f32 to vector<1x1xf32>
    %51 = arith.divf %49, %50 : vector<1x1xf32>
    %52 = vector.broadcast %41 : vector<1x1xf32> to vector<16x1xf32>
    %53 = arith.subf %34, %52 : vector<16x1xf32>
    %cst_23 = arith.constant 9.99999974E-6 : f32
    %54 = vector.broadcast %cst_23 : f32 to vector<1x1xf32>
    %55 = arith.addf %51, %54 : vector<1x1xf32>
    %56 = math.rsqrt %55 : vector<1x1xf32>
    %57 = vector.broadcast %56 : vector<1x1xf32> to vector<16x1xf32>
    %58 = arith.mulf %53, %57 : vector<16x1xf32>
    %c0_24 = arith.constant 0 : index
    %c0_25 = arith.constant 0 : index
    %59 = vector.load %arg8[%c0_24, %c0_25] : memref<16x1xf32, #tpu.memory_space<vmem>>, vector<16x1xf32>
    %60 = arith.mulf %58, %59 : vector<16x1xf32>
    %c0_26 = arith.constant 0 : index
    %c0_27 = arith.constant 0 : index
    %61 = vector.load %arg9[%c0_26, %c0_27] : memref<16x1xf32, #tpu.memory_space<vmem>>, vector<16x1xf32>
    %62 = arith.addf %60, %61 : vector<16x1xf32>
    %cst_28 = arith.constant 0.000000e+00 : f32
    %63 = vector.broadcast %cst_28 : f32 to vector<16x1xf32>
    %64 = arith.maximumf %62, %63 : vector<16x1xf32>
    %c0_29 = arith.constant 0 : index
    %c0_30 = arith.constant 0 : index
    %65 = vector.load %arg10[%c0_29, %c0_30] : memref<64x16xf32, #tpu.memory_space<vmem>>, vector<64x16xf32>
    %cst_31 = arith.constant dense<0.000000e+00> : vector<64x1xf32>
    %66 = tpu.matmul %65, %64, %cst_31 {dimension_numbers = #tpu.dot_dimension_numbers<[1], [0], [0], [1], [0, 0, 1, 1], [], []>} : vector<64x16xf32>, vector<16x1xf32>, vector<64x1xf32> -> vector<64x1xf32>
    %c0_32 = arith.constant 0 : index
    %c0_33 = arith.constant 0 : index
    %67 = vector.load %arg11[%c0_32, %c0_33] : memref<64x1xf32, #tpu.memory_space<vmem>>, vector<64x1xf32>
    %68 = arith.addf %66, %67 : vector<64x1xf32>
    %69 = vector.broadcast %68 : vector<64x1xf32> to vector<64x64xf32>
    %70 = arith.addf %9, %69 : vector<64x64xf32>
    %71 = arith.mulf %9, %70 : vector<64x64xf32>
    %c0_34 = arith.constant 0 : index
    %c0_35 = arith.constant 0 : index
    %c0_36 = arith.constant 0 : index
    %72 = vector.load %arg12[%c0_34, %c0_35, %c0_36] : memref<1x64x64xf32, #tpu.memory_space<vmem>>, vector<1x64x64xf32>
    %73 = vector.shape_cast %72 : vector<1x64x64xf32> to vector<64x64xf32>
    %74 = vector.shape_cast %71 : vector<64x64xf32> to vector<1x64x64xf32>
    tpu.vector_store %arg12[%c0_34, %c0_35, %c0_36], %74 {strides = array<i32>} : memref<1x64x64xf32, #tpu.memory_space<vmem>>, vector<1x64x64xf32>,
    return
  }
  func.func @transform_0(%arg0: i32) -> (i32, i32, i32) {
    %c0_i32 = arith.constant 0 : i32
    %c0_i32_0 = arith.constant 0 : i32
    %c0_i32_1 = arith.constant 0 : i32
    return %arg0, %c0_i32, %c0_i32_0 : i32, i32, i32
  }
  func.func @transform_1(%arg0: i32) -> (i32, i32) {
    %c0_i32 = arith.constant 0 : i32
    %c0_i32_0 = arith.constant 0 : i32
    %c0_i32_1 = arith.constant 0 : i32
    return %c0_i32, %c0_i32_0 : i32, i32
  }
  func.func @transform_2(%arg0: i32) -> (i32, i32) {
    %c0_i32 = arith.constant 0 : i32
    %c0_i32_0 = arith.constant 0 : i32
    %c0_i32_1 = arith.constant 0 : i32
    return %c0_i32, %c0_i32_0 : i32, i32
  }
  func.func @transform_3(%arg0: i32) -> (i32, i32) {
    %c0_i32 = arith.constant 0 : i32
    %c0_i32_0 = arith.constant 0 : i32
    %c0_i32_1 = arith.constant 0 : i32
    return %c0_i32, %c0_i32_0 : i32, i32
  }
  func.func @transform_4(%arg0: i32) -> (i32, i32) {
    %c0_i32 = arith.constant 0 : i32
    %c0_i32_0 = arith.constant 0 : i32
    %c0_i32_1 = arith.constant 0 : i32
    return %c0_i32, %c0_i32_0 : i32, i32
  }
  func.func @transform_5(%arg0: i32) -> (i32, i32) {
    %c0_i32 = arith.constant 0 : i32
    %c0_i32_0 = arith.constant 0 : i32
    %c0_i32_1 = arith.constant 0 : i32
    return %c0_i32, %c0_i32_0 : i32, i32
  }
  func.func @transform_6(%arg0: i32) -> (i32, i32) {
    %c0_i32 = arith.constant 0 : i32
    %c0_i32_0 = arith.constant 0 : i32
    %c0_i32_1 = arith.constant 0 : i32
    return %c0_i32, %c0_i32_0 : i32, i32
  }
  func.func @transform_7(%arg0: i32) -> (i32, i32) {
    %c0_i32 = arith.constant 0 : i32
    %c0_i32_0 = arith.constant 0 : i32
    %c0_i32_1 = arith.constant 0 : i32
    return %c0_i32, %c0_i32_0 : i32, i32
  }
  func.func @transform_8(%arg0: i32) -> (i32, i32) {
    %c0_i32 = arith.constant 0 : i32
    %c0_i32_0 = arith.constant 0 : i32
    %c0_i32_1 = arith.constant 0 : i32
    return %c0_i32, %c0_i32_0 : i32, i32
  }
  func.func @transform_9(%arg0: i32) -> (i32, i32) {
    %c0_i32 = arith.constant 0 : i32
    %c0_i32_0 = arith.constant 0 : i32
    %c0_i32_1 = arith.constant 0 : i32
    return %c0_i32, %c0_i32_0 : i32, i32
  }
  func.func @transform_10(%arg0: i32) -> (i32, i32) {
    %c0_i32 = arith.constant 0 : i32
    %c0_i32_0 = arith.constant 0 : i32
    %c0_i32_1 = arith.constant 0 : i32
    return %c0_i32, %c0_i32_0 : i32, i32
  }
  func.func @transform_11(%arg0: i32) -> (i32, i32, i32) {
    %c0_i32 = arith.constant 0 : i32
    %c0_i32_0 = arith.constant 0 : i32
    %c0_i32_1 = arith.constant 0 : i32
    return %arg0, %c0_i32, %c0_i32_0 : i32, i32, i32
  }
}

</mosaic_0001>

<llo_original>
// kernel: haim_forward.3
$region0: #{haim_forward.3}
  #allocation0 [shape = 'u32[]', space=smem, size = 0x4, offset = 0x4, fixed_abs, tag = 'smem constant byte address 0x4 - core index']
  #allocation1 [shape = 'u32[72,128]{1,0:T(1,128)}', space=vmem, size = 0x9000, scoped, tag = 'internal scratch']
  %s0 = inlined_call_operand.vmem [shape: f32[2,64,1], index: 0, kind: input, shape index: {}]
  %s1 = inlined_call_operand.vmem [shape: f32[2,64,64], index: 1, kind: input, shape index: {}]
  %s2 = inlined_call_operand.vmem [shape: f32[2,64,64], index: 2, kind: input, shape index: {}]
  %s3 = inlined_call_operand.vmem [shape: f32[2,64,64], index: 3, kind: input, shape index: {}]
  %s4 = inlined_call_operand.vmem [shape: bf16[2,192,64], index: 4, kind: output, shape index: {}]
  %s5 = sld [smem:[#allocation0]]
  $region49: #{haim_forward.3} parent=0
    _
  %s7 = ssub.s32 1, %s5
  %s8 = scalar_select 0, %s7, %s5
  loop: start=0, step=1, limit=4
  $region2: #{haim_forward.3} parent=0 // loop_pre_header
    _
  $region3: #{haim_forward.3} parent=0 // loop_header
    %s10 = sphi 0, %s14
    %p11 = scmp.ge.s32.totalorder %s10, 4
    %s17 = sphi 0, %s29
    %s18 = sphi 0, %s25
    %s19 = sphi 0, %s17
    %s20 = sphi 0, %s18
    %s21 = sphi 0, %s19
    %s22 = sphi 0, %s20
    %s32 = sphi 0, %s34
    %s35 = sphi 0, %s32
    %s36 = sphi 0, %s35
    %s52 = sphi 0, %s36
    %s60 = sphi 0, %s62
    %s63 = sphi 0, %s60
    %s64 = sphi 0, %s63
    %s80 = sphi 0, %s64
    %s88 = sphi 0, %s90
    %s91 = sphi 0, %s88
    %s92 = sphi 0, %s91
    %s108 = sphi 0, %s92
    %s116 = sphi 0, %s118
    %s119 = sphi 0, %s116
    %s120 = sphi 0, %s119
    %s136 = sphi 0, %s120
    %s144 = sphi 0, %s146
    %s147 = sphi 0, %s144
    %s148 = sphi 0, %s147
    %s164 = sphi 0, %s148
  $region4: #{haim_forward.3} parent=0 // loop_header_branch
    %13 = sbr.rel (%p11) target = $region8
  $region5: #{haim_forward.3} parent=0 // loop_body
    %s15 = ssub.s32 %s10, 1
    %s16 = ssub.s32 %s10, 2
    %s23 = sadd.s32 1, %s18
    %p24 = scmp.ge.s32.totalorder %s23, 1
    %s25 = scalar_select %p24, 0, %s23
    %s26 = sadd.s32 1, %s17
    %s27 = scalar_select %p24, %s26, %s17
    %p28 = scmp.ge.s32.totalorder %s27, 2
    %s29 = scalar_select %p28, 0, %s27
    %s30 = ssub.s32 %s17, %s29
    %p31 = scmp.eq.s32.totalorder %s30, 0
    %s33 = sadd.s32 %s32, 1
    %s34 = scalar_select %p31, %s32, %s33
    %p37 = pneg %p31
    %p38 = scmp.eq.s32.totalorder %s10, 1
    %p39 = por %p37, %p38
    %p40 = scmp.ne.s32.totalorder %s32, %s35
    %p41 = scmp.eq.s32.totalorder %s10, 0
    %p42 = por %p40, %p41
    %p43 = scmp.ne.s32.totalorder %s32, %s35
    %p44 = scmp.eq.s32.totalorder %s15, 1
    %p45 = por %p43, %p44
    %p46 = scmp.ne.s32.totalorder %s35, %s36
    %p47 = scmp.eq.s32.totalorder %s15, 0
    %p48 = por %p46, %p47
    %p49 = scmp.ne.s32.totalorder %s35, %s36
    %p50 = scmp.eq.s32.totalorder %s16, 1
    %p51 = por %p49, %p50
    %p53 = scmp.ne.s32.totalorder %s36, %s52
    %p54 = scmp.eq.s32.totalorder %s16, 0
    %p55 = por %p53, %p54
    %s56 = ssub.s32 %s17, %s29
    %s57 = ssub.s32 %s18, %s25
    %s58 = sor.u32 %s56, %s57
    %p59 = scmp.eq.s32.totalorder %s58, 0
    %s61 = sadd.s32 %s60, 1
    %s62 = scalar_select %p59, %s60, %s61
    %p65 = pneg %p59
    %p66 = scmp.eq.s32.totalorder %s10, 1
    %p67 = por %p65, %p66
    %p68 = scmp.ne.s32.totalorder %s60, %s63
    %p69 = scmp.eq.s32.totalorder %s10, 0
    %p70 = por %p68, %p69
    %p71 = scmp.ne.s32.totalorder %s60, %s63
    %p72 = scmp.eq.s32.totalorder %s15, 1
    %p73 = por %p71, %p72
    %p74 = scmp.ne.s32.totalorder %s63, %s64
    %p75 = scmp.eq.s32.totalorder %s15, 0
    %p76 = por %p74, %p75
    %p77 = scmp.ne.s32.totalorder %s63, %s64
    %p78 = scmp.eq.s32.totalorder %s16, 1
    %p79 = por %p77, %p78
    %p81 = scmp.ne.s32.totalorder %s64, %s80
    %p82 = scmp.eq.s32.totalorder %s16, 0
    %p83 = por %p81, %p82
    %s84 = ssub.s32 %s17, %s29
    %s85 = ssub.s32 %s18, %s25
    %s86 = sor.u32 %s84, %s85
    %p87 = scmp.eq.s32.totalorder %s86, 0
    %s89 = sadd.s32 %s88, 1
    %s90 = scalar_select %p87, %s88, %s89
    %p93 = pneg %p87
    %p94 = scmp.eq.s32.totalorder %s10, 1
    %p95 = por %p93, %p94
    %p96 = scmp.ne.s32.totalorder %s88, %s91
    %p97 = scmp.eq.s32.totalorder %s10, 0
    %p98 = por %p96, %p97
    %p99 = scmp.ne.s32.totalorder %s88, %s91
    %p100 = scmp.eq.s32.totalorder %s15, 1
    %p101 = por %p99, %p100
    %p102 = scmp.ne.s32.totalorder %s91, %s92
    %p103 = scmp.eq.s32.totalorder %s15, 0
    %p104 = por %p102, %p103
    %p105 = scmp.ne.s32.totalorder %s91, %s92
    %p106 = scmp.eq.s32.totalorder %s16, 1
    %p107 = por %p105, %p106
    %p109 = scmp.ne.s32.totalorder %s92, %s108
    %p110 = scmp.eq.s32.totalorder %s16, 0
    %p111 = por %p109, %p110
    %s112 = ssub.s32 %s17, %s29
    %s113 = ssub.s32 %s18, %s25
    %s114 = sor.u32 %s112, %s113
    %p115 = scmp.eq.s32.totalorder %s114, 0
    %s117 = sadd.s32 %s116, 1
    %s118 = scalar_select %p115, %s116, %s117
    %p121 = pneg %p115
    %p122 = scmp.eq.s32.totalorder %s10, 1
    %p123 = por %p121, %p122
    %p124 = scmp.ne.s32.totalorder %s116, %s119
    %p125 = scmp.eq.s32.totalorder %s10, 0
    %p126 = por %p124, %p125
    %p127 = scmp.ne.s32.totalorder %s116, %s119
    %p128 = scmp.eq.s32.totalorder %s15, 1
    %p129 = por %p127, %p128
    %p130 = scmp.ne.s32.totalorder %s119, %s120
    %p131 = scmp.eq.s32.totalorder %s15, 0
    %p132 = por %p130, %p131
    %p133 = scmp.ne.s32.totalorder %s119, %s120
    %p134 = scmp.eq.s32.totalorder %s16, 1
    %p135 = por %p133, %p134
    %p137 = scmp.ne.s32.totalorder %s120, %s136
    %p138 = scmp.eq.s32.totalorder %s16, 0
    %p139 = por %p137, %p138
    %s140 = ssub.s32 %s17, %s29
    %s141 = ssub.s32 %s18, %s25
    %s142 = sor.u32 %s140, %s141
    %p143 = scmp.eq.s32.totalorder %s142, 0
    %s145 = sadd.s32 %s144, 1
    %s146 = scalar_select %p143, %s144, %s145
    %p149 = pneg %p143
    %p150 = scmp.eq.s32.totalorder %s10, 1
    %p151 = por %p149, %p150
    %p152 = scmp.ne.s32.totalorder %s144, %s147
    %p153 = scmp.eq.s32.totalorder %s10, 0
    %p154 = por %p152, %p153
    %p155 = scmp.ne.s32.totalorder %s144, %s147
    %p156 = scmp.eq.s32.totalorder %s15, 1
    %p157 = por %p155, %p156
    %p158 = scmp.ne.s32.totalorder %s147, %s148
    %p159 = scmp.eq.s32.totalorder %s15, 0
    %p160 = por %p158, %p159
    %p161 = scmp.ne.s32.totalorder %s147, %s148
    %p162 = scmp.eq.s32.totalorder %s16, 1
    %p163 = por %p161, %p162
    %p165 = scmp.ne.s32.totalorder %s148, %s164
    %p166 = scmp.eq.s32.totalorder %s16, 0
    %p167 = por %p165, %p166
    %p168 = scmp.le.s32.totalorder 1, %s10
    %p169 = scmp.lt.s32.totalorder %s10, 3
    %p170 = pnand %p168, %p169
    %p171 = pneg %p170
    // Predicated region
    $region9: #{haim_forward.3} parent=5 // pred_check
      _
    $region10: #{haim_forward.3} parent=5 // pred_check_branch
      %173 = sbr.rel (%p170) target = $region12
    $region11: #{haim_forward.3} parent=5 // pred_region
      %s174 = ssub.s32 %s10, 1
    $region12: #{haim_forward.3} parent=5 // pred_fallthru
      _
    %p175 = scmp.lt.s32.totalorder %s10, 2
    // Predicated region
    $region13: #{haim_forward.3} parent=5 // pred_check
      %p176 = pneg %p175
    $region14: #{haim_forward.3} parent=5 // pred_check_branch
      %178 = sbr.rel (%p176) target = $region16
    $region15: #{haim_forward.3} parent=5 // pred_region
      // Predicated region
      $region17: #{haim_forward.3} parent=15 // pred_check
        %p179 = pneg %p42
      $region18: #{haim_forward.3} parent=15 // pred_check_branch
        %181 = sbr.rel (%p179) target = $region20
      $region19: #{haim_forward.3} parent=15 // pred_region
        %p182 = scmp.lt.s32.totalorder %s17, 1
        %s183 = scalar_select %p182, %s17, 1
        %s184 = smul.addr %s183, 8
        %s185 = smul.addr %s184, 8
        %s186 = scalar_lea.vmem %s0, %s185
      $region20: #{haim_forward.3} parent=15 // pred_fallthru
        _
      // Predicated region
      $region21: #{haim_forward.3} parent=15 // pred_check
        %p187 = pneg %p70
      $region22: #{haim_forward.3} parent=15 // pred_check_branch
        %189 = sbr.rel (%p187) target = $region24
      $region23: #{haim_forward.3} parent=15 // pred_region
        %p190 = scmp.lt.s32.totalorder %s17, 1
        %s191 = scalar_select %p190, %s17, 1
        %p192 = scmp.lt.s32.totalorder %s18, 0
        %s193 = scalar_select %p192, %s18, 0
        %s194 = smul.addr %s191, 8
        %s195 = sadd.s32 %s193, %s194
        %s196 = smul.addr %s195, 8
        %s197 = scalar_lea.vmem %s1, %s196
      $region24: #{haim_forward.3} parent=15 // pred_fallthru
        _
      // Predicated region
      $region25: #{haim_forward.3} parent=15 // pred_check
        %p198 = pneg %p98
      $region26: #{haim_forward.3} parent=15 // pred_check_branch
        %200 = sbr.rel (%p198) target = $region28
      $region27: #{haim_forward.3} parent=15 // pred_region
        %p201 = scmp.lt.s32.totalorder %s17, 1
        %s202 = scalar_select %p201, %s17, 1
        %p203 = scmp.lt.s32.totalorder %s18, 0
        %s204 = scalar_select %p203, %s18, 0
        %s205 = smul.addr %s202, 8
        %s206 = sadd.s32 %s204, %s205
        %s207 = smul.addr %s206, 8
        %s208 = scalar_lea.vmem %s2, %s207
      $region28: #{haim_forward.3} parent=15 // pred_fallthru
        _
      // Predicated region
      $region29: #{haim_forward.3} parent=15 // pred_check
        %p209 = pneg %p126
      $region30: #{haim_forward.3} parent=15 // pred_check_branch
        %211 = sbr.rel (%p209) target = $region32
      $region31: #{haim_forward.3} parent=15 // pred_region
        %p212 = scmp.lt.s32.totalorder %s17, 1
        %s213 = scalar_select %p212, %s17, 1
        %p214 = scmp.lt.s32.totalorder %s18, 0
        %s215 = scalar_select %p214, %s18, 0
        %s216 = smul.addr %s213, 8
        %s217 = sadd.s32 %s215, %s216
        %s218 = smul.addr %s217, 8
        %s219 = scalar_lea.vmem %s3, %s218
      $region32: #{haim_forward.3} parent=15 // pred_fallthru
        _
    $region16: #{haim_forward.3} parent=5 // pred_fallthru
      _
    %p220 = scmp.le.s32.totalorder 1, %s10
    %p221 = scmp.lt.s32.totalorder %s10, 3
    %p222 = pnand %p220, %p221
    %p223 = pneg %p222
    // Predicated region
    $region33: #{haim_forward.3} parent=5 // pred_check
      _
    $region34: #{haim_forward.3} parent=5 // pred_check_branch
      %225 = sbr.rel (%p222) target = $region36
    $region35: #{haim_forward.3} parent=5 // pred_region
      %s226 = ssub.s32 %s10, 1
      %p227 = scmp.lt.s32.totalorder %s19, 1
      %s228 = scalar_select %p227, %s19, 1
      %s229 = smul.addr %s228, 8
      %s230 = smul.addr %s229, 8
      %s231 = scalar_lea.vmem %s0, %s230
      %p232 = pneg %p48
      %p233 = pneg %p45
      %p234 = scmp.lt.s32.totalorder %s19, 1
      %s235 = scalar_select %p234, %s19, 1
      %p236 = scmp.lt.s32.totalorder %s20, 0
      %s237 = scalar_select %p236, %s20, 0
      %s238 = smul.addr %s235, 8
      %s239 = sadd.s32 %s237, %s238
      %s240 = smul.addr %s239, 8
      %s241 = scalar_lea.vmem %s1, %s240
      %p242 = pneg %p76
      %p243 = pneg %p73
      %p244 = scmp.lt.s32.totalorder %s19, 1
      %s245 = scalar_select %p244, %s19, 1
      %p246 = scmp.lt.s32.totalorder %s20, 0
      %s247 = scalar_select %p246, %s20, 0
      %s248 = smul.addr %s245, 8
      %s249 = sadd.s32 %s247, %s248
      %s250 = smul.addr %s249, 8
      %s251 = scalar_lea.vmem %s2, %s250
      %p252 = pneg %p104
      %p253 = pneg %p101
      %p254 = scmp.lt.s32.totalorder %s19, 1
      %s255 = scalar_select %p254, %s19, 1
      %p256 = scmp.lt.s32.totalorder %s20, 0
      %s257 = scalar_select %p256, %s20, 0
      %s258 = smul.addr %s255, 8
      %s259 = sadd.s32 %s257, %s258
      %s260 = smul.addr %s259, 8
      %s261 = scalar_lea.vmem %s3, %s260
      %p262 = pneg %p132
      %p263 = pneg %p129
      %p264 = pneg %p160
      %p265 = pneg %p157
      %p266 = scmp.lt.s32.totalorder %s19, 1
      %s267 = scalar_select %p266, %s19, 1
      %p268 = scmp.lt.s32.totalorder %s20, 0
      %s269 = scalar_select %p268, %s20, 0
      %s270 = smul.addr %s267, 24
      %s271 = sadd.s32 %s269, %s270
      %s272 = smul.addr %s271, 4
      %s273 = scalar_lea.vmem %s4, %s272
      %p274 = scmp.lt.s32.totalorder %s19, 1
      %s275 = scalar_select %p274, %s19, 1
      %s276 = smul.addr %s275, 8
      %s277 = smul.addr %s276, 8
      %s278 = scalar_lea.vmem %s0, %s277
      %p279 = scmp.lt.s32.totalorder %s19, 1
      %s280 = scalar_select %p279, %s19, 1
      %p281 = scmp.lt.s32.totalorder %s20, 0
      %s282 = scalar_select %p281, %s20, 0
      %s283 = smul.addr %s280, 8
      %s284 = sadd.s32 %s282, %s283
      %s285 = smul.addr %s284, 8
      %s286 = scalar_lea.vmem %s1, %s285
      %p287 = scmp.lt.s32.totalorder %s19, 1
      %s288 = scalar_select %p287, %s19, 1
      %p289 = scmp.lt.s32.totalorder %s20, 0
      %s290 = scalar_select %p289, %s20, 0
      %s291 = smul.addr %s288, 8
      %s292 = sadd.s32 %s290, %s291
      %s293 = smul.addr %s292, 8
      %s294 = scalar_lea.vmem %s2, %s293
      %p295 = scmp.lt.s32.totalorder %s19, 1
      %s296 = scalar_select %p295, %s19, 1
      %p297 = scmp.lt.s32.totalorder %s20, 0
      %s298 = scalar_select %p297, %s20, 0
      %s299 = smul.addr %s296, 8
      %s300 = sadd.s32 %s298, %s299
      %s301 = smul.addr %s300, 8
      %s302 = scalar_lea.vmem %s3, %s301
      %p303 = scmp.lt.s32.totalorder %s19, 1
      %s304 = scalar_select %p303, %s19, 1
      %p305 = scmp.lt.s32.totalorder %s20, 0
      %s306 = scalar_select %p305, %s20, 0
      %s307 = smul.addr %s304, 24
      %s308 = sadd.s32 %s306, %s307
      %s309 = smul.addr %s308, 4
      %s310 = scalar_lea.vmem %s4, %s309
      %v311 = vld [vmem:[%s278] sm:$0xff]
      %v312 = vld [vmem:[%s278 + $0x8] sm:$0xff]
      %v313 = vld [vmem:[%s278 + $0x10] sm:$0xff]
      %v314 = vld [vmem:[%s278 + $0x18] sm:$0xff]
      %v315 = vld [vmem:[%s278 + $0x20] sm:$0xff]
      %v316 = vld [vmem:[%s278 + $0x28] sm:$0xff]
      %v317 = vld [vmem:[%s278 + $0x30] sm:$0xff]
      %v318 = vld [vmem:[%s278 + $0x38] sm:$0xff]
      %v319 = vld [vmem:[%s286] sm:$0xff]
      %v320 = vld [vmem:[%s286 + $0x8] sm:$0xff]
      %v321 = vld [vmem:[%s286 + $0x10] sm:$0xff]
      %v322 = vld [vmem:[%s286 + $0x18] sm:$0xff]
      %v323 = vld [vmem:[%s286 + $0x20] sm:$0xff]
      %v324 = vld [vmem:[%s286 + $0x28] sm:$0xff]
      %v325 = vld [vmem:[%s286 + $0x30] sm:$0xff]
      %v326 = vld [vmem:[%s286 + $0x38] sm:$0xff]
      %v327 = vld [vmem:[%s294] sm:$0xff]
      %v328 = vld [vmem:[%s294 + $0x8] sm:$0xff]
      %v329 = vld [vmem:[%s294 + $0x10] sm:$0xff]
      %v330 = vld [vmem:[%s294 + $0x18] sm:$0xff]
      %v331 = vld [vmem:[%s294 + $0x20] sm:$0xff]
      %v332 = vld [vmem:[%s294 + $0x28] sm:$0xff]
      %v333 = vld [vmem:[%s294 + $0x30] sm:$0xff]
      %v334 = vld [vmem:[%s294 + $0x38] sm:$0xff]
      %v335 = vld [vmem:[%s302] sm:$0xff]
      %v336 = vld [vmem:[%s302 + $0x8] sm:$0xff]
      %v337 = vld [vmem:[%s302 + $0x10] sm:$0xff]
      %v338 = vld [vmem:[%s302 + $0x18] sm:$0xff]
      %v339 = vld [vmem:[%s302 + $0x20] sm:$0xff]
      %v340 = vld [vmem:[%s302 + $0x28] sm:$0xff]
      %v341 = vld [vmem:[%s302 + $0x30] sm:$0xff]
      %v342 = vld [vmem:[%s302 + $0x38] sm:$0xff]
      %v343 = vpack.c.bf16 %v319, %v319
      %v344 = vpack.c.bf16 %v320, %v320
      %v345 = vpack.c.bf16 %v321, %v321
      %v346 = vpack.c.bf16 %v322, %v322
      %v347 = vpack.c.bf16 %v323, %v323
      %v348 = vpack.c.bf16 %v324, %v324
      %v349 = vpack.c.bf16 %v325, %v325
      %v350 = vpack.c.bf16 %v326, %v326
      %vm351 = vcmask 519168
      %352 = vst.msk [vmem:[%s310] sm:$0xf] %vm351, %v343
      %353 = vst.msk [vmem:[%s310 + $0x4] sm:$0xf] %vm351, %v344
      %354 = vst.msk [vmem:[%s310 + $0x8] sm:$0xf] %vm351, %v345
      %355 = vst.msk [vmem:[%s310 + $0xc] sm:$0xf] %vm351, %v346
      %356 = vst.msk [vmem:[%s310 + $0x10] sm:$0xf] %vm351, %v347
      %357 = vst.msk [vmem:[%s310 + $0x14] sm:$0xf] %vm351, %v348
      %358 = vst.msk [vmem:[%s310 + $0x18] sm:$0xf] %vm351, %v349
      %359 = vst.msk [vmem:[%s310 + $0x1c] sm:$0xf] %vm351, %v350
      %361 = vset.pattern.permute.xlu0 0
      %362 = vperm.xlu0 %361, %v311
      %v363 = vpop.permute.xlu0 %362
      %366 = vset.pattern.permute.xlu0 0
      %367 = vperm.xlu0 %366, %v312
      %v368 = vpop.permute.xlu0 %367
      %371 = vset.pattern.permute.xlu0 0
      %372 = vperm.xlu0 %371, %v313
      %v373 = vpop.permute.xlu0 %372
      %376 = vset.pattern.permute.xlu0 0
      %377 = vperm.xlu0 %376, %v314
      %v378 = vpop.permute.xlu0 %377
      %381 = vset.pattern.permute.xlu0 0
      %382 = vperm.xlu0 %381, %v315
      %v383 = vpop.permute.xlu0 %382
      %386 = vset.pattern.permute.xlu0 0
      %387 = vperm.xlu0 %386, %v316
      %v388 = vpop.permute.xlu0 %387
      %391 = vset.pattern.permute.xlu0 0
      %392 = vperm.xlu0 %391, %v317
      %v393 = vpop.permute.xlu0 %392
      %396 = vset.pattern.permute.xlu0 0
      %397 = vperm.xlu0 %396, %v318
      %v398 = vpop.permute.xlu0 %397
      %v400 = vmul.f32 %v363, %v327
      %v401 = vmul.f32 %v368, %v328
      %v402 = vmul.f32 %v373, %v329
      %v403 = vmul.f32 %v378, %v330
      %v404 = vmul.f32 %v383, %v331
      %v405 = vmul.f32 %v388, %v332
      %v406 = vmul.f32 %v393, %v333
      %v407 = vmul.f32 %v398, %v334
      %v408 = vpack.c.bf16 %v400, %v400
      %v409 = vpack.c.bf16 %v401, %v401
      %v410 = vpack.c.bf16 %v402, %v402
      %v411 = vpack.c.bf16 %v403, %v403
      %v412 = vpack.c.bf16 %v404, %v404
      %v413 = vpack.c.bf16 %v405, %v405
      %v414 = vpack.c.bf16 %v406, %v406
      %v415 = vpack.c.bf16 %v407, %v407
      %416 = vst.msk [vmem:[%s310 + $0x20] sm:$0xf] %vm351, %v408
      %417 = vst.msk [vmem:[%s310 + $0x24] sm:$0xf] %vm351, %v409
      %418 = vst.msk [vmem:[%s310 + $0x28] sm:$0xf] %vm351, %v410
      %419 = vst.msk [vmem:[%s310 + $0x2c] sm:$0xf] %vm351, %v411
      %420 = vst.msk [vmem:[%s310 + $0x30] sm:$0xf] %vm351, %v412
      %421 = vst.msk [vmem:[%s310 + $0x34] sm:$0xf] %vm351, %v413
      %422 = vst.msk [vmem:[%s310 + $0x38] sm:$0xf] %vm351, %v414
      %423 = vst.msk [vmem:[%s310 + $0x3c] sm:$0xf] %vm351, %v415
      %v424 = vxor.u32 %v327, 2147483648
      %v425 = vxor.u32 %v328, 2147483648
      %v426 = vxor.u32 %v329, 2147483648
      %v427 = vxor.u32 %v330, 2147483648
      %v428 = vxor.u32 %v331, 2147483648
      %v429 = vxor.u32 %v332, 2147483648
      %v430 = vxor.u32 %v333, 2147483648
      %v431 = vxor.u32 %v334, 2147483648
      %v432 = vmul.f32 %v424, 1.442695
      %v433 = vpow.pop %v432
      %v434 = vmul.f32 %v425, 1.442695
      %v435 = vpow.pop %v434
      %v436 = vmul.f32 %v426, 1.442695
      %v437 = vpow.pop %v436
      %v438 = vmul.f32 %v427, 1.442695
      %v439 = vpow.pop %v438
      %v440 = vmul.f32 %v428, 1.442695
      %v441 = vpow.pop %v440
      %v442 = vmul.f32 %v429, 1.442695
      %v443 = vpow.pop %v442
      %v444 = vmul.f32 %v430, 1.442695
      %v445 = vpow.pop %v444
      %v446 = vmul.f32 %v431, 1.442695
      %v447 = vpow.pop %v446
      %v448 = vadd.f32 %v433, 1.0
      %v449 = vadd.f32 %v435, 1.0
      %v450 = vadd.f32 %v437, 1.0
      %v451 = vadd.f32 %v439, 1.0
      %v452 = vadd.f32 %v441, 1.0
      %v453 = vadd.f32 %v443, 1.0
      %v454 = vadd.f32 %v445, 1.0
      %v455 = vadd.f32 %v447, 1.0
      %v456 = vrcp.pop %v448
      %v457 = vmul.f32 %v448, %v456
      %v458 = vsub.f32 1.0, %v457
      %v459 = vmul.f32 %v456, %v458
      %v460 = vadd.f32 %v456, %v459
      %vm461 = vweird.f32 %v448
      %vm462 = vweird.f32 %v456
      %vm463 = vmor %vm461, %vm462
      %v464 = vsel %vm463, %v456, %v460
      %v465 = vand.u32 2147483647, %v448
      %vm466 = vcmp.eq.f32.partialorder %v465, 8.507059e+37
      %v467 = vand.u32 %v448, 2147483648
      %v468 = vor.u32 1.1754944e-38, %v467
      %v469 = vsel %vm466, %v468, %v464
      %v470 = vmul.f32 1.0, %v469
      %v471 = vrcp.pop %v449
      %v472 = vmul.f32 %v449, %v471
      %v473 = vsub.f32 1.0, %v472
      %v474 = vmul.f32 %v471, %v473
      %v475 = vadd.f32 %v471, %v474
      %vm476 = vweird.f32 %v449
      %vm477 = vweird.f32 %v471
      %vm478 = vmor %vm476, %vm477
      %v479 = vsel %vm478, %v471, %v475
      %v480 = vand.u32 2147483647, %v449
      %vm481 = vcmp.eq.f32.partialorder %v480, 8.507059e+37
      %v482 = vand.u32 %v449, 2147483648
      %v483 = vor.u32 1.1754944e-38, %v482
      %v484 = vsel %vm481, %v483, %v479
      %v485 = vmul.f32 1.0, %v484
      %v486 = vrcp.pop %v450
      %v487 = vmul.f32 %v450, %v486
      %v488 = vsub.f32 1.0, %v487
      %v489 = vmul.f32 %v486, %v488
      %v490 = vadd.f32 %v486, %v489
      %vm491 = vweird.f32 %v450
      %vm492 = vweird.f32 %v486
      %vm493 = vmor %vm491, %vm492
      %v494 = vsel %vm493, %v486, %v490
      %v495 = vand.u32 2147483647, %v450
      %vm496 = vcmp.eq.f32.partialorder %v495, 8.507059e+37
      %v497 = vand.u32 %v450, 2147483648
      %v498 = vor.u32 1.1754944e-38, %v497
      %v499 = vsel %vm496, %v498, %v494
      %v500 = vmul.f32 1.0, %v499
      %v501 = vrcp.pop %v451
      %v502 = vmul.f32 %v451, %v501
      %v503 = vsub.f32 1.0, %v502
      %v504 = vmul.f32 %v501, %v503
      %v505 = vadd.f32 %v501, %v504
      %vm506 = vweird.f32 %v451
      %vm507 = vweird.f32 %v501
      %vm508 = vmor %vm506, %vm507
      %v509 = vsel %vm508, %v501, %v505
      %v510 = vand.u32 2147483647, %v451
      %vm511 = vcmp.eq.f32.partialorder %v510, 8.507059e+37
      %v512 = vand.u32 %v451, 2147483648
      %v513 = vor.u32 1.1754944e-38, %v512
      %v514 = vsel %vm511, %v513, %v509
      %v515 = vmul.f32 1.0, %v514
      %v516 = vrcp.pop %v452
      %v517 = vmul.f32 %v452, %v516
      %v518 = vsub.f32 1.0, %v517
      %v519 = vmul.f32 %v516, %v518
      %v520 = vadd.f32 %v516, %v519
      %vm521 = vweird.f32 %v452
      %vm522 = vweird.f32 %v516
      %vm523 = vmor %vm521, %vm522
      %v524 = vsel %vm523, %v516, %v520
      %v525 = vand.u32 2147483647, %v452
      %vm526 = vcmp.eq.f32.partialorder %v525, 8.507059e+37
      %v527 = vand.u32 %v452, 2147483648
      %v528 = vor.u32 1.1754944e-38, %v527
      %v529 = vsel %vm526, %v528, %v524
      %v530 = vmul.f32 1.0, %v529
      %v531 = vrcp.pop %v453
      %v532 = vmul.f32 %v453, %v531
      %v533 = vsub.f32 1.0, %v532
      %v534 = vmul.f32 %v531, %v533
      %v535 = vadd.f32 %v531, %v534
      %vm536 = vweird.f32 %v453
      %vm537 = vweird.f32 %v531
      %vm538 = vmor %vm536, %vm537
      %v539 = vsel %vm538, %v531, %v535
      %v540 = vand.u32 2147483647, %v453
      %vm541 = vcmp.eq.f32.partialorder %v540, 8.507059e+37
      %v542 = vand.u32 %v453, 2147483648
      %v543 = vor.u32 1.1754944e-38, %v542
      %v544 = vsel %vm541, %v543, %v539
      %v545 = vmul.f32 1.0, %v544
      %v546 = vrcp.pop %v454
      %v547 = vmul.f32 %v454, %v546
      %v548 = vsub.f32 1.0, %v547
      %v549 = vmul.f32 %v546, %v548
      %v550 = vadd.f32 %v546, %v549
      %vm551 = vweird.f32 %v454
      %vm552 = vweird.f32 %v546
      %vm553 = vmor %vm551, %vm552
      %v554 = vsel %vm553, %v546, %v550
      %v555 = vand.u32 2147483647, %v454
      %vm556 = vcmp.eq.f32.partialorder %v555, 8.507059e+37
      %v557 = vand.u32 %v454, 2147483648
      %v558 = vor.u32 1.1754944e-38, %v557
      %v559 = vsel %vm556, %v558, %v554
      %v560 = vmul.f32 1.0, %v559
      %v561 = vrcp.pop %v455
      %v562 = vmul.f32 %v455, %v561
      %v563 = vsub.f32 1.0, %v562
      %v564 = vmul.f32 %v561, %v563
      %v565 = vadd.f32 %v561, %v564
      %vm566 = vweird.f32 %v455
      %vm567 = vweird.f32 %v561
      %vm568 = vmor %vm566, %vm567
      %v569 = vsel %vm568, %v561, %v565
      %v570 = vand.u32 2147483647, %v455
      %vm571 = vcmp.eq.f32.partialorder %v570, 8.507059e+37
      %v572 = vand.u32 %v455, 2147483648
      %v573 = vor.u32 1.1754944e-38, %v572
      %v574 = vsel %vm571, %v573, %v569
      %v575 = vmul.f32 1.0, %v574
      %v576 = vmul.f32 %v335, %v470
      %v577 = vmul.f32 %v336, %v485
      %v578 = vmul.f32 %v337, %v500
      %v579 = vmul.f32 %v338, %v515
      %v580 = vmul.f32 %v339, %v530
      %v581 = vmul.f32 %v340, %v545
      %v582 = vmul.f32 %v341, %v560
      %v583 = vmul.f32 %v342, %v575
      %v584 = vpack.c.bf16 %v576, %v576
      %v585 = vpack.c.bf16 %v577, %v577
      %v586 = vpack.c.bf16 %v578, %v578
      %v587 = vpack.c.bf16 %v579, %v579
      %v588 = vpack.c.bf16 %v580, %v580
      %v589 = vpack.c.bf16 %v581, %v581
      %v590 = vpack.c.bf16 %v582, %v582
      %v591 = vpack.c.bf16 %v583, %v583
      %592 = vst.msk [vmem:[%s310 + $0x40] sm:$0xf] %vm351, %v584
      %593 = vst.msk [vmem:[%s310 + $0x44] sm:$0xf] %vm351, %v585
      %594 = vst.msk [vmem:[%s310 + $0x48] sm:$0xf] %vm351, %v586
      %595 = vst.msk [vmem:[%s310 + $0x4c] sm:$0xf] %vm351, %v587
      %596 = vst.msk [vmem:[%s310 + $0x50] sm:$0xf] %vm351, %v588
      %597 = vst.msk [vmem:[%s310 + $0x54] sm:$0xf] %vm351, %v589
      %598 = vst.msk [vmem:[%s310 + $0x58] sm:$0xf] %vm351, %v590
      %599 = vst.msk [vmem:[%s310 + $0x5c] sm:$0xf] %vm351, %v591
      %p600 = scmp.lt.s32.totalorder %s19, 1
      %s601 = scalar_select %p600, %s19, 1
      %p602 = scmp.lt.s32.totalorder %s20, 0
      %s603 = scalar_select %p602, %s20, 0
      %s604 = smul.addr %s601, 24
      %s605 = sadd.s32 %s603, %s604
      %s606 = smul.addr %s605, 4
      %s607 = scalar_lea.vmem %s4, %s606
      // Predicated region
      $region37: #{haim_forward.3} parent=35 // pred_check
        %p608 = pneg %p157
      $region38: #{haim_forward.3} parent=35 // pred_check_branch
        %610 = sbr.rel (%p608) target = $region40
      $region39: #{haim_forward.3} parent=35 // pred_region
        _
      $region40: #{haim_forward.3} parent=35 // pred_fallthru
        _
    $region36: #{haim_forward.3} parent=5 // pred_fallthru
      _
    %p611 = scmp.le.s32.totalorder 2, %s10
    // Predicated region
    $region41: #{haim_forward.3} parent=5 // pred_check
      %p612 = pneg %p611
    $region42: #{haim_forward.3} parent=5 // pred_check_branch
      %614 = sbr.rel (%p612) target = $region44
    $region43: #{haim_forward.3} parent=5 // pred_region
      %s615 = ssub.s32 %s10, 2
      // Predicated region
      $region45: #{haim_forward.3} parent=43 // pred_check
        %p616 = pneg %p163
      $region46: #{haim_forward.3} parent=43 // pred_check_branch
        %618 = sbr.rel (%p616) target = $region48
      $region47: #{haim_forward.3} parent=43 // pred_region
        %p619 = scmp.lt.s32.totalorder %s21, 1
        %s620 = scalar_select %p619, %s21, 1
        %p621 = scmp.lt.s32.totalorder %s22, 0
        %s622 = scalar_select %p621, %s22, 0
        %s623 = smul.addr %s620, 24
        %s624 = sadd.s32 %s622, %s623
        %s625 = smul.addr %s624, 4
        %s626 = scalar_lea.vmem %s4, %s625
      $region48: #{haim_forward.3} parent=43 // pred_fallthru
        _
    $region44: #{haim_forward.3} parent=5 // pred_fallthru
      _
  $region6: #{haim_forward.3} parent=0 // loop_footer
    %s14 = sadd.s32 1, %s10
  $region7: #{haim_forward.3} parent=0 // loop_footer_branch
    %9 = sbr.rel target = $region3
  $region8: #{haim_forward.3} parent=0 // loop_exit
    _

// kernel: haim_forward.4
$region0: #{haim_forward.4}
  #allocation0 [shape = 'u32[]', space=smem, size = 0x4, offset = 0x4, fixed_abs, tag = 'smem constant byte address 0x4 - core index']
  #allocation1 [shape = 'u32[72,128]{1,0:T(1,128)}', space=vmem, size = 0x9000, scoped, tag = 'internal scratch']
  %s0 = inlined_call_operand.vmem [shape: bf16[64,1728], index: 0, kind: input, shape index: {}]
  %s1 = inlined_call_operand.vmem [shape: bf16[2,1728,64], index: 1, kind: input, shape index: {}]
  %s2 = inlined_call_operand.vmem [shape: f32[2,64,64], index: 2, kind: output, shape index: {0}]
  %s3 = inlined_call_operand.vmem [shape: f32[2,1,64,1], index: 3, kind: output, shape index: {1}]
  %s4 = inlined_call_operand.vmem [shape: f32[2,1,64,1], index: 4, kind: output, shape index: {2}]
  %5 = xla_tuple %s2, %s3, %s4
  %s6 = sld [smem:[#allocation0]]
  $region57: #{haim_forward.4} parent=0
    _
  %s8 = ssub.s32 1, %s6
  %s9 = scalar_select 0, %s8, %s6
  loop: start=0, step=1, limit=4
  $region2: #{haim_forward.4} parent=0 // loop_pre_header
    _
  $region3: #{haim_forward.4} parent=0 // loop_header
    %s11 = sphi 0, %s15
    %p12 = scmp.ge.s32.totalorder %s11, 4
    %s18 = sphi 0, %s30
    %s19 = sphi 0, %s26
    %s20 = sphi 0, %s18
    %s21 = sphi 0, %s19
    %s22 = sphi 0, %s20
    %s23 = sphi 0, %s21
    %s31 = sphi 0, %s31
    %s33 = sphi 0, %s31
    %s34 = sphi 0, %s33
    %s48 = sphi 0, %s34
    %s56 = sphi 0, %s58
    %s59 = sphi 0, %s56
    %s60 = sphi 0, %s59
    %s76 = sphi 0, %s60
    %s84 = sphi 0, %s86
    %s87 = sphi 0, %s84
    %s88 = sphi 0, %s87
    %s104 = sphi 0, %s88
    %s112 = sphi 0, %s114
    %s115 = sphi 0, %s112
    %s116 = sphi 0, %s115
    %s132 = sphi 0, %s116
    %s140 = sphi 0, %s142
    %s143 = sphi 0, %s140
    %s144 = sphi 0, %s143
    %s160 = sphi 0, %s144
  $region4: #{haim_forward.4} parent=0 // loop_header_branch
    %14 = sbr.rel (%p12) target = $region8
  $region5: #{haim_forward.4} parent=0 // loop_body
    %s16 = ssub.s32 %s11, 1
    %s17 = ssub.s32 %s11, 2
    %s24 = sadd.s32 1, %s19
    %p25 = scmp.ge.s32.totalorder %s24, 1
    %s26 = scalar_select %p25, 0, %s24
    %s27 = sadd.s32 1, %s18
    %s28 = scalar_select %p25, %s27, %s18
    %p29 = scmp.ge.s32.totalorder %s28, 2
    %s30 = scalar_select %p29, 0, %s28
    %s32 = sadd.s32 %s31, 1
    %p35 = scmp.eq.s32.totalorder %s11, 1
    %p36 = scmp.ne.s32.totalorder %s31, %s33
    %p37 = scmp.eq.s32.totalorder %s11, 0
    %p38 = por %p36, %p37
    %p39 = scmp.ne.s32.totalorder %s31, %s33
    %p40 = scmp.eq.s32.totalorder %s16, 1
    %p41 = por %p39, %p40
    %p42 = scmp.ne.s32.totalorder %s33, %s34
    %p43 = scmp.eq.s32.totalorder %s16, 0
    %p44 = por %p42, %p43
    %p45 = scmp.ne.s32.totalorder %s33, %s34
    %p46 = scmp.eq.s32.totalorder %s17, 1
    %p47 = por %p45, %p46
    %p49 = scmp.ne.s32.totalorder %s34, %s48
    %p50 = scmp.eq.s32.totalorder %s17, 0
    %p51 = por %p49, %p50
    %s52 = ssub.s32 %s18, %s30
    %s53 = ssub.s32 %s19, %s26
    %s54 = sor.u32 %s52, %s53
    %p55 = scmp.eq.s32.totalorder %s54, 0
    %s57 = sadd.s32 %s56, 1
    %s58 = scalar_select %p55, %s56, %s57
    %p61 = pneg %p55
    %p62 = scmp.eq.s32.totalorder %s11, 1
    %p63 = por %p61, %p62
    %p64 = scmp.ne.s32.totalorder %s56, %s59
    %p65 = scmp.eq.s32.totalorder %s11, 0
    %p66 = por %p64, %p65
    %p67 = scmp.ne.s32.totalorder %s56, %s59
    %p68 = scmp.eq.s32.totalorder %s16, 1
    %p69 = por %p67, %p68
    %p70 = scmp.ne.s32.totalorder %s59, %s60
    %p71 = scmp.eq.s32.totalorder %s16, 0
    %p72 = por %p70, %p71
    %p73 = scmp.ne.s32.totalorder %s59, %s60
    %p74 = scmp.eq.s32.totalorder %s17, 1
    %p75 = por %p73, %p74
    %p77 = scmp.ne.s32.totalorder %s60, %s76
    %p78 = scmp.eq.s32.totalorder %s17, 0
    %p79 = por %p77, %p78
    %s80 = ssub.s32 %s18, %s30
    %s81 = ssub.s32 %s19, %s26
    %s82 = sor.u32 %s80, %s81
    %p83 = scmp.eq.s32.totalorder %s82, 0
    %s85 = sadd.s32 %s84, 1
    %s86 = scalar_select %p83, %s84, %s85
    %p89 = pneg %p83
    %p90 = scmp.eq.s32.totalorder %s11, 1
    %p91 = por %p89, %p90
    %p92 = scmp.ne.s32.totalorder %s84, %s87
    %p93 = scmp.eq.s32.totalorder %s11, 0
    %p94 = por %p92, %p93
    %p95 = scmp.ne.s32.totalorder %s84, %s87
    %p96 = scmp.eq.s32.totalorder %s16, 1
    %p97 = por %p95, %p96
    %p98 = scmp.ne.s32.totalorder %s87, %s88
    %p99 = scmp.eq.s32.totalorder %s16, 0
    %p100 = por %p98, %p99
    %p101 = scmp.ne.s32.totalorder %s87, %s88
    %p102 = scmp.eq.s32.totalorder %s17, 1
    %p103 = por %p101, %p102
    %p105 = scmp.ne.s32.totalorder %s88, %s104
    %p106 = scmp.eq.s32.totalorder %s17, 0
    %p107 = por %p105, %p106
    %s108 = ssub.s32 %s18, %s30
    %s109 = ssub.s32 %s19, %s26
    %s110 = sor.u32 %s108, %s109
    %p111 = scmp.eq.s32.totalorder %s110, 0
    %s113 = sadd.s32 %s112, 1
    %s114 = scalar_select %p111, %s112, %s113
    %p117 = pneg %p111
    %p118 = scmp.eq.s32.totalorder %s11, 1
    %p119 = por %p117, %p118
    %p120 = scmp.ne.s32.totalorder %s112, %s115
    %p121 = scmp.eq.s32.totalorder %s11, 0
    %p122 = por %p120, %p121
    %p123 = scmp.ne.s32.totalorder %s112, %s115
    %p124 = scmp.eq.s32.totalorder %s16, 1
    %p125 = por %p123, %p124
    %p126 = scmp.ne.s32.totalorder %s115, %s116
    %p127 = scmp.eq.s32.totalorder %s16, 0
    %p128 = por %p126, %p127
    %p129 = scmp.ne.s32.totalorder %s115, %s116
    %p130 = scmp.eq.s32.totalorder %s17, 1
    %p131 = por %p129, %p130
    %p133 = scmp.ne.s32.totalorder %s116, %s132
    %p134 = scmp.eq.s32.totalorder %s17, 0
    %p135 = por %p133, %p134
    %s136 = ssub.s32 %s18, %s30
    %s137 = ssub.s32 %s19, %s26
    %s138 = sor.u32 %s136, %s137
    %p139 = scmp.eq.s32.totalorder %s138, 0
    %s141 = sadd.s32 %s140, 1
    %s142 = scalar_select %p139, %s140, %s141
    %p145 = pneg %p139
    %p146 = scmp.eq.s32.totalorder %s11, 1
    %p147 = por %p145, %p146
    %p148 = scmp.ne.s32.totalorder %s140, %s143
    %p149 = scmp.eq.s32.totalorder %s11, 0
    %p150 = por %p148, %p149
    %p151 = scmp.ne.s32.totalorder %s140, %s143
    %p152 = scmp.eq.s32.totalorder %s16, 1
    %p153 = por %p151, %p152
    %p154 = scmp.ne.s32.totalorder %s143, %s144
    %p155 = scmp.eq.s32.totalorder %s16, 0
    %p156 = por %p154, %p155
    %p157 = scmp.ne.s32.totalorder %s143, %s144
    %p158 = scmp.eq.s32.totalorder %s17, 1
    %p159 = por %p157, %p158
    %p161 = scmp.ne.s32.totalorder %s144, %s160
    %p162 = scmp.eq.s32.totalorder %s17, 0
    %p163 = por %p161, %p162
    %p164 = scmp.le.s32.totalorder 1, %s11
    %p165 = scmp.lt.s32.totalorder %s11, 3
    %p166 = pnand %p164, %p165
    %p167 = pneg %p166
    // Predicated region
    $region9: #{haim_forward.4} parent=5 // pred_check
      _
    $region10: #{haim_forward.4} parent=5 // pred_check_branch
      %169 = sbr.rel (%p166) target = $region12
    $region11: #{haim_forward.4} parent=5 // pred_region
      %s170 = ssub.s32 %s11, 1
      // Predicated region
      $region13: #{haim_forward.4} parent=11 // pred_check
        %p171 = pneg %p44
      $region14: #{haim_forward.4} parent=11 // pred_check_branch
        %173 = sbr.rel (%p171) target = $region16
      $region15: #{haim_forward.4} parent=11 // pred_region
        _
      $region16: #{haim_forward.4} parent=11 // pred_fallthru
        _
    $region12: #{haim_forward.4} parent=5 // pred_fallthru
      _
    %p174 = scmp.lt.s32.totalorder %s11, 2
    // Predicated region
    $region17: #{haim_forward.4} parent=5 // pred_check
      %p175 = pneg %p174
    $region18: #{haim_forward.4} parent=5 // pred_check_branch
      %177 = sbr.rel (%p175) target = $region20
    $region19: #{haim_forward.4} parent=5 // pred_region
      // Predicated region
      $region21: #{haim_forward.4} parent=19 // pred_check
        %p178 = pneg %p66
      $region22: #{haim_forward.4} parent=19 // pred_check_branch
        %180 = sbr.rel (%p178) target = $region24
      $region23: #{haim_forward.4} parent=19 // pred_region
        %p181 = scmp.lt.s32.totalorder %s18, 1
        %s182 = scalar_select %p181, %s18, 1
        %p183 = scmp.lt.s32.totalorder %s19, 0
        %s184 = scalar_select %p183, %s19, 0
        %s185 = smul.addr %s182, 216
        %s186 = sadd.s32 %s184, %s185
        %s187 = smul.addr %s186, 4
        %s188 = scalar_lea.vmem %s1, %s187
      $region24: #{haim_forward.4} parent=19 // pred_fallthru
        _
    $region20: #{haim_forward.4} parent=5 // pred_fallthru
      _
    %p189 = scmp.le.s32.totalorder 1, %s11
    %p190 = scmp.lt.s32.totalorder %s11, 3
    %p191 = pnand %p189, %p190
    %p192 = pneg %p191
    // Predicated region
    $region25: #{haim_forward.4} parent=5 // pred_check
      _
    $region26: #{haim_forward.4} parent=5 // pred_check_branch
      %194 = sbr.rel (%p191) target = $region28
    $region27: #{haim_forward.4} parent=5 // pred_region
      %s195 = ssub.s32 %s11, 1
      %p196 = pneg %p44
      %p197 = pneg %p41
      %p198 = scmp.lt.s32.totalorder %s20, 1
      %s199 = scalar_select %p198, %s20, 1
      %p200 = scmp.lt.s32.totalorder %s21, 0
      %s201 = scalar_select %p200, %s21, 0
      %s202 = smul.addr %s199, 216
      %s203 = sadd.s32 %s201, %s202
      %s204 = smul.addr %s203, 4
      %s205 = scalar_lea.vmem %s1, %s204
      %p206 = pneg %p72
      %p207 = pneg %p69
      %p208 = pneg %p100
      %p209 = pneg %p97
      %p210 = scmp.lt.s32.totalorder %s20, 1
      %s211 = scalar_select %p210, %s20, 1
      %p212 = scmp.lt.s32.totalorder %s21, 0
      %s213 = scalar_select %p212, %s21, 0
      %s214 = smul.addr %s211, 8
      %s215 = sadd.s32 %s213, %s214
      %s216 = smul.addr %s215, 8
      %s217 = scalar_lea.vmem %s2, %s216
      %p218 = pneg %p128
      %p219 = pneg %p125
      %p220 = scmp.lt.s32.totalorder %s20, 1
      %s221 = scalar_select %p220, %s20, 1
      %p222 = scmp.lt.s32.totalorder %s21, 0
      %s223 = scalar_select %p222, %s21, 0
      %s224 = smul.addr %s223, 8
      %s225 = smul.addr %s221, 8
      %s226 = sadd.s32 %s224, %s225
      %s227 = smul.addr %s226, 8
      %s228 = scalar_lea.vmem %s3, %s227
      %p229 = pneg %p156
      %p230 = pneg %p153
      %p231 = scmp.lt.s32.totalorder %s20, 1
      %s232 = scalar_select %p231, %s20, 1
      %p233 = scmp.lt.s32.totalorder %s21, 0
      %s234 = scalar_select %p233, %s21, 0
      %s235 = smul.addr %s234, 8
      %s236 = smul.addr %s232, 8
      %s237 = sadd.s32 %s235, %s236
      %s238 = smul.addr %s237, 8
      %s239 = scalar_lea.vmem %s4, %s238
      %p240 = scmp.lt.s32.totalorder %s20, 1
      %s241 = scalar_select %p240, %s20, 1
      %p242 = scmp.lt.s32.totalorder %s21, 0
      %s243 = scalar_select %p242, %s21, 0
      %s244 = smul.addr %s241, 216
      %s245 = sadd.s32 %s243, %s244
      %s246 = smul.addr %s245, 4
      %s247 = scalar_lea.vmem %s1, %s246
      %p248 = scmp.lt.s32.totalorder %s20, 1
      %s249 = scalar_select %p248, %s20, 1
      %p250 = scmp.lt.s32.totalorder %s21, 0
      %s251 = scalar_select %p250, %s21, 0
      %s252 = smul.addr %s249, 8
      %s253 = sadd.s32 %s251, %s252
      %s254 = smul.addr %s253, 8
      %s255 = scalar_lea.vmem %s2, %s254
      %p256 = scmp.lt.s32.totalorder %s20, 1
      %s257 = scalar_select %p256, %s20, 1
      %p258 = scmp.lt.s32.totalorder %s21, 0
      %s259 = scalar_select %p258, %s21, 0
      %s260 = smul.addr %s259, 8
      %s261 = smul.addr %s257, 8
      %s262 = sadd.s32 %s260, %s261
      %s263 = smul.addr %s262, 8
      %s264 = scalar_lea.vmem %s3, %s263
      %p265 = scmp.lt.s32.totalorder %s20, 1
      %s266 = scalar_select %p265, %s20, 1
      %p267 = scmp.lt.s32.totalorder %s21, 0
      %s268 = scalar_select %p267, %s21, 0
      %s269 = smul.addr %s268, 8
      %s270 = smul.addr %s266, 8
      %s271 = sadd.s32 %s269, %s270
      %s272 = smul.addr %s271, 8
      %s273 = scalar_lea.vmem %s4, %s272
      %v275 = vld [vmem:[%s0] sm:$0xff]
      %v276 = vld [vmem:[%s0 + $0x8] sm:$0xff]
      %v277 = vld [vmem:[%s0 + $0x10] sm:$0xff]
      %v278 = vld [vmem:[%s0 + $0x18] sm:$0xff]
      %v279 = vld [vmem:[%s0 + $0x20] sm:$0xff]
      %v280 = vld [vmem:[%s0 + $0x28] sm:$0xff]
      %v281 = vld [vmem:[%s0 + $0x30] sm:$0xff]
      %v282 = vld [vmem:[%s0 + $0x38] sm:$0xff]
      %v283 = vld [vmem:[%s0 + $0x40] sm:$0xff]
      %v284 = vld [vmem:[%s0 + $0x48] sm:$0xff]
      %v285 = vld [vmem:[%s0 + $0x50] sm:$0xff]
      %v286 = vld [vmem:[%s0 + $0x58] sm:$0xff]
      %v287 = vld [vmem:[%s0 + $0x60] sm:$0xff]
      %v288 = vld [vmem:[%s0 + $0x68] sm:$0xff]
      %v289 = vld [vmem:[%s0 + $0x70] sm:$0xff]
      %v290 = vld [vmem:[%s0 + $0x78] sm:$0xff]
      %v291 = vld [vmem:[%s0 + $0x80] sm:$0xff]
      %v292 = vld [vmem:[%s0 + $0x88] sm:$0xff]
      %v293 = vld [vmem:[%s0 + $0x90] sm:$0xff]
      %v294 = vld [vmem:[%s0 + $0x98] sm:$0xff]
      %v295 = vld [vmem:[%s0 + $0xa0] sm:$0xff]
      %v296 = vld [vmem:[%s0 + $0xa8] sm:$0xff]
      %v297 = vld [vmem:[%s0 + $0xb0] sm:$0xff]
      %v298 = vld [vmem:[%s0 + $0xb8] sm:$0xff]
      %v299 = vld [vmem:[%s0 + $0xc0] sm:$0xff]
      %v300 = vld [vmem:[%s0 + $0xc8] sm:$0xff]
      %v301 = vld [vmem:[%s0 + $0xd0] sm:$0xff]
      %v302 = vld [vmem:[%s0 + $0xd8] sm:$0xff]
      %v303 = vld [vmem:[%s0 + $0xe0] sm:$0xff]
      %v304 = vld [vmem:[%s0 + $0xe8] sm:$0xff]
      %v305 = vld [vmem:[%s0 + $0xf0] sm:$0xff]
      %v306 = vld [vmem:[%s0 + $0xf8] sm:$0xff]
      %v307 = vld [vmem:[%s0 + $0x100] sm:$0xff]
      %v308 = vld [vmem:[%s0 + $0x108] sm:$0xff]
      %v309 = vld [vmem:[%s0 + $0x110] sm:$0xff]
      %v310 = vld [vmem:[%s0 + $0x118] sm:$0xff]
      %v311 = vld [vmem:[%s0 + $0x120] sm:$0xff]
      %v312 = vld [vmem:[%s0 + $0x128] sm:$0xff]
      %v313 = vld [vmem:[%s0 + $0x130] sm:$0xff]
      %v314 = vld [vmem:[%s0 + $0x138] sm:$0xff]
      %v315 = vld [vmem:[%s0 + $0x140] sm:$0xff]
      %v316 = vld [vmem:[%s0 + $0x148] sm:$0xff]
      %v317 = vld [vmem:[%s0 + $0x150] sm:$0xff]
      %v318 = vld [vmem:[%s0 + $0x158] sm:$0xff]
      %v319 = vld [vmem:[%s0 + $0x160] sm:$0xff]
      %v320 = vld [vmem:[%s0 + $0x168] sm:$0xff]
      %v321 = vld [vmem:[%s0 + $0x170] sm:$0xff]
      %v322 = vld [vmem:[%s0 + $0x178] sm:$0xff]
      %v323 = vld [vmem:[%s0 + $0x180] sm:$0xff]
      %v324 = vld [vmem:[%s0 + $0x188] sm:$0xff]
      %v325 = vld [vmem:[%s0 + $0x190] sm:$0xff]
      %v326 = vld [vmem:[%s0 + $0x198] sm:$0xff]
      %v327 = vld [vmem:[%s0 + $0x1a0] sm:$0xff]
      %v328 = vld [vmem:[%s0 + $0x1a8] sm:$0xff]
      %v329 = vld [vmem:[%s0 + $0x1b0] sm:$0xff]
      %v330 = vld [vmem:[%s0 + $0x1b8] sm:$0xff]
      %v331 = vld [vmem:[%s247] sm:$0xf]
      %v332 = vld [vmem:[%s247 + $0x4] sm:$0xf]
      %v333 = vld [vmem:[%s247 + $0x8] sm:$0xf]
      %v334 = vld [vmem:[%s247 + $0xc] sm:$0xf]
      %v335 = vld [vmem:[%s247 + $0x10] sm:$0xf]
      %v336 = vld [vmem:[%s247 + $0x14] sm:$0xf]
      %v337 = vld [vmem:[%s247 + $0x18] sm:$0xf]
      %v338 = vld [vmem:[%s247 + $0x1c] sm:$0xf]
      %v339 = vld [vmem:[%s247 + $0x20] sm:$0xf]
      %v340 = vld [vmem:[%s247 + $0x24] sm:$0xf]
      %v341 = vld [vmem:[%s247 + $0x28] sm:$0xf]
      %v342 = vld [vmem:[%s247 + $0x2c] sm:$0xf]
      %v343 = vld [vmem:[%s247 + $0x30] sm:$0xf]
      %v344 = vld [vmem:[%s247 + $0x34] sm:$0xf]
      %v345 = vld [vmem:[%s247 + $0x38] sm:$0xf]
      %v346 = vld [vmem:[%s247 + $0x3c] sm:$0xf]
      %v347 = vld [vmem:[%s247 + $0x40] sm:$0xf]
      %v348 = vld [vmem:[%s247 + $0x44] sm:$0xf]
      %v349 = vld [vmem:[%s247 + $0x48] sm:$0xf]
      %v350 = vld [vmem:[%s247 + $0x4c] sm:$0xf]
      %v351 = vld [vmem:[%s247 + $0x50] sm:$0xf]
      %v352 = vld [vmem:[%s247 + $0x54] sm:$0xf]
      %v353 = vld [vmem:[%s247 + $0x58] sm:$0xf]
      %v354 = vld [vmem:[%s247 + $0x5c] sm:$0xf]
      %v355 = vld [vmem:[%s247 + $0x60] sm:$0xf]
      %v356 = vld [vmem:[%s247 + $0x64] sm:$0xf]
      %v357 = vld [vmem:[%s247 + $0x68] sm:$0xf]
      %v358 = vld [vmem:[%s247 + $0x6c] sm:$0xf]
      %v359 = vld [vmem:[%s247 + $0x70] sm:$0xf]
      %v360 = vld [vmem:[%s247 + $0x74] sm:$0xf]
      %v361 = vld [vmem:[%s247 + $0x78] sm:$0xf]
      %v362 = vld [vmem:[%s247 + $0x7c] sm:$0xf]
      %v363 = vld [vmem:[%s247 + $0x80] sm:$0xf]
      %v364 = vld [vmem:[%s247 + $0x84] sm:$0xf]
      %v365 = vld [vmem:[%s247 + $0x88] sm:$0xf]
      %v366 = vld [vmem:[%s247 + $0x8c] sm:$0xf]
      %v367 = vld [vmem:[%s247 + $0x90] sm:$0xf]
      %v368 = vld [vmem:[%s247 + $0x94] sm:$0xf]
      %v369 = vld [vmem:[%s247 + $0x98] sm:$0xf]
      %v370 = vld [vmem:[%s247 + $0x9c] sm:$0xf]
      %v371 = vld [vmem:[%s247 + $0xa0] sm:$0xf]
      %v372 = vld [vmem:[%s247 + $0xa4] sm:$0xf]
      %v373 = vld [vmem:[%s247 + $0xa8] sm:$0xf]
      %v374 = vld [vmem:[%s247 + $0xac] sm:$0xf]
      %v375 = vld [vmem:[%s247 + $0xb0] sm:$0xf]
      %v376 = vld [vmem:[%s247 + $0xb4] sm:$0xf]
      %v377 = vld [vmem:[%s247 + $0xb8] sm:$0xf]
      %v378 = vld [vmem:[%s247 + $0xbc] sm:$0xf]
      %v379 = vld [vmem:[%s247 + $0xc0] sm:$0xf]
      %v380 = vld [vmem:[%s247 + $0xc4] sm:$0xf]
      %v381 = vld [vmem:[%s247 + $0xc8] sm:$0xf]
      %v382 = vld [vmem:[%s247 + $0xcc] sm:$0xf]
      %v383 = vld [vmem:[%s247 + $0xd0] sm:$0xf]
      %v384 = vld [vmem:[%s247 + $0xd4] sm:$0xf]
      %v385 = vld [vmem:[%s247 + $0xd8] sm:$0xf]
      %v386 = vld [vmem:[%s247 + $0xdc] sm:$0xf]
      %v387 = vld [vmem:[%s247 + $0xe0] sm:$0xf]
      %v388 = vld [vmem:[%s247 + $0xe4] sm:$0xf]
      %v389 = vld [vmem:[%s247 + $0xe8] sm:$0xf]
      %v390 = vld [vmem:[%s247 + $0xec] sm:$0xf]
      %v391 = vld [vmem:[%s247 + $0xf0] sm:$0xf]
      %v392 = vld [vmem:[%s247 + $0xf4] sm:$0xf]
      %v393 = vld [vmem:[%s247 + $0xf8] sm:$0xf]
      %v394 = vld [vmem:[%s247 + $0xfc] sm:$0xf]
      %v395 = vld [vmem:[%s247 + $0x100] sm:$0xf]
      %v396 = vld [vmem:[%s247 + $0x104] sm:$0xf]
      %v397 = vld [vmem:[%s247 + $0x108] sm:$0xf]
      %v398 = vld [vmem:[%s247 + $0x10c] sm:$0xf]
      %v399 = vld [vmem:[%s247 + $0x110] sm:$0xf]
      %v400 = vld [vmem:[%s247 + $0x114] sm:$0xf]
      %v401 = vld [vmem:[%s247 + $0x118] sm:$0xf]
      %v402 = vld [vmem:[%s247 + $0x11c] sm:$0xf]
      %v403 = vld [vmem:[%s247 + $0x120] sm:$0xf]
      %v404 = vld [vmem:[%s247 + $0x124] sm:$0xf]
      %v405 = vld [vmem:[%s247 + $0x128] sm:$0xf]
      %v406 = vld [vmem:[%s247 + $0x12c] sm:$0xf]
      %v407 = vld [vmem:[%s247 + $0x130] sm:$0xf]
      %v408 = vld [vmem:[%s247 + $0x134] sm:$0xf]
      %v409 = vld [vmem:[%s247 + $0x138] sm:$0xf]
      %v410 = vld [vmem:[%s247 + $0x13c] sm:$0xf]
      %v411 = vld [vmem:[%s247 + $0x140] sm:$0xf]
      %v412 = vld [vmem:[%s247 + $0x144] sm:$0xf]
      %v413 = vld [vmem:[%s247 + $0x148] sm:$0xf]
      %v414 = vld [vmem:[%s247 + $0x14c] sm:$0xf]
      %v415 = vld [vmem:[%s247 + $0x150] sm:$0xf]
      %v416 = vld [vmem:[%s247 + $0x154] sm:$0xf]
      %v417 = vld [vmem:[%s247 + $0x158] sm:$0xf]
      %v418 = vld [vmem:[%s247 + $0x15c] sm:$0xf]
      %v419 = vld [vmem:[%s247 + $0x160] sm:$0xf]
      %v420 = vld [vmem:[%s247 + $0x164] sm:$0xf]
      %v421 = vld [vmem:[%s247 + $0x168] sm:$0xf]
      %v422 = vld [vmem:[%s247 + $0x16c] sm:$0xf]
      %v423 = vld [vmem:[%s247 + $0x170] sm:$0xf]
      %v424 = vld [vmem:[%s247 + $0x174] sm:$0xf]
      %v425 = vld [vmem:[%s247 + $0x178] sm:$0xf]
      %v426 = vld [vmem:[%s247 + $0x17c] sm:$0xf]
      %v427 = vld [vmem:[%s247 + $0x180] sm:$0xf]
      %v428 = vld [vmem:[%s247 + $0x184] sm:$0xf]
      %v429 = vld [vmem:[%s247 + $0x188] sm:$0xf]
      %v430 = vld [vmem:[%s247 + $0x18c] sm:$0xf]
      %v431 = vld [vmem:[%s247 + $0x190] sm:$0xf]
      %v432 = vld [vmem:[%s247 + $0x194] sm:$0xf]
      %v433 = vld [vmem:[%s247 + $0x198] sm:$0xf]
      %v434 = vld [vmem:[%s247 + $0x19c] sm:$0xf]
      %v435 = vld [vmem:[%s247 + $0x1a0] sm:$0xf]
      %v436 = vld [vmem:[%s247 + $0x1a4] sm:$0xf]
      %v437 = vld [vmem:[%s247 + $0x1a8] sm:$0xf]
      %v438 = vld [vmem:[%s247 + $0x1ac] sm:$0xf]
      %v439 = vld [vmem:[%s247 + $0x1b0] sm:$0xf]
      %v440 = vld [vmem:[%s247 + $0x1b4] sm:$0xf]
      %v441 = vld [vmem:[%s247 + $0x1b8] sm:$0xf]
      %v442 = vld [vmem:[%s247 + $0x1bc] sm:$0xf]
      %v443 = vld [vmem:[%s247 + $0x1c0] sm:$0xf]
      %v444 = vld [vmem:[%s247 + $0x1c4] sm:$0xf]
      %v445 = vld [vmem:[%s247 + $0x1c8] sm:$0xf]
      %v446 = vld [vmem:[%s247 + $0x1cc] sm:$0xf]
      %v447 = vld [vmem:[%s247 + $0x1d0] sm:$0xf]
      %v448 = vld [vmem:[%s247 + $0x1d4] sm:$0xf]
      %v449 = vld [vmem:[%s247 + $0x1d8] sm:$0xf]
      %v450 = vld [vmem:[%s247 + $0x1dc] sm:$0xf]
      %v451 = vld [vmem:[%s247 + $0x1e0] sm:$0xf]
      %v452 = vld [vmem:[%s247 + $0x1e4] sm:$0xf]
      %v453 = vld [vmem:[%s247 + $0x1e8] sm:$0xf]
      %v454 = vld [vmem:[%s247 + $0x1ec] sm:$0xf]
      %v455 = vld [vmem:[%s247 + $0x1f0] sm:$0xf]
      %v456 = vld [vmem:[%s247 + $0x1f4] sm:$0xf]
      %v457 = vld [vmem:[%s247 + $0x1f8] sm:$0xf]
      %v458 = vld [vmem:[%s247 + $0x1fc] sm:$0xf]
      %v459 = vld [vmem:[%s247 + $0x200] sm:$0xf]
      %v460 = vld [vmem:[%s247 + $0x204] sm:$0xf]
      %v461 = vld [vmem:[%s247 + $0x208] sm:$0xf]
      %v462 = vld [vmem:[%s247 + $0x20c] sm:$0xf]
      %v463 = vld [vmem:[%s247 + $0x210] sm:$0xf]
      %v464 = vld [vmem:[%s247 + $0x214] sm:$0xf]
      %v465 = vld [vmem:[%s247 + $0x218] sm:$0xf]
      %v466 = vld [vmem:[%s247 + $0x21c] sm:$0xf]
      %v467 = vld [vmem:[%s247 + $0x220] sm:$0xf]
      %v468 = vld [vmem:[%s247 + $0x224] sm:$0xf]
      %v469 = vld [vmem:[%s247 + $0x228] sm:$0xf]
      %v470 = vld [vmem:[%s247 + $0x22c] sm:$0xf]
      %v471 = vld [vmem:[%s247 + $0x230] sm:$0xf]
      %v472 = vld [vmem:[%s247 + $0x234] sm:$0xf]
      %v473 = vld [vmem:[%s247 + $0x238] sm:$0xf]
      %v474 = vld [vmem:[%s247 + $0x23c] sm:$0xf]
      %v475 = vld [vmem:[%s247 + $0x240] sm:$0xf]
      %v476 = vld [vmem:[%s247 + $0x244] sm:$0xf]
      %v477 = vld [vmem:[%s247 + $0x248] sm:$0xf]
      %v478 = vld [vmem:[%s247 + $0x24c] sm:$0xf]
      %v479 = vld [vmem:[%s247 + $0x250] sm:$0xf]
      %v480 = vld [vmem:[%s247 + $0x254] sm:$0xf]
      %v481 = vld [vmem:[%s247 + $0x258] sm:$0xf]
      %v482 = vld [vmem:[%s247 + $0x25c] sm:$0xf]
      %v483 = vld [vmem:[%s247 + $0x260] sm:$0xf]
      %v484 = vld [vmem:[%s247 + $0x264] sm:$0xf]
      %v485 = vld [vmem:[%s247 + $0x268] sm:$0xf]
      %v486 = vld [vmem:[%s247 + $0x26c] sm:$0xf]
      %v487 = vld [vmem:[%s247 + $0x270] sm:$0xf]
      %v488 = vld [vmem:[%s247 + $0x274] sm:$0xf]
      %v489 = vld [vmem:[%s247 + $0x278] sm:$0xf]
      %v490 = vld [vmem:[%s247 + $0x27c] sm:$0xf]
      %v491 = vld [vmem:[%s247 + $0x280] sm:$0xf]
      %v492 = vld [vmem:[%s247 + $0x284] sm:$0xf]
      %v493 = vld [vmem:[%s247 + $0x288] sm:$0xf]
      %v494 = vld [vmem:[%s247 + $0x28c] sm:$0xf]
      %v495 = vld [vmem:[%s247 + $0x290] sm:$0xf]
      %v496 = vld [vmem:[%s247 + $0x294] sm:$0xf]
      %v497 = vld [vmem:[%s247 + $0x298] sm:$0xf]
      %v498 = vld [vmem:[%s247 + $0x29c] sm:$0xf]
      %v499 = vld [vmem:[%s247 + $0x2a0] sm:$0xf]
      %v500 = vld [vmem:[%s247 + $0x2a4] sm:$0xf]
      %v501 = vld [vmem:[%s247 + $0x2a8] sm:$0xf]
      %v502 = vld [vmem:[%s247 + $0x2ac] sm:$0xf]
      %v503 = vld [vmem:[%s247 + $0x2b0] sm:$0xf]
      %v504 = vld [vmem:[%s247 + $0x2b4] sm:$0xf]
      %v505 = vld [vmem:[%s247 + $0x2b8] sm:$0xf]
      %v506 = vld [vmem:[%s247 + $0x2bc] sm:$0xf]
      %v507 = vld [vmem:[%s247 + $0x2c0] sm:$0xf]
      %v508 = vld [vmem:[%s247 + $0x2c4] sm:$0xf]
      %v509 = vld [vmem:[%s247 + $0x2c8] sm:$0xf]
      %v510 = vld [vmem:[%s247 + $0x2cc] sm:$0xf]
      %v511 = vld [vmem:[%s247 + $0x2d0] sm:$0xf]
      %v512 = vld [vmem:[%s247 + $0x2d4] sm:$0xf]
      %v513 = vld [vmem:[%s247 + $0x2d8] sm:$0xf]
      %v514 = vld [vmem:[%s247 + $0x2dc] sm:$0xf]
      %v515 = vld [vmem:[%s247 + $0x2e0] sm:$0xf]
      %v516 = vld [vmem:[%s247 + $0x2e4] sm:$0xf]
      %v517 = vld [vmem:[%s247 + $0x2e8] sm:$0xf]
      %v518 = vld [vmem:[%s247 + $0x2ec] sm:$0xf]
      %v519 = vld [vmem:[%s247 + $0x2f0] sm:$0xf]
      %v520 = vld [vmem:[%s247 + $0x2f4] sm:$0xf]
      %v521 = vld [vmem:[%s247 + $0x2f8] sm:$0xf]
      %v522 = vld [vmem:[%s247 + $0x2fc] sm:$0xf]
      %v523 = vld [vmem:[%s247 + $0x300] sm:$0xf]
      %v524 = vld [vmem:[%s247 + $0x304] sm:$0xf]
      %v525 = vld [vmem:[%s247 + $0x308] sm:$0xf]
      %v526 = vld [vmem:[%s247 + $0x30c] sm:$0xf]
      %v527 = vld [vmem:[%s247 + $0x310] sm:$0xf]
      %v528 = vld [vmem:[%s247 + $0x314] sm:$0xf]
      %v529 = vld [vmem:[%s247 + $0x318] sm:$0xf]
      %v530 = vld [vmem:[%s247 + $0x31c] sm:$0xf]
      %v531 = vld [vmem:[%s247 + $0x320] sm:$0xf]
      %v532 = vld [vmem:[%s247 + $0x324] sm:$0xf]
      %v533 = vld [vmem:[%s247 + $0x328] sm:$0xf]
      %v534 = vld [vmem:[%s247 + $0x32c] sm:$0xf]
      %v535 = vld [vmem:[%s247 + $0x330] sm:$0xf]
      %v536 = vld [vmem:[%s247 + $0x334] sm:$0xf]
      %v537 = vld [vmem:[%s247 + $0x338] sm:$0xf]
      %v538 = vld [vmem:[%s247 + $0x33c] sm:$0xf]
      %v539 = vld [vmem:[%s247 + $0x340] sm:$0xf]
      %v540 = vld [vmem:[%s247 + $0x344] sm:$0xf]
      %v541 = vld [vmem:[%s247 + $0x348] sm:$0xf]
      %v542 = vld [vmem:[%s247 + $0x34c] sm:$0xf]
      %v543 = vld [vmem:[%s247 + $0x350] sm:$0xf]
      %v544 = vld [vmem:[%s247 + $0x354] sm:$0xf]
      %v545 = vld [vmem:[%s247 + $0x358] sm:$0xf]
      %v546 = vld [vmem:[%s247 + $0x35c] sm:$0xf]
      %v603 = vunpack.c.l.b16 %v275
      %v604 = vunpack.c.h.b16 %v275
      %v605 = vunpack.c.l.b16 %v276
      %v606 = vunpack.c.h.b16 %v276
      %v607 = vunpack.c.l.b16 %v277
      %v608 = vunpack.c.h.b16 %v277
      %v609 = vunpack.c.l.b16 %v278
      %v610 = vunpack.c.h.b16 %v278
      %v611 = vunpack.c.l.b16 %v279
      %v612 = vunpack.c.h.b16 %v279
      %v613 = vunpack.c.l.b16 %v280
      %v614 = vunpack.c.h.b16 %v280
      %v615 = vunpack.c.l.b16 %v281
      %v616 = vunpack.c.h.b16 %v281
      %v617 = vunpack.c.l.b16 %v282
      %v618 = vunpack.c.h.b16 %v282
      %v619 = vunpack.c.l.b16 %v283
      %v620 = vunpack.c.h.b16 %v283
      %v621 = vunpack.c.l.b16 %v284
      %v622 = vunpack.c.h.b16 %v284
      %v623 = vunpack.c.l.b16 %v285
      %v624 = vunpack.c.h.b16 %v285
      %v625 = vunpack.c.l.b16 %v286
      %v626 = vunpack.c.h.b16 %v286
      %v627 = vunpack.c.l.b16 %v287
      %v628 = vunpack.c.h.b16 %v287
      %v629 = vunpack.c.l.b16 %v288
      %v630 = vunpack.c.h.b16 %v288
      %v631 = vunpack.c.l.b16 %v289
      %v632 = vunpack.c.h.b16 %v289
      %v633 = vunpack.c.l.b16 %v290
      %v634 = vunpack.c.h.b16 %v290
      %v635 = vunpack.c.l.b16 %v291
      %v636 = vunpack.c.h.b16 %v291
      %v637 = vunpack.c.l.b16 %v292
      %v638 = vunpack.c.h.b16 %v292
      %v639 = vunpack.c.l.b16 %v293
      %v640 = vunpack.c.h.b16 %v293
      %v641 = vunpack.c.l.b16 %v294
      %v642 = vunpack.c.h.b16 %v294
      %v643 = vunpack.c.l.b16 %v295
      %v644 = vunpack.c.h.b16 %v295
      %v645 = vunpack.c.l.b16 %v296
      %v646 = vunpack.c.h.b16 %v296
      %v647 = vunpack.c.l.b16 %v297
      %v648 = vunpack.c.h.b16 %v297
      %v649 = vunpack.c.l.b16 %v298
      %v650 = vunpack.c.h.b16 %v298
      %v651 = vunpack.c.l.b16 %v299
      %v652 = vunpack.c.h.b16 %v299
      %v653 = vunpack.c.l.b16 %v300
      %v654 = vunpack.c.h.b16 %v300
      %v655 = vunpack.c.l.b16 %v301
      %v656 = vunpack.c.h.b16 %v301
      %v657 = vunpack.c.l.b16 %v302
      %v658 = vunpack.c.h.b16 %v302
      %v659 = vunpack.c.l.b16 %v303
      %v660 = vunpack.c.h.b16 %v303
      %v661 = vunpack.c.l.b16 %v304
      %v662 = vunpack.c.h.b16 %v304
      %v663 = vunpack.c.l.b16 %v305
      %v664 = vunpack.c.h.b16 %v305
      %v665 = vunpack.c.l.b16 %v306
      %v666 = vunpack.c.h.b16 %v306
      %v667 = vunpack.c.l.b16 %v307
      %v668 = vunpack.c.h.b16 %v307
      %v669 = vunpack.c.l.b16 %v308
      %v670 = vunpack.c.h.b16 %v308
      %v671 = vunpack.c.l.b16 %v309
      %v672 = vunpack.c.h.b16 %v309
      %v673 = vunpack.c.l.b16 %v310
      %v674 = vunpack.c.h.b16 %v310
      %v675 = vunpack.c.l.b16 %v311
      %v676 = vunpack.c.h.b16 %v311
      %v677 = vunpack.c.l.b16 %v312
      %v678 = vunpack.c.h.b16 %v312
      %v679 = vunpack.c.l.b16 %v313
      %v680 = vunpack.c.h.b16 %v313
      %v681 = vunpack.c.l.b16 %v314
      %v682 = vunpack.c.h.b16 %v314
      %v683 = vunpack.c.l.b16 %v315
      %v684 = vunpack.c.h.b16 %v315
      %v685 = vunpack.c.l.b16 %v316
      %v686 = vunpack.c.h.b16 %v316
      %v687 = vunpack.c.l.b16 %v317
      %v688 = vunpack.c.h.b16 %v317
      %v689 = vunpack.c.l.b16 %v318
      %v690 = vunpack.c.h.b16 %v318
      %v691 = vunpack.c.l.b16 %v319
      %v692 = vunpack.c.h.b16 %v319
      %v693 = vunpack.c.l.b16 %v320
      %v694 = vunpack.c.h.b16 %v320
      %v695 = vunpack.c.l.b16 %v321
      %v696 = vunpack.c.h.b16 %v321
      %v697 = vunpack.c.l.b16 %v322
      %v698 = vunpack.c.h.b16 %v322
      %v699 = vunpack.c.l.b16 %v323
      %v700 = vunpack.c.h.b16 %v323
      %v701 = vunpack.c.l.b16 %v324
      %v702 = vunpack.c.h.b16 %v324
      %v703 = vunpack.c.l.b16 %v325
      %v704 = vunpack.c.h.b16 %v325
      %v705 = vunpack.c.l.b16 %v326
      %v706 = vunpack.c.h.b16 %v326
      %v707 = vunpack.c.l.b16 %v327
      %v708 = vunpack.c.h.b16 %v327
      %v709 = vunpack.c.l.b16 %v328
      %v710 = vunpack.c.h.b16 %v328
      %v711 = vunpack.c.l.b16 %v329
      %v712 = vunpack.c.h.b16 %v329
      %v713 = vunpack.c.l.b16 %v330
      %v714 = vunpack.c.h.b16 %v330
      %v715 = vpack.c.b16 %v617, %v603
      %v716 = vpack.c.b16 %v618, %v604
      %v717 = vpack.c.b16 %v619, %v605
      %v718 = vpack.c.b16 %v620, %v606
      %v719 = vpack.c.b16 %v621, %v607
      %v720 = vpack.c.b16 %v622, %v608
      %v721 = vpack.c.b16 %v623, %v609
      %v722 = vpack.c.b16 %v624, %v610
      %v723 = vpack.c.b16 %v625, %v611
      %v724 = vpack.c.b16 %v626, %v612
      %v725 = vpack.c.b16 %v627, %v613
      %v726 = vpack.c.b16 %v628, %v614
      %v727 = vpack.c.b16 %v629, %v615
      %v728 = vpack.c.b16 %v630, %v616
      %v729 = vpack.c.b16 %v645, %v631
      %v730 = vpack.c.b16 %v646, %v632
      %v731 = vpack.c.b16 %v647, %v633
      %v732 = vpack.c.b16 %v648, %v634
      %v733 = vpack.c.b16 %v649, %v635
      %v734 = vpack.c.b16 %v650, %v636
      %v735 = vpack.c.b16 %v651, %v637
      %v736 = vpack.c.b16 %v652, %v638
      %v737 = vpack.c.b16 %v653, %v639
      %v738 = vpack.c.b16 %v654, %v640
      %v739 = vpack.c.b16 %v655, %v641
      %v740 = vpack.c.b16 %v656, %v642
      %v741 = vpack.c.b16 %v657, %v643
      %v742 = vpack.c.b16 %v658, %v644
      %v743 = vpack.c.b16 %v673, %v659
      %v744 = vpack.c.b16 %v674, %v660
      %v745 = vpack.c.b16 %v675, %v661
      %v746 = vpack.c.b16 %v676, %v662
      %v747 = vpack.c.b16 %v677, %v663
      %v748 = vpack.c.b16 %v678, %v664
      %v749 = vpack.c.b16 %v679, %v665
      %v750 = vpack.c.b16 %v680, %v666
      %v751 = vpack.c.b16 %v681, %v667
      %v752 = vpack.c.b16 %v682, %v668
      %v753 = vpack.c.b16 %v683, %v669
      %v754 = vpack.c.b16 %v684, %v670
      %v755 = vpack.c.b16 %v685, %v671
      %v756 = vpack.c.b16 %v686, %v672
      %v757 = vpack.c.b16 %v701, %v687
      %v758 = vpack.c.b16 %v702, %v688
      %v759 = vpack.c.b16 %v703, %v689
      %v760 = vpack.c.b16 %v704, %v690
      %v761 = vpack.c.b16 %v705, %v691
      %v762 = vpack.c.b16 %v706, %v692
      %v763 = vpack.c.b16 %v707, %v693
      %v764 = vpack.c.b16 %v708, %v694
      %v765 = vpack.c.b16 %v709, %v695
      %v766 = vpack.c.b16 %v710, %v696
      %v767 = vpack.c.b16 %v711, %v697
      %v768 = vpack.c.b16 %v712, %v698
      %v769 = vpack.c.b16 %v713, %v699
      %v770 = vpack.c.b16 %v714, %v700
      %v1039 = vunpack.c.l.b16 %v331
      %v1040 = vunpack.c.l.b16 %v332
      %v1041 = vunpack.c.l.b16 %v333
      %v1042 = vunpack.c.l.b16 %v334
      %v1043 = vunpack.c.l.b16 %v335
      %v1044 = vunpack.c.l.b16 %v336
      %v1045 = vunpack.c.l.b16 %v337
      %v1046 = vunpack.c.l.b16 %v338
      %v1047 = vunpack.c.l.b16 %v339
      %v1048 = vunpack.c.l.b16 %v340
      %v1049 = vunpack.c.l.b16 %v341
      %v1050 = vunpack.c.l.b16 %v342
      %v1051 = vunpack.c.l.b16 %v343
      %v1052 = vunpack.c.l.b16 %v344
      %v1053 = vunpack.c.l.b16 %v345
      %v1054 = vunpack.c.l.b16 %v346
      %v1055 = vunpack.c.l.b16 %v347
      %v1056 = vunpack.c.l.b16 %v348
      %v1057 = vunpack.c.l.b16 %v349
      %v1058 = vunpack.c.l.b16 %v350
      %v1059 = vunpack.c.l.b16 %v351
      %v1060 = vunpack.c.l.b16 %v352
      %v1061 = vunpack.c.l.b16 %v353
      %v1062 = vunpack.c.l.b16 %v354
      %v1063 = vunpack.c.l.b16 %v355
      %v1064 = vunpack.c.l.b16 %v356
      %v1065 = vunpack.c.l.b16 %v357
      %v1066 = vunpack.c.l.b16 %v358
      %v1067 = vunpack.c.l.b16 %v359
      %v1068 = vunpack.c.l.b16 %v360
      %v1069 = vunpack.c.l.b16 %v361
      %v1070 = vunpack.c.l.b16 %v362
      %v1071 = vunpack.c.l.b16 %v363
      %v1072 = vunpack.c.l.b16 %v364
      %v1073 = vunpack.c.l.b16 %v365
      %v1074 = vunpack.c.l.b16 %v366
      %v1075 = vunpack.c.l.b16 %v367
      %v1076 = vunpack.c.l.b16 %v368
      %v1077 = vunpack.c.l.b16 %v369
      %v1078 = vunpack.c.l.b16 %v370
      %v1079 = vunpack.c.l.b16 %v371
      %v1080 = vunpack.c.l.b16 %v372
      %v1081 = vunpack.c.l.b16 %v373
      %v1082 = vunpack.c.l.b16 %v374
      %v1083 = vunpack.c.l.b16 %v375
      %v1084 = vunpack.c.l.b16 %v376
      %v1085 = vunpack.c.l.b16 %v377
      %v1086 = vunpack.c.l.b16 %v378
      %v1087 = vunpack.c.l.b16 %v379
      %v1088 = vunpack.c.l.b16 %v380
      %v1089 = vunpack.c.l.b16 %v381
      %v1090 = vunpack.c.l.b16 %v382
      %v1091 = vunpack.c.l.b16 %v383
      %v1092 = vunpack.c.l.b16 %v384
      %v1093 = vunpack.c.l.b16 %v385
      %v1094 = vunpack.c.l.b16 %v386
      %v1095 = vunpack.c.l.b16 %v387
      %v1096 = vunpack.c.l.b16 %v388
      %v1097 = vunpack.c.l.b16 %v389
      %v1098 = vunpack.c.l.b16 %v390
      %v1099 = vunpack.c.l.b16 %v391
      %v1100 = vunpack.c.l.b16 %v392
      %v1101 = vunpack.c.l.b16 %v393
      %v1102 = vunpack.c.l.b16 %v394
      %v1103 = vunpack.c.l.b16 %v395
      %v1104 = vunpack.c.l.b16 %v396
      %v1105 = vunpack.c.l.b16 %v397
      %v1106 = vunpack.c.l.b16 %v398
      %v1107 = vunpack.c.l.b16 %v399
      %v1108 = vunpack.c.l.b16 %v400
      %v1109 = vunpack.c.l.b16 %v401
      %v1110 = vunpack.c.l.b16 %v402
      %v1111 = vunpack.c.l.b16 %v403
      %v1112 = vunpack.c.l.b16 %v404
      %v1113 = vunpack.c.l.b16 %v405
      %v1114 = vunpack.c.l.b16 %v406
      %v1115 = vunpack.c.l.b16 %v407
      %v1116 = vunpack.c.l.b16 %v408
      %v1117 = vunpack.c.l.b16 %v409
      %v1118 = vunpack.c.l.b16 %v410
      %v1119 = vunpack.c.l.b16 %v411
      %v1120 = vunpack.c.l.b16 %v412
      %v1121 = vunpack.c.l.b16 %v413
      %v1122 = vunpack.c.l.b16 %v414
      %v1123 = vunpack.c.l.b16 %v415
      %v1124 = vunpack.c.l.b16 %v416
      %v1125 = vunpack.c.l.b16 %v417
      %v1126 = vunpack.c.l.b16 %v418
      %v1127 = vunpack.c.l.b16 %v419
      %v1128 = vunpack.c.l.b16 %v420
      %v1129 = vunpack.c.l.b16 %v421
      %v1130 = vunpack.c.l.b16 %v422
      %v1131 = vunpack.c.l.b16 %v423
      %v1132 = vunpack.c.l.b16 %v424
      %v1133 = vunpack.c.l.b16 %v425
      %v1134 = vunpack.c.l.b16 %v426
      %v1135 = vunpack.c.l.b16 %v427
      %v1136 = vunpack.c.l.b16 %v428
      %v1137 = vunpack.c.l.b16 %v429
      %v1138 = vunpack.c.l.b16 %v430
      %v1139 = vunpack.c.l.b16 %v431
      %v1140 = vunpack.c.l.b16 %v432
      %v1141 = vunpack.c.l.b16 %v433
      %v1142 = vunpack.c.l.b16 %v434
      %v1143 = vunpack.c.l.b16 %v435
      %v1144 = vunpack.c.l.b16 %v436
      %v1145 = vunpack.c.l.b16 %v437
      %v1146 = vunpack.c.l.b16 %v438
      %v1147 = vunpack.c.l.b16 %v439
      %v1148 = vunpack.c.l.b16 %v440
      %v1149 = vunpack.c.l.b16 %v441
      %v1150 = vunpack.c.l.b16 %v442
      %v1151 = vunpack.c.l.b16 %v443
      %v1152 = vunpack.c.l.b16 %v444
      %v1153 = vunpack.c.l.b16 %v445
      %v1154 = vunpack.c.l.b16 %v446
      %v1155 = vunpack.c.l.b16 %v447
      %v1156 = vunpack.c.l.b16 %v448
      %v1157 = vunpack.c.l.b16 %v449
      %v1158 = vunpack.c.l.b16 %v450
      %v1159 = vunpack.c.l.b16 %v451
      %v1160 = vunpack.c.l.b16 %v452
      %v1161 = vunpack.c.l.b16 %v453
      %v1162 = vunpack.c.l.b16 %v454
      %v1163 = vunpack.c.l.b16 %v455
      %v1164 = vunpack.c.l.b16 %v456
      %v1165 = vunpack.c.l.b16 %v457
      %v1166 = vunpack.c.l.b16 %v458
      %v1167 = vunpack.c.l.b16 %v459
      %v1168 = vunpack.c.l.b16 %v460
      %v1169 = vunpack.c.l.b16 %v461
      %v1170 = vunpack.c.l.b16 %v462
      %v1171 = vunpack.c.l.b16 %v463
      %v1172 = vunpack.c.l.b16 %v464
      %v1173 = vunpack.c.l.b16 %v465
      %v1174 = vunpack.c.l.b16 %v466
      %v1175 = vunpack.c.l.b16 %v467
      %v1176 = vunpack.c.l.b16 %v468
      %v1177 = vunpack.c.l.b16 %v469
      %v1178 = vunpack.c.l.b16 %v470
      %v1179 = vunpack.c.l.b16 %v471
      %v1180 = vunpack.c.l.b16 %v472
      %v1181 = vunpack.c.l.b16 %v473
      %v1182 = vunpack.c.l.b16 %v474
      %v1183 = vunpack.c.l.b16 %v475
      %v1184 = vunpack.c.l.b16 %v476
      %v1185 = vunpack.c.l.b16 %v477
      %v1186 = vunpack.c.l.b16 %v478
      %v1187 = vunpack.c.l.b16 %v479
      %v1188 = vunpack.c.l.b16 %v480
      %v1189 = vunpack.c.l.b16 %v481
      %v1190 = vunpack.c.l.b16 %v482
      %v1191 = vunpack.c.l.b16 %v483
      %v1192 = vunpack.c.l.b16 %v484
      %v1193 = vunpack.c.l.b16 %v485
      %v1194 = vunpack.c.l.b16 %v486
      %v1195 = vunpack.c.l.b16 %v487
      %v1196 = vunpack.c.l.b16 %v488
      %v1197 = vunpack.c.l.b16 %v489
      %v1198 = vunpack.c.l.b16 %v490
      %v1199 = vunpack.c.l.b16 %v491
      %v1200 = vunpack.c.l.b16 %v492
      %v1201 = vunpack.c.l.b16 %v493
      %v1202 = vunpack.c.l.b16 %v494
      %v1203 = vunpack.c.l.b16 %v495
      %v1204 = vunpack.c.l.b16 %v496
      %v1205 = vunpack.c.l.b16 %v497
      %v1206 = vunpack.c.l.b16 %v498
      %v1207 = vunpack.c.l.b16 %v499
      %v1208 = vunpack.c.l.b16 %v500
      %v1209 = vunpack.c.l.b16 %v501
      %v1210 = vunpack.c.l.b16 %v502
      %v1211 = vunpack.c.l.b16 %v503
      %v1212 = vunpack.c.l.b16 %v504
      %v1213 = vunpack.c.l.b16 %v505
      %v1214 = vunpack.c.l.b16 %v506
      %v1215 = vunpack.c.l.b16 %v507
      %v1216 = vunpack.c.l.b16 %v508
      %v1217 = vunpack.c.l.b16 %v509
      %v1218 = vunpack.c.l.b16 %v510
      %v1219 = vunpack.c.l.b16 %v511
      %v1220 = vunpack.c.l.b16 %v512
      %v1221 = vunpack.c.l.b16 %v513
      %v1222 = vunpack.c.l.b16 %v514
      %v1223 = vunpack.c.l.b16 %v515
      %v1224 = vunpack.c.l.b16 %v516
      %v1225 = vunpack.c.l.b16 %v517
      %v1226 = vunpack.c.l.b16 %v518
      %v1227 = vunpack.c.l.b16 %v519
      %v1228 = vunpack.c.l.b16 %v520
      %v1229 = vunpack.c.l.b16 %v521
      %v1230 = vunpack.c.l.b16 %v522
      %v1231 = vunpack.c.l.b16 %v523
      %v1232 = vunpack.c.l.b16 %v524
      %v1233 = vunpack.c.l.b16 %v525
      %v1234 = vunpack.c.l.b16 %v526
      %v1235 = vunpack.c.l.b16 %v527
      %v1236 = vunpack.c.l.b16 %v528
      %v1237 = vunpack.c.l.b16 %v529
      %v1238 = vunpack.c.l.b16 %v530
      %v1239 = vunpack.c.l.b16 %v531
      %v1240 = vunpack.c.l.b16 %v532
      %v1241 = vunpack.c.l.b16 %v533
      %v1242 = vunpack.c.l.b16 %v534
      %v1243 = vunpack.c.l.b16 %v535
      %v1244 = vunpack.c.l.b16 %v536
      %v1245 = vunpack.c.l.b16 %v537
      %v1246 = vunpack.c.l.b16 %v538
      %v1247 = vunpack.c.l.b16 %v539
      %v1248 = vunpack.c.l.b16 %v540
      %v1249 = vunpack.c.l.b16 %v541
      %v1250 = vunpack.c.l.b16 %v542
      %v1251 = vunpack.c.l.b16 %v543
      %v1252 = vunpack.c.l.b16 %v544
      %v1253 = vunpack.c.l.b16 %v545
      %v1254 = vunpack.c.l.b16 %v546
      %v1255 = vpack.c.b16 %v1040, %v1039
      %v1256 = vpack.c.b16 %v1042, %v1041
      %v1257 = vpack.c.b16 %v1044, %v1043
      %v1258 = vpack.c.b16 %v1046, %v1045
      %v1259 = vpack.c.b16 %v1048, %v1047
      %v1260 = vpack.c.b16 %v1050, %v1049
      %v1261 = vpack.c.b16 %v1052, %v1051
      %v1262 = vpack.c.b16 %v1054, %v1053
      %v1263 = vpack.c.b16 %v1056, %v1055
      %v1264 = vpack.c.b16 %v1058, %v1057
      %v1265 = vpack.c.b16 %v1060, %v1059
      %v1266 = vpack.c.b16 %v1062, %v1061
      %v1267 = vpack.c.b16 %v1064, %v1063
      %v1268 = vpack.c.b16 %v1066, %v1065
      %v1269 = vpack.c.b16 %v1068, %v1067
      %v1270 = vpack.c.b16 %v1070, %v1069
      %v1271 = vpack.c.b16 %v1072, %v1071
      %v1272 = vpack.c.b16 %v1074, %v1073
      %v1273 = vpack.c.b16 %v1076, %v1075
      %v1274 = vpack.c.b16 %v1078, %v1077
      %v1275 = vpack.c.b16 %v1080, %v1079
      %v1276 = vpack.c.b16 %v1082, %v1081
      %v1277 = vpack.c.b16 %v1084, %v1083
      %v1278 = vpack.c.b16 %v1086, %v1085
      %v1279 = vpack.c.b16 %v1088, %v1087
      %v1280 = vpack.c.b16 %v1090, %v1089
      %v1281 = vpack.c.b16 %v1092, %v1091
      %v1282 = vpack.c.b16 %v1094, %v1093
      %v1283 = vpack.c.b16 %v1096, %v1095
      %v1284 = vpack.c.b16 %v1098, %v1097
      %v1285 = vpack.c.b16 %v1100, %v1099
      %v1286 = vpack.c.b16 %v1102, %v1101
      %v1287 = vpack.c.b16 %v1104, %v1103
      %v1288 = vpack.c.b16 %v1106, %v1105
      %v1289 = vpack.c.b16 %v1108, %v1107
      %v1290 = vpack.c.b16 %v1110, %v1109
      %v1291 = vpack.c.b16 %v1112, %v1111
      %v1292 = vpack.c.b16 %v1114, %v1113
      %v1293 = vpack.c.b16 %v1116, %v1115
      %v1294 = vpack.c.b16 %v1118, %v1117
      %v1295 = vpack.c.b16 %v1120, %v1119
      %v1296 = vpack.c.b16 %v1122, %v1121
      %v1297 = vpack.c.b16 %v1124, %v1123
      %v1298 = vpack.c.b16 %v1126, %v1125
      %v1299 = vpack.c.b16 %v1128, %v1127
      %v1300 = vpack.c.b16 %v1130, %v1129
      %v1301 = vpack.c.b16 %v1132, %v1131
      %v1302 = vpack.c.b16 %v1134, %v1133
      %v1303 = vpack.c.b16 %v1136, %v1135
      %v1304 = vpack.c.b16 %v1138, %v1137
      %v1305 = vpack.c.b16 %v1140, %v1139
      %v1306 = vpack.c.b16 %v1142, %v1141
      %v1307 = vpack.c.b16 %v1144, %v1143
      %v1308 = vpack.c.b16 %v1146, %v1145
      %v1309 = vpack.c.b16 %v1148, %v1147
      %v1310 = vpack.c.b16 %v1150, %v1149
      %v1311 = vpack.c.b16 %v1152, %v1151
      %v1312 = vpack.c.b16 %v1154, %v1153
      %v1313 = vpack.c.b16 %v1156, %v1155
      %v1314 = vpack.c.b16 %v1158, %v1157
      %v1315 = vpack.c.b16 %v1160, %v1159
      %v1316 = vpack.c.b16 %v1162, %v1161
      %v1317 = vpack.c.b16 %v1164, %v1163
      %v1318 = vpack.c.b16 %v1166, %v1165
      %v1319 = vpack.c.b16 %v1168, %v1167
      %v1320 = vpack.c.b16 %v1170, %v1169
      %v1321 = vpack.c.b16 %v1172, %v1171
      %v1322 = vpack.c.b16 %v1174, %v1173
      %v1323 = vpack.c.b16 %v1176, %v1175
      %v1324 = vpack.c.b16 %v1178, %v1177
      %v1325 = vpack.c.b16 %v1180, %v1179
      %v1326 = vpack.c.b16 %v1182, %v1181
      %v1327 = vpack.c.b16 %v1184, %v1183
      %v1328 = vpack.c.b16 %v1186, %v1185
      %v1329 = vpack.c.b16 %v1188, %v1187
      %v1330 = vpack.c.b16 %v1190, %v1189
      %v1331 = vpack.c.b16 %v1192, %v1191
      %v1332 = vpack.c.b16 %v1194, %v1193
      %v1333 = vpack.c.b16 %v1196, %v1195
      %v1334 = vpack.c.b16 %v1198, %v1197
      %v1335 = vpack.c.b16 %v1200, %v1199
      %v1336 = vpack.c.b16 %v1202, %v1201
      %v1337 = vpack.c.b16 %v1204, %v1203
      %v1338 = vpack.c.b16 %v1206, %v1205
      %v1339 = vpack.c.b16 %v1208, %v1207
      %v1340 = vpack.c.b16 %v1210, %v1209
      %v1341 = vpack.c.b16 %v1212, %v1211
      %v1342 = vpack.c.b16 %v1214, %v1213
      %v1343 = vpack.c.b16 %v1216, %v1215
      %v1344 = vpack.c.b16 %v1218, %v1217
      %v1345 = vpack.c.b16 %v1220, %v1219
      %v1346 = vpack.c.b16 %v1222, %v1221
      %v1347 = vpack.c.b16 %v1224, %v1223
      %v1348 = vpack.c.b16 %v1226, %v1225
      %v1349 = vpack.c.b16 %v1228, %v1227
      %v1350 = vpack.c.b16 %v1230, %v1229
      %v1351 = vpack.c.b16 %v1232, %v1231
      %v1352 = vpack.c.b16 %v1234, %v1233
      %v1353 = vpack.c.b16 %v1236, %v1235
      %v1354 = vpack.c.b16 %v1238, %v1237
      %v1355 = vpack.c.b16 %v1240, %v1239
      %v1356 = vpack.c.b16 %v1242, %v1241
      %v1357 = vpack.c.b16 %v1244, %v1243
      %v1358 = vpack.c.b16 %v1246, %v1245
      %v1359 = vpack.c.b16 %v1248, %v1247
      %v1360 = vpack.c.b16 %v1250, %v1249
      %v1361 = vpack.c.b16 %v1252, %v1251
      %v1362 = vpack.c.b16 %v1254, %v1253
      %vm1471 = vcmask 523264
      %v1473 = vsel %vm1471, %v728, 0
      %v1476 = vsel %vm1471, %v742, 0
      %v1479 = vsel %vm1471, %v756, 0
      %v1482 = vsel %vm1471, %v770, 0
      %1484 = vmatpush.bf16.msra.mxu0 %v1262
      %1485 = vmatpush.bf16.msra.mxu0 %v1261
      %1486 = vmatpush.bf16.msra.mxu0 %v1260
      %1487 = vmatpush.bf16.msra.mxu0 %v1259
      %1488 = vmatpush.bf16.msra.mxu0 %v1258
      %1489 = vmatpush.bf16.msra.mxu0 %v1257
      %1490 = vmatpush.bf16.msra.mxu0 %v1256
      %1491 = vmatpush.bf16.msra.mxu0 %v1255
      %1492 = vmatmul.bf16.gmra.mxu0 %v715
      %v1493 = vpop.f32.mrf.mxu0
      %v1494 = vadd.f32 0.0, %v1493
      %v1495 = vpop.f32.mrf.mxu0
      %v1496 = vadd.f32 0.0, %v1495
      %1497 = vmatmul.bf16.gmra.mxu0 %v729
      %v1498 = vpop.f32.mrf.mxu0
      %v1499 = vadd.f32 0.0, %v1498
      %v1500 = vpop.f32.mrf.mxu0
      %v1501 = vadd.f32 0.0, %v1500
      %1502 = vmatmul.bf16.gmra.mxu0 %v743
      %v1503 = vpop.f32.mrf.mxu0
      %v1504 = vadd.f32 0.0, %v1503
      %v1505 = vpop.f32.mrf.mxu0
      %v1506 = vadd.f32 0.0, %v1505
      %1507 = vmatmul.bf16.gmra.mxu0 %v757
      %v1508 = vpop.f32.mrf.mxu0
      %v1509 = vadd.f32 0.0, %v1508
      %v1510 = vpop.f32.mrf.mxu0
      %v1511 = vadd.f32 0.0, %v1510
      %1512 = vdwg.mxu0
      %1513 = vmatpush.bf16.msra.mxu0 %v1270
      %1514 = vmatpush.bf16.msra.mxu0 %v1269
      %1515 = vmatpush.bf16.msra.mxu0 %v1268
      %1516 = vmatpush.bf16.msra.mxu0 %v1267
      %1517 = vmatpush.bf16.msra.mxu0 %v1266
      %1518 = vmatpush.bf16.msra.mxu0 %v1265
      %1519 = vmatpush.bf16.msra.mxu0 %v1264
      %1520 = vmatpush.bf16.msra.mxu0 %v1263
      %1521 = vmatmul.bf16.gmra.mxu0 %v716
      %v1522 = vpop.f32.mrf.mxu0
      %v1523 = vadd.f32 %v1494, %v1522
      %v1524 = vpop.f32.mrf.mxu0
      %v1525 = vadd.f32 %v1496, %v1524
      %1526 = vmatmul.bf16.gmra.mxu0 %v730
      %v1527 = vpop.f32.mrf.mxu0
      %v1528 = vadd.f32 %v1499, %v1527
      %v1529 = vpop.f32.mrf.mxu0
      %v1530 = vadd.f32 %v1501, %v1529
      %1531 = vmatmul.bf16.gmra.mxu0 %v744
      %v1532 = vpop.f32.mrf.mxu0
      %v1533 = vadd.f32 %v1504, %v1532
      %v1534 = vpop.f32.mrf.mxu0
      %v1535 = vadd.f32 %v1506, %v1534
      %1536 = vmatmul.bf16.gmra.mxu0 %v758
      %v1537 = vpop.f32.mrf.mxu0
      %v1538 = vadd.f32 %v1509, %v1537
      %v1539 = vpop.f32.mrf.mxu0
      %v1540 = vadd.f32 %v1511, %v1539
      %1541 = vdwg.mxu0
      %1542 = vmatpush.bf16.msra.mxu0 %v1278
      %1543 = vmatpush.bf16.msra.mxu0 %v1277
      %1544 = vmatpush.bf16.msra.mxu0 %v1276
      %1545 = vmatpush.bf16.msra.mxu0 %v1275
      %1546 = vmatpush.bf16.msra.mxu0 %v1274
      %1547 = vmatpush.bf16.msra.mxu0 %v1273
      %1548 = vmatpush.bf16.msra.mxu0 %v1272
      %1549 = vmatpush.bf16.msra.mxu0 %v1271
      %1550 = vmatmul.bf16.gmra.mxu0 %v717
      %v1551 = vpop.f32.mrf.mxu0
      %v1552 = vadd.f32 %v1523, %v1551
      %v1553 = vpop.f32.mrf.mxu0
      %v1554 = vadd.f32 %v1525, %v1553
      %1555 = vmatmul.bf16.gmra.mxu0 %v731
      %v1556 = vpop.f32.mrf.mxu0
      %v1557 = vadd.f32 %v1528, %v1556
      %v1558 = vpop.f32.mrf.mxu0
      %v1559 = vadd.f32 %v1530, %v1558
      %1560 = vmatmul.bf16.gmra.mxu0 %v745
      %v1561 = vpop.f32.mrf.mxu0
      %v1562 = vadd.f32 %v1533, %v1561
      %v1563 = vpop.f32.mrf.mxu0
      %v1564 = vadd.f32 %v1535, %v1563
      %1565 = vmatmul.bf16.gmra.mxu0 %v759
      %v1566 = vpop.f32.mrf.mxu0
      %v1567 = vadd.f32 %v1538, %v1566
      %v1568 = vpop.f32.mrf.mxu0
      %v1569 = vadd.f32 %v1540, %v1568
      %1570 = vdwg.mxu0
      %1571 = vmatpush.bf16.msra.mxu0 %v1286
      %1572 = vmatpush.bf16.msra.mxu0 %v1285
      %1573 = vmatpush.bf16.msra.mxu0 %v1284
      %1574 = vmatpush.bf16.msra.mxu0 %v1283
      %1575 = vmatpush.bf16.msra.mxu0 %v1282
      %1576 = vmatpush.bf16.msra.mxu0 %v1281
      %1577 = vmatpush.bf16.msra.mxu0 %v1280
      %1578 = vmatpush.bf16.msra.mxu0 %v1279
      %1579 = vmatmul.bf16.gmra.mxu0 %v718
      %v1580 = vpop.f32.mrf.mxu0
      %v1581 = vadd.f32 %v1552, %v1580
      %v1582 = vpop.f32.mrf.mxu0
      %v1583 = vadd.f32 %v1554, %v1582
      %1584 = vmatmul.bf16.gmra.mxu0 %v732
      %v1585 = vpop.f32.mrf.mxu0
      %v1586 = vadd.f32 %v1557, %v1585
      %v1587 = vpop.f32.mrf.mxu0
      %v1588 = vadd.f32 %v1559, %v1587
      %1589 = vmatmul.bf16.gmra.mxu0 %v746
      %v1590 = vpop.f32.mrf.mxu0
      %v1591 = vadd.f32 %v1562, %v1590
      %v1592 = vpop.f32.mrf.mxu0
      %v1593 = vadd.f32 %v1564, %v1592
      %1594 = vmatmul.bf16.gmra.mxu0 %v760
      %v1595 = vpop.f32.mrf.mxu0
      %v1596 = vadd.f32 %v1567, %v1595
      %v1597 = vpop.f32.mrf.mxu0
      %v1598 = vadd.f32 %v1569, %v1597
      %1599 = vdwg.mxu0
      %1600 = vmatpush.bf16.msra.mxu0 %v1294
      %1601 = vmatpush.bf16.msra.mxu0 %v1293
      %1602 = vmatpush.bf16.msra.mxu0 %v1292
      %1603 = vmatpush.bf16.msra.mxu0 %v1291
      %1604 = vmatpush.bf16.msra.mxu0 %v1290
      %1605 = vmatpush.bf16.msra.mxu0 %v1289
      %1606 = vmatpush.bf16.msra.mxu0 %v1288
      %1607 = vmatpush.bf16.msra.mxu0 %v1287
      %1608 = vmatmul.bf16.gmra.mxu0 %v719
      %v1609 = vpop.f32.mrf.mxu0
      %v1610 = vadd.f32 %v1581, %v1609
      %v1611 = vpop.f32.mrf.mxu0
      %v1612 = vadd.f32 %v1583, %v1611
      %1613 = vmatmul.bf16.gmra.mxu0 %v733
      %v1614 = vpop.f32.mrf.mxu0
      %v1615 = vadd.f32 %v1586, %v1614
      %v1616 = vpop.f32.mrf.mxu0
      %v1617 = vadd.f32 %v1588, %v1616
      %1618 = vmatmul.bf16.gmra.mxu0 %v747
      %v1619 = vpop.f32.mrf.mxu0
      %v1620 = vadd.f32 %v1591, %v1619
      %v1621 = vpop.f32.mrf.mxu0
      %v1622 = vadd.f32 %v1593, %v1621
      %1623 = vmatmul.bf16.gmra.mxu0 %v761
      %v1624 = vpop.f32.mrf.mxu0
      %v1625 = vadd.f32 %v1596, %v1624
      %v1626 = vpop.f32.mrf.mxu0
      %v1627 = vadd.f32 %v1598, %v1626
      %1628 = vdwg.mxu0
      %1629 = vmatpush.bf16.msra.mxu0 %v1302
      %1630 = vmatpush.bf16.msra.mxu0 %v1301
      %1631 = vmatpush.bf16.msra.mxu0 %v1300
      %1632 = vmatpush.bf16.msra.mxu0 %v1299
      %1633 = vmatpush.bf16.msra.mxu0 %v1298
      %1634 = vmatpush.bf16.msra.mxu0 %v1297
      %1635 = vmatpush.bf16.msra.mxu0 %v1296
      %1636 = vmatpush.bf16.msra.mxu0 %v1295
      %1637 = vmatmul.bf16.gmra.mxu0 %v720
      %v1638 = vpop.f32.mrf.mxu0
      %v1639 = vadd.f32 %v1610, %v1638
      %v1640 = vpop.f32.mrf.mxu0
      %v1641 = vadd.f32 %v1612, %v1640
      %1642 = vmatmul.bf16.gmra.mxu0 %v734
      %v1643 = vpop.f32.mrf.mxu0
      %v1644 = vadd.f32 %v1615, %v1643
      %v1645 = vpop.f32.mrf.mxu0
      %v1646 = vadd.f32 %v1617, %v1645
      %1647 = vmatmul.bf16.gmra.mxu0 %v748
      %v1648 = vpop.f32.mrf.mxu0
      %v1649 = vadd.f32 %v1620, %v1648
      %v1650 = vpop.f32.mrf.mxu0
      %v1651 = vadd.f32 %v1622, %v1650
      %1652 = vmatmul.bf16.gmra.mxu0 %v762
      %v1653 = vpop.f32.mrf.mxu0
      %v1654 = vadd.f32 %v1625, %v1653
      %v1655 = vpop.f32.mrf.mxu0
      %v1656 = vadd.f32 %v1627, %v1655
      %1657 = vdwg.mxu0
      %1658 = vmatpush.bf16.msra.mxu0 %v1310
      %1659 = vmatpush.bf16.msra.mxu0 %v1309
      %1660 = vmatpush.bf16.msra.mxu0 %v1308
      %1661 = vmatpush.bf16.msra.mxu0 %v1307
      %1662 = vmatpush.bf16.msra.mxu0 %v1306
      %1663 = vmatpush.bf16.msra.mxu0 %v1305
      %1664 = vmatpush.bf16.msra.mxu0 %v1304
      %1665 = vmatpush.bf16.msra.mxu0 %v1303
      %1666 = vmatmul.bf16.gmra.mxu0 %v721
      %v1667 = vpop.f32.mrf.mxu0
      %v1668 = vadd.f32 %v1639, %v1667
      %v1669 = vpop.f32.mrf.mxu0
      %v1670 = vadd.f32 %v1641, %v1669
      %1671 = vmatmul.bf16.gmra.mxu0 %v735
      %v1672 = vpop.f32.mrf.mxu0
      %v1673 = vadd.f32 %v1644, %v1672
      %v1674 = vpop.f32.mrf.mxu0
      %v1675 = vadd.f32 %v1646, %v1674
      %1676 = vmatmul.bf16.gmra.mxu0 %v749
      %v1677 = vpop.f32.mrf.mxu0
      %v1678 = vadd.f32 %v1649, %v1677
      %v1679 = vpop.f32.mrf.mxu0
      %v1680 = vadd.f32 %v1651, %v1679
      %1681 = vmatmul.bf16.gmra.mxu0 %v763
      %v1682 = vpop.f32.mrf.mxu0
      %v1683 = vadd.f32 %v1654, %v1682
      %v1684 = vpop.f32.mrf.mxu0
      %v1685 = vadd.f32 %v1656, %v1684
      %1686 = vdwg.mxu0
      %1687 = vmatpush.bf16.msra.mxu0 %v1318
      %1688 = vmatpush.bf16.msra.mxu0 %v1317
      %1689 = vmatpush.bf16.msra.mxu0 %v1316
      %1690 = vmatpush.bf16.msra.mxu0 %v1315
      %1691 = vmatpush.bf16.msra.mxu0 %v1314
      %1692 = vmatpush.bf16.msra.mxu0 %v1313
      %1693 = vmatpush.bf16.msra.mxu0 %v1312
      %1694 = vmatpush.bf16.msra.mxu0 %v1311
      %1695 = vmatmul.bf16.gmra.mxu0 %v722
      %v1696 = vpop.f32.mrf.mxu0
      %v1697 = vadd.f32 %v1668, %v1696
      %v1698 = vpop.f32.mrf.mxu0
      %v1699 = vadd.f32 %v1670, %v1698
      %1700 = vmatmul.bf16.gmra.mxu0 %v736
      %v1701 = vpop.f32.mrf.mxu0
      %v1702 = vadd.f32 %v1673, %v1701
      %v1703 = vpop.f32.mrf.mxu0
      %v1704 = vadd.f32 %v1675, %v1703
      %1705 = vmatmul.bf16.gmra.mxu0 %v750
      %v1706 = vpop.f32.mrf.mxu0
      %v1707 = vadd.f32 %v1678, %v1706
      %v1708 = vpop.f32.mrf.mxu0
      %v1709 = vadd.f32 %v1680, %v1708
      %1710 = vmatmul.bf16.gmra.mxu0 %v764
      %v1711 = vpop.f32.mrf.mxu0
      %v1712 = vadd.f32 %v1683, %v1711
      %v1713 = vpop.f32.mrf.mxu0
      %v1714 = vadd.f32 %v1685, %v1713
      %1715 = vdwg.mxu0
      %1716 = vmatpush.bf16.msra.mxu0 %v1326
      %1717 = vmatpush.bf16.msra.mxu0 %v1325
      %1718 = vmatpush.bf16.msra.mxu0 %v1324
      %1719 = vmatpush.bf16.msra.mxu0 %v1323
      %1720 = vmatpush.bf16.msra.mxu0 %v1322
      %1721 = vmatpush.bf16.msra.mxu0 %v1321
      %1722 = vmatpush.bf16.msra.mxu0 %v1320
      %1723 = vmatpush.bf16.msra.mxu0 %v1319
      %1724 = vmatmul.bf16.gmra.mxu0 %v723
      %v1725 = vpop.f32.mrf.mxu0
      %v1726 = vadd.f32 %v1697, %v1725
      %v1727 = vpop.f32.mrf.mxu0
      %v1728 = vadd.f32 %v1699, %v1727
      %1729 = vmatmul.bf16.gmra.mxu0 %v737
      %v1730 = vpop.f32.mrf.mxu0
      %v1731 = vadd.f32 %v1702, %v1730
      %v1732 = vpop.f32.mrf.mxu0
      %v1733 = vadd.f32 %v1704, %v1732
      %1734 = vmatmul.bf16.gmra.mxu0 %v751
      %v1735 = vpop.f32.mrf.mxu0
      %v1736 = vadd.f32 %v1707, %v1735
      %v1737 = vpop.f32.mrf.mxu0
      %v1738 = vadd.f32 %v1709, %v1737
      %1739 = vmatmul.bf16.gmra.mxu0 %v765
      %v1740 = vpop.f32.mrf.mxu0
      %v1741 = vadd.f32 %v1712, %v1740
      %v1742 = vpop.f32.mrf.mxu0
      %v1743 = vadd.f32 %v1714, %v1742
      %1744 = vdwg.mxu0
      %1745 = vmatpush.bf16.msra.mxu0 %v1334
      %1746 = vmatpush.bf16.msra.mxu0 %v1333
      %1747 = vmatpush.bf16.msra.mxu0 %v1332
      %1748 = vmatpush.bf16.msra.mxu0 %v1331
      %1749 = vmatpush.bf16.msra.mxu0 %v1330
      %1750 = vmatpush.bf16.msra.mxu0 %v1329
      %1751 = vmatpush.bf16.msra.mxu0 %v1328
      %1752 = vmatpush.bf16.msra.mxu0 %v1327
      %1753 = vmatmul.bf16.gmra.mxu0 %v724
      %v1754 = vpop.f32.mrf.mxu0
      %v1755 = vadd.f32 %v1726, %v1754
      %v1756 = vpop.f32.mrf.mxu0
      %v1757 = vadd.f32 %v1728, %v1756
      %1758 = vmatmul.bf16.gmra.mxu0 %v738
      %v1759 = vpop.f32.mrf.mxu0
      %v1760 = vadd.f32 %v1731, %v1759
      %v1761 = vpop.f32.mrf.mxu0
      %v1762 = vadd.f32 %v1733, %v1761
      %1763 = vmatmul.bf16.gmra.mxu0 %v752
      %v1764 = vpop.f32.mrf.mxu0
      %v1765 = vadd.f32 %v1736, %v1764
      %v1766 = vpop.f32.mrf.mxu0
      %v1767 = vadd.f32 %v1738, %v1766
      %1768 = vmatmul.bf16.gmra.mxu0 %v766
      %v1769 = vpop.f32.mrf.mxu0
      %v1770 = vadd.f32 %v1741, %v1769
      %v1771 = vpop.f32.mrf.mxu0
      %v1772 = vadd.f32 %v1743, %v1771
      %1773 = vdwg.mxu0
      %1774 = vmatpush.bf16.msra.mxu0 %v1342
      %1775 = vmatpush.bf16.msra.mxu0 %v1341
      %1776 = vmatpush.bf16.msra.mxu0 %v1340
      %1777 = vmatpush.bf16.msra.mxu0 %v1339
      %1778 = vmatpush.bf16.msra.mxu0 %v1338
      %1779 = vmatpush.bf16.msra.mxu0 %v1337
      %1780 = vmatpush.bf16.msra.mxu0 %v1336
      %1781 = vmatpush.bf16.msra.mxu0 %v1335
      %1782 = vmatmul.bf16.gmra.mxu0 %v725
      %v1783 = vpop.f32.mrf.mxu0
      %v1784 = vadd.f32 %v1755, %v1783
      %v1785 = vpop.f32.mrf.mxu0
      %v1786 = vadd.f32 %v1757, %v1785
      %1787 = vmatmul.bf16.gmra.mxu0 %v739
      %v1788 = vpop.f32.mrf.mxu0
      %v1789 = vadd.f32 %v1760, %v1788
      %v1790 = vpop.f32.mrf.mxu0
      %v1791 = vadd.f32 %v1762, %v1790
      %1792 = vmatmul.bf16.gmra.mxu0 %v753
      %v1793 = vpop.f32.mrf.mxu0
      %v1794 = vadd.f32 %v1765, %v1793
      %v1795 = vpop.f32.mrf.mxu0
      %v1796 = vadd.f32 %v1767, %v1795
      %1797 = vmatmul.bf16.gmra.mxu0 %v767
      %v1798 = vpop.f32.mrf.mxu0
      %v1799 = vadd.f32 %v1770, %v1798
      %v1800 = vpop.f32.mrf.mxu0
      %v1801 = vadd.f32 %v1772, %v1800
      %1802 = vdwg.mxu0
      %1803 = vmatpush.bf16.msra.mxu0 %v1350
      %1804 = vmatpush.bf16.msra.mxu0 %v1349
      %1805 = vmatpush.bf16.msra.mxu0 %v1348
      %1806 = vmatpush.bf16.msra.mxu0 %v1347
      %1807 = vmatpush.bf16.msra.mxu0 %v1346
      %1808 = vmatpush.bf16.msra.mxu0 %v1345
      %1809 = vmatpush.bf16.msra.mxu0 %v1344
      %1810 = vmatpush.bf16.msra.mxu0 %v1343
      %1811 = vmatmul.bf16.gmra.mxu0 %v726
      %v1812 = vpop.f32.mrf.mxu0
      %v1813 = vadd.f32 %v1784, %v1812
      %v1814 = vpop.f32.mrf.mxu0
      %v1815 = vadd.f32 %v1786, %v1814
      %1816 = vmatmul.bf16.gmra.mxu0 %v740
      %v1817 = vpop.f32.mrf.mxu0
      %v1818 = vadd.f32 %v1789, %v1817
      %v1819 = vpop.f32.mrf.mxu0
      %v1820 = vadd.f32 %v1791, %v1819
      %1821 = vmatmul.bf16.gmra.mxu0 %v754
      %v1822 = vpop.f32.mrf.mxu0
      %v1823 = vadd.f32 %v1794, %v1822
      %v1824 = vpop.f32.mrf.mxu0
      %v1825 = vadd.f32 %v1796, %v1824
      %1826 = vmatmul.bf16.gmra.mxu0 %v768
      %v1827 = vpop.f32.mrf.mxu0
      %v1828 = vadd.f32 %v1799, %v1827
      %v1829 = vpop.f32.mrf.mxu0
      %v1830 = vadd.f32 %v1801, %v1829
      %1831 = vdwg.mxu0
      %1832 = vmatpush.bf16.msra.mxu0 %v1358
      %1833 = vmatpush.bf16.msra.mxu0 %v1357
      %1834 = vmatpush.bf16.msra.mxu0 %v1356
      %1835 = vmatpush.bf16.msra.mxu0 %v1355
      %1836 = vmatpush.bf16.msra.mxu0 %v1354
      %1837 = vmatpush.bf16.msra.mxu0 %v1353
      %1838 = vmatpush.bf16.msra.mxu0 %v1352
      %1839 = vmatpush.bf16.msra.mxu0 %v1351
      %1840 = vmatmul.bf16.gmra.mxu0 %v727
      %v1841 = vpop.f32.mrf.mxu0
      %v1842 = vadd.f32 %v1813, %v1841
      %v1843 = vpop.f32.mrf.mxu0
      %v1844 = vadd.f32 %v1815, %v1843
      %1845 = vmatmul.bf16.gmra.mxu0 %v741
      %v1846 = vpop.f32.mrf.mxu0
      %v1847 = vadd.f32 %v1818, %v1846
      %v1848 = vpop.f32.mrf.mxu0
      %v1849 = vadd.f32 %v1820, %v1848
      %1850 = vmatmul.bf16.gmra.mxu0 %v755
      %v1851 = vpop.f32.mrf.mxu0
      %v1852 = vadd.f32 %v1823, %v1851
      %v1853 = vpop.f32.mrf.mxu0
      %v1854 = vadd.f32 %v1825, %v1853
      %1855 = vmatmul.bf16.gmra.mxu0 %v769
      %v1856 = vpop.f32.mrf.mxu0
      %v1857 = vadd.f32 %v1828, %v1856
      %v1858 = vpop.f32.mrf.mxu0
      %v1859 = vadd.f32 %v1830, %v1858
      %1860 = vdwg.mxu0
      %1861 = vmatpush.bf16.msra.mxu0 0
      %1862 = vmatpush.bf16.msra.mxu0 0
      %1863 = vmatpush.bf16.msra.mxu0 0
      %1864 = vmatpush.bf16.msra.mxu0 0
      %1865 = vmatpush.bf16.msra.mxu0 %v1362
      %1866 = vmatpush.bf16.msra.mxu0 %v1361
      %1867 = vmatpush.bf16.msra.mxu0 %v1360
      %1868 = vmatpush.bf16.msra.mxu0 %v1359
      %1869 = vmatmul.bf16.gmra.mxu0 %v1473
      %v1870 = vpop.f32.mrf.mxu0
      %v1871 = vadd.f32 %v1842, %v1870
      %v1872 = vpop.f32.mrf.mxu0
      %v1873 = vadd.f32 %v1844, %v1872
      %1874 = vmatmul.bf16.gmra.mxu0 %v1476
      %v1875 = vpop.f32.mrf.mxu0
      %v1876 = vadd.f32 %v1847, %v1875
      %v1877 = vpop.f32.mrf.mxu0
      %v1878 = vadd.f32 %v1849, %v1877
      %1879 = vmatmul.bf16.gmra.mxu0 %v1479
      %v1880 = vpop.f32.mrf.mxu0
      %v1881 = vadd.f32 %v1852, %v1880
      %v1882 = vpop.f32.mrf.mxu0
      %v1883 = vadd.f32 %v1854, %v1882
      %1884 = vmatmul.bf16.gmra.mxu0 %v1482
      %v1885 = vpop.f32.mrf.mxu0
      %v1886 = vadd.f32 %v1857, %v1885
      %v1887 = vpop.f32.mrf.mxu0
      %v1888 = vadd.f32 %v1859, %v1887
      %1889 = vdwg.mxu0
      %1890 = vst.msk [vmem:[%s255] sm:$0xff] %vm1471, %v1871
      %1891 = vst.msk [vmem:[%s255 + $0x8] sm:$0xff] %vm1471, %v1873
      %1892 = vst.msk [vmem:[%s255 + $0x10] sm:$0xff] %vm1471, %v1876
      %1893 = vst.msk [vmem:[%s255 + $0x18] sm:$0xff] %vm1471, %v1878
      %1894 = vst.msk [vmem:[%s255 + $0x20] sm:$0xff] %vm1471, %v1881
      %1895 = vst.msk [vmem:[%s255 + $0x28] sm:$0xff] %vm1471, %v1883
      %1896 = vst.msk [vmem:[%s255 + $0x30] sm:$0xff] %vm1471, %v1886
      %1897 = vst.msk [vmem:[%s255 + $0x38] sm:$0xff] %vm1471, %v1888
      %v1898 = vsel %vm1471, %v1871, 0.0
      %1899 = vadd.xlane.f32.xlu0 %v1898
      %v1900 = vpop.xlane.xlu0 %1899
      %v1901 = vsel %vm1471, %v1873, 0.0
      %1902 = vadd.xlane.f32.xlu0 %v1901
      %v1903 = vpop.xlane.xlu0 %1902
      %v1904 = vsel %vm1471, %v1876, 0.0
      %1905 = vadd.xlane.f32.xlu0 %v1904
      %v1906 = vpop.xlane.xlu0 %1905
      %v1907 = vsel %vm1471, %v1878, 0.0
      %1908 = vadd.xlane.f32.xlu0 %v1907
      %v1909 = vpop.xlane.xlu0 %1908
      %v1910 = vsel %vm1471, %v1881, 0.0
      %1911 = vadd.xlane.f32.xlu0 %v1910
      %v1912 = vpop.xlane.xlu0 %1911
      %v1913 = vsel %vm1471, %v1883, 0.0
      %1914 = vadd.xlane.f32.xlu0 %v1913
      %v1915 = vpop.xlane.xlu0 %1914
      %v1916 = vsel %vm1471, %v1886, 0.0
      %1917 = vadd.xlane.f32.xlu0 %v1916
      %v1918 = vpop.xlane.xlu0 %1917
      %v1919 = vsel %vm1471, %v1888, 0.0
      %1920 = vadd.xlane.f32.xlu0 %v1919
      %v1921 = vpop.xlane.xlu0 %1920
      %vm1922 = vcmask 7168
      %1923 = vst.msk [vmem:[%s264] sm:$0xff] %vm1922, %v1900
      %1924 = vst.msk [vmem:[%s264 + $0x8] sm:$0xff] %vm1922, %v1903
      %1925 = vst.msk [vmem:[%s264 + $0x10] sm:$0xff] %vm1922, %v1906
      %1926 = vst.msk [vmem:[%s264 + $0x18] sm:$0xff] %vm1922, %v1909
      %1927 = vst.msk [vmem:[%s264 + $0x20] sm:$0xff] %vm1922, %v1912
      %1928 = vst.msk [vmem:[%s264 + $0x28] sm:$0xff] %vm1922, %v1915
      %1929 = vst.msk [vmem:[%s264 + $0x30] sm:$0xff] %vm1922, %v1918
      %1930 = vst.msk [vmem:[%s264 + $0x38] sm:$0xff] %vm1922, %v1921
      %v1931 = vmul.f32 %v1871, %v1871
      %v1932 = vmul.f32 %v1873, %v1873
      %v1933 = vmul.f32 %v1876, %v1876
      %v1934 = vmul.f32 %v1878, %v1878
      %v1935 = vmul.f32 %v1881, %v1881
      %v1936 = vmul.f32 %v1883, %v1883
      %v1937 = vmul.f32 %v1886, %v1886
      %v1938 = vmul.f32 %v1888, %v1888
      %v1939 = vsel %vm1471, %v1931, 0.0
      %1940 = vadd.xlane.f32.xlu0 %v1939
      %v1941 = vpop.xlane.xlu0 %1940
      %v1942 = vsel %vm1471, %v1932, 0.0
      %1943 = vadd.xlane.f32.xlu0 %v1942
      %v1944 = vpop.xlane.xlu0 %1943
      %v1945 = vsel %vm1471, %v1933, 0.0
      %1946 = vadd.xlane.f32.xlu0 %v1945
      %v1947 = vpop.xlane.xlu0 %1946
      %v1948 = vsel %vm1471, %v1934, 0.0
      %1949 = vadd.xlane.f32.xlu0 %v1948
      %v1950 = vpop.xlane.xlu0 %1949
      %v1951 = vsel %vm1471, %v1935, 0.0
      %1952 = vadd.xlane.f32.xlu0 %v1951
      %v1953 = vpop.xlane.xlu0 %1952
      %v1954 = vsel %vm1471, %v1936, 0.0
      %1955 = vadd.xlane.f32.xlu0 %v1954
      %v1956 = vpop.xlane.xlu0 %1955
      %v1957 = vsel %vm1471, %v1937, 0.0
      %1958 = vadd.xlane.f32.xlu0 %v1957
      %v1959 = vpop.xlane.xlu0 %1958
      %v1960 = vsel %vm1471, %v1938, 0.0
      %1961 = vadd.xlane.f32.xlu0 %v1960
      %v1962 = vpop.xlane.xlu0 %1961
      %1963 = vst.msk [vmem:[%s273] sm:$0xff] %vm1922, %v1941
      %1964 = vst.msk [vmem:[%s273 + $0x8] sm:$0xff] %vm1922, %v1944
      %1965 = vst.msk [vmem:[%s273 + $0x10] sm:$0xff] %vm1922, %v1947
      %1966 = vst.msk [vmem:[%s273 + $0x18] sm:$0xff] %vm1922, %v1950
      %1967 = vst.msk [vmem:[%s273 + $0x20] sm:$0xff] %vm1922, %v1953
      %1968 = vst.msk [vmem:[%s273 + $0x28] sm:$0xff] %vm1922, %v1956
      %1969 = vst.msk [vmem:[%s273 + $0x30] sm:$0xff] %vm1922, %v1959
      %1970 = vst.msk [vmem:[%s273 + $0x38] sm:$0xff] %vm1922, %v1962
      %p1971 = scmp.lt.s32.totalorder %s20, 1
      %s1972 = scalar_select %p1971, %s20, 1
      %p1973 = scmp.lt.s32.totalorder %s21, 0
      %s1974 = scalar_select %p1973, %s21, 0
      %s1975 = smul.addr %s1972, 8
      %s1976 = sadd.s32 %s1974, %s1975
      %s1977 = smul.addr %s1976, 8
      %s1978 = scalar_lea.vmem %s2, %s1977
      %p1979 = scmp.lt.s32.totalorder %s20, 1
      %s1980 = scalar_select %p1979, %s20, 1
      %p1981 = scmp.lt.s32.totalorder %s21, 0
      %s1982 = scalar_select %p1981, %s21, 0
      %s1983 = smul.addr %s1982, 8
      %s1984 = smul.addr %s1980, 8
      %s1985 = sadd.s32 %s1983, %s1984
      %s1986 = smul.addr %s1985, 8
      %s1987 = scalar_lea.vmem %s3, %s1986
      %p1988 = scmp.lt.s32.totalorder %s20, 1
      %s1989 = scalar_select %p1988, %s20, 1
      %p1990 = scmp.lt.s32.totalorder %s21, 0
      %s1991 = scalar_select %p1990, %s21, 0
      %s1992 = smul.addr %s1991, 8
      %s1993 = smul.addr %s1989, 8
      %s1994 = sadd.s32 %s1992, %s1993
      %s1995 = smul.addr %s1994, 8
      %s1996 = scalar_lea.vmem %s4, %s1995
      // Predicated region
      $region29: #{haim_forward.4} parent=27 // pred_check
        %p1997 = pneg %p97
      $region30: #{haim_forward.4} parent=27 // pred_check_branch
        %1999 = sbr.rel (%p1997) target = $region32
      $region31: #{haim_forward.4} parent=27 // pred_region
        _
      $region32: #{haim_forward.4} parent=27 // pred_fallthru
        _
      // Predicated region
      $region33: #{haim_forward.4} parent=27 // pred_check
        %p2000 = pneg %p125
      $region34: #{haim_forward.4} parent=27 // pred_check_branch
        %2002 = sbr.rel (%p2000) target = $region36
      $region35: #{haim_forward.4} parent=27 // pred_region
        _
      $region36: #{haim_forward.4} parent=27 // pred_fallthru
        _
      // Predicated region
      $region37: #{haim_forward.4} parent=27 // pred_check
        %p2003 = pneg %p153
      $region38: #{haim_forward.4} parent=27 // pred_check_branch
        %2005 = sbr.rel (%p2003) target = $region40
      $region39: #{haim_forward.4} parent=27 // pred_region
        _
      $region40: #{haim_forward.4} parent=27 // pred_fallthru
        _
    $region28: #{haim_forward.4} parent=5 // pred_fallthru
      _
    %p2006 = scmp.le.s32.totalorder 2, %s11
    // Predicated region
    $region41: #{haim_forward.4} parent=5 // pred_check
      %p2007 = pneg %p2006
    $region42: #{haim_forward.4} parent=5 // pred_check_branch
      %2009 = sbr.rel (%p2007) target = $region44
    $region43: #{haim_forward.4} parent=5 // pred_region
      %s2010 = ssub.s32 %s11, 2
      // Predicated region
      $region45: #{haim_forward.4} parent=43 // pred_check
        %p2011 = pneg %p103
      $region46: #{haim_forward.4} parent=43 // pred_check_branch
        %2013 = sbr.rel (%p2011) target = $region48
      $region47: #{haim_forward.4} parent=43 // pred_region
        %p2014 = scmp.lt.s32.totalorder %s22, 1
        %s2015 = scalar_select %p2014, %s22, 1
        %p2016 = scmp.lt.s32.totalorder %s23, 0
        %s2017 = scalar_select %p2016, %s23, 0
        %s2018 = smul.addr %s2015, 8
        %s2019 = sadd.s32 %s2017, %s2018
        %s2020 = smul.addr %s2019, 8
        %s2021 = scalar_lea.vmem %s2, %s2020
      $region48: #{haim_forward.4} parent=43 // pred_fallthru
        _
      // Predicated region
      $region49: #{haim_forward.4} parent=43 // pred_check
        %p2022 = pneg %p131
      $region50: #{haim_forward.4} parent=43 // pred_check_branch
        %2024 = sbr.rel (%p2022) target = $region52
      $region51: #{haim_forward.4} parent=43 // pred_region
        %p2025 = scmp.lt.s32.totalorder %s22, 1
        %s2026 = scalar_select %p2025, %s22, 1
        %p2027 = scmp.lt.s32.totalorder %s23, 0
        %s2028 = scalar_select %p2027, %s23, 0
        %s2029 = smul.addr %s2028, 8
        %s2030 = smul.addr %s2026, 8
        %s2031 = sadd.s32 %s2029, %s2030
        %s2032 = smul.addr %s2031, 8
        %s2033 = scalar_lea.vmem %s3, %s2032
      $region52: #{haim_forward.4} parent=43 // pred_fallthru
        _
      // Predicated region
      $region53: #{haim_forward.4} parent=43 // pred_check
        %p2034 = pneg %p159
      $region54: #{haim_forward.4} parent=43 // pred_check_branch
        %2036 = sbr.rel (%p2034) target = $region56
      $region55: #{haim_forward.4} parent=43 // pred_region
        %p2037 = scmp.lt.s32.totalorder %s22, 1
        %s2038 = scalar_select %p2037, %s22, 1
        %p2039 = scmp.lt.s32.totalorder %s23, 0
        %s2040 = scalar_select %p2039, %s23, 0
        %s2041 = smul.addr %s2040, 8
        %s2042 = smul.addr %s2038, 8
        %s2043 = sadd.s32 %s2041, %s2042
        %s2044 = smul.addr %s2043, 8
        %s2045 = scalar_lea.vmem %s4, %s2044
      $region56: #{haim_forward.4} parent=43 // pred_fallthru
        _
    $region44: #{haim_forward.4} parent=5 // pred_fallthru
      _
  $region6: #{haim_forward.4} parent=0 // loop_footer
    %s15 = sadd.s32 1, %s11
  $region7: #{haim_forward.4} parent=0 // loop_footer_branch
    %10 = sbr.rel target = $region3
  $region8: #{haim_forward.4} parent=0 // loop_exit
    _

// kernel: haim_forward.5
$region0: #{haim_forward.5}
  #allocation0 [shape = 'u32[]', space=smem, size = 0x4, offset = 0x4, fixed_abs, tag = 'smem constant byte address 0x4 - core index']
  #allocation1 [shape = 'u32[72,128]{1,0:T(1,128)}', space=vmem, size = 0x9000, scoped, tag = 'internal scratch']
  #allocation2 [shape = 'f32[1,1]{1,0:T(1,128)S(1)}', space=vmem, size = 0x200, scoped, tag = 'scoped memory for haim_forward.5']
  %s0 = inlined_call_operand.vmem [shape: f32[2,64,64], index: 0, kind: input, shape index: {}]
  %s1 = inlined_call_operand.vmem [shape: f32[64,1], index: 1, kind: input, shape index: {}]
  %s2 = inlined_call_operand.vmem [shape: f32[64,1], index: 2, kind: input, shape index: {}]
  %s3 = inlined_call_operand.vmem [shape: f32[64,1], index: 3, kind: input, shape index: {}]
  %s4 = inlined_call_operand.<no memory space> [shape: f32[1,1], index: 4, kind: input, shape index: {}]
  %s5 = inlined_call_operand.vmem [shape: f32[16,64], index: 5, kind: input, shape index: {}]
  %s6 = inlined_call_operand.vmem [shape: f32[16,1], index: 6, kind: input, shape index: {}]
  %s7 = inlined_call_operand.vmem [shape: f32[16,1], index: 7, kind: input, shape index: {}]
  %s8 = inlined_call_operand.vmem [shape: f32[16,1], index: 8, kind: input, shape index: {}]
  %s9 = inlined_call_operand.vmem [shape: f32[64,16], index: 9, kind: input, shape index: {}]
  %s10 = inlined_call_operand.vmem [shape: f32[64,1], index: 10, kind: input, shape index: {}]
  %s11 = inlined_call_operand.vmem [shape: f32[2,64,64], index: 11, kind: output, shape index: {}]
  %s12 = sld [smem:[#allocation0]]
  $region77: #{haim_forward.5} parent=0
    _
  %s14 = ssub.s32 1, %s12
  %s15 = scalar_select 0, %s14, %s12
  %v16 = vstv %s4
  %17 = vst [vmem:[#allocation2] sm:$0x1] %v16
  loop: start=0, step=1, limit=4
  $region2: #{haim_forward.5} parent=0 // loop_pre_header
    _
  $region3: #{haim_forward.5} parent=0 // loop_header
    %s19 = sphi 0, %s23
    %p20 = scmp.ge.s32.totalorder %s19, 4
    %s29 = sphi 0, %s31
    %s32 = sphi 0, %s29
    %s33 = sphi 0, %s32
    %s49 = sphi 0, %s33
    %s53 = sphi 0, %s53
    %s55 = sphi 0, %s53
    %s56 = sphi 0, %s55
    %s70 = sphi 0, %s56
    %s74 = sphi 0, %s74
    %s76 = sphi 0, %s74
    %s77 = sphi 0, %s76
    %s91 = sphi 0, %s77
    %s95 = sphi 0, %s95
    %s97 = sphi 0, %s95
    %s98 = sphi 0, %s97
    %s112 = sphi 0, %s98
    %s116 = sphi 0, %s116
    %s118 = sphi 0, %s116
    %s119 = sphi 0, %s118
    %s133 = sphi 0, %s119
    %s137 = sphi 0, %s137
    %s139 = sphi 0, %s137
    %s140 = sphi 0, %s139
    %s154 = sphi 0, %s140
    %s158 = sphi 0, %s158
    %s160 = sphi 0, %s158
    %s161 = sphi 0, %s160
    %s175 = sphi 0, %s161
    %s179 = sphi 0, %s179
    %s181 = sphi 0, %s179
    %s182 = sphi 0, %s181
    %s196 = sphi 0, %s182
    %s200 = sphi 0, %s200
    %s202 = sphi 0, %s200
    %s203 = sphi 0, %s202
    %s217 = sphi 0, %s203
    %s221 = sphi 0, %s221
    %s223 = sphi 0, %s221
    %s224 = sphi 0, %s223
    %s238 = sphi 0, %s224
    %s242 = sphi 0, %s242
    %s244 = sphi 0, %s242
    %s245 = sphi 0, %s244
    %s259 = sphi 0, %s245
    %s265 = sphi 0, %s267
    %s268 = sphi 0, %s265
    %s269 = sphi 0, %s268
    %s285 = sphi 0, %s269
  $region4: #{haim_forward.5} parent=0 // loop_header_branch
    %22 = sbr.rel (%p20) target = $region8
  $region5: #{haim_forward.5} parent=0 // loop_body
    %s24 = ssub.s32 %s19, 1
    %s25 = ssub.s32 %s19, 2
    %s26 = sadd.s32 %s19, 1
    %s27 = ssub.s32 %s19, %s26
    %p28 = scmp.eq.s32.totalorder %s27, 0
    %s30 = sadd.s32 %s29, 1
    %s31 = scalar_select %p28, %s29, %s30
    %p34 = pneg %p28
    %p35 = scmp.eq.s32.totalorder %s19, 1
    %p36 = por %p34, %p35
    %p37 = scmp.ne.s32.totalorder %s29, %s32
    %p38 = scmp.eq.s32.totalorder %s19, 0
    %p39 = por %p37, %p38
    %p40 = scmp.ne.s32.totalorder %s29, %s32
    %p41 = scmp.eq.s32.totalorder %s24, 1
    %p42 = por %p40, %p41
    %p43 = scmp.ne.s32.totalorder %s32, %s33
    %p44 = scmp.eq.s32.totalorder %s24, 0
    %p45 = por %p43, %p44
    %p46 = scmp.ne.s32.totalorder %s32, %s33
    %p47 = scmp.eq.s32.totalorder %s25, 1
    %p48 = por %p46, %p47
    %p50 = scmp.ne.s32.totalorder %s33, %s49
    %p51 = scmp.eq.s32.totalorder %s25, 0
    %p52 = por %p50, %p51
    %s54 = sadd.s32 %s53, 1
    %p57 = scmp.eq.s32.totalorder %s19, 1
    %p58 = scmp.ne.s32.totalorder %s53, %s55
    %p59 = scmp.eq.s32.totalorder %s19, 0
    %p60 = por %p58, %p59
    %p61 = scmp.ne.s32.totalorder %s53, %s55
    %p62 = scmp.eq.s32.totalorder %s24, 1
    %p63 = por %p61, %p62
    %p64 = scmp.ne.s32.totalorder %s55, %s56
    %p65 = scmp.eq.s32.totalorder %s24, 0
    %p66 = por %p64, %p65
    %p67 = scmp.ne.s32.totalorder %s55, %s56
    %p68 = scmp.eq.s32.totalorder %s25, 1
    %p69 = por %p67, %p68
    %p71 = scmp.ne.s32.totalorder %s56, %s70
    %p72 = scmp.eq.s32.totalorder %s25, 0
    %p73 = por %p71, %p72
    %s75 = sadd.s32 %s74, 1
    %p78 = scmp.eq.s32.totalorder %s19, 1
    %p79 = scmp.ne.s32.totalorder %s74, %s76
    %p80 = scmp.eq.s32.totalorder %s19, 0
    %p81 = por %p79, %p80
    %p82 = scmp.ne.s32.totalorder %s74, %s76
    %p83 = scmp.eq.s32.totalorder %s24, 1
    %p84 = por %p82, %p83
    %p85 = scmp.ne.s32.totalorder %s76, %s77
    %p86 = scmp.eq.s32.totalorder %s24, 0
    %p87 = por %p85, %p86
    %p88 = scmp.ne.s32.totalorder %s76, %s77
    %p89 = scmp.eq.s32.totalorder %s25, 1
    %p90 = por %p88, %p89
    %p92 = scmp.ne.s32.totalorder %s77, %s91
    %p93 = scmp.eq.s32.totalorder %s25, 0
    %p94 = por %p92, %p93
    %s96 = sadd.s32 %s95, 1
    %p99 = scmp.eq.s32.totalorder %s19, 1
    %p100 = scmp.ne.s32.totalorder %s95, %s97
    %p101 = scmp.eq.s32.totalorder %s19, 0
    %p102 = por %p100, %p101
    %p103 = scmp.ne.s32.totalorder %s95, %s97
    %p104 = scmp.eq.s32.totalorder %s24, 1
    %p105 = por %p103, %p104
    %p106 = scmp.ne.s32.totalorder %s97, %s98
    %p107 = scmp.eq.s32.totalorder %s24, 0
    %p108 = por %p106, %p107
    %p109 = scmp.ne.s32.totalorder %s97, %s98
    %p110 = scmp.eq.s32.totalorder %s25, 1
    %p111 = por %p109, %p110
    %p113 = scmp.ne.s32.totalorder %s98, %s112
    %p114 = scmp.eq.s32.totalorder %s25, 0
    %p115 = por %p113, %p114
    %s117 = sadd.s32 %s116, 1
    %p120 = scmp.eq.s32.totalorder %s19, 1
    %p121 = scmp.ne.s32.totalorder %s116, %s118
    %p122 = scmp.eq.s32.totalorder %s19, 0
    %p123 = por %p121, %p122
    %p124 = scmp.ne.s32.totalorder %s116, %s118
    %p125 = scmp.eq.s32.totalorder %s24, 1
    %p126 = por %p124, %p125
    %p127 = scmp.ne.s32.totalorder %s118, %s119
    %p128 = scmp.eq.s32.totalorder %s24, 0
    %p129 = por %p127, %p128
    %p130 = scmp.ne.s32.totalorder %s118, %s119
    %p131 = scmp.eq.s32.totalorder %s25, 1
    %p132 = por %p130, %p131
    %p134 = scmp.ne.s32.totalorder %s119, %s133
    %p135 = scmp.eq.s32.totalorder %s25, 0
    %p136 = por %p134, %p135
    %s138 = sadd.s32 %s137, 1
    %p141 = scmp.eq.s32.totalorder %s19, 1
    %p142 = scmp.ne.s32.totalorder %s137, %s139
    %p143 = scmp.eq.s32.totalorder %s19, 0
    %p144 = por %p142, %p143
    %p145 = scmp.ne.s32.totalorder %s137, %s139
    %p146 = scmp.eq.s32.totalorder %s24, 1
    %p147 = por %p145, %p146
    %p148 = scmp.ne.s32.totalorder %s139, %s140
    %p149 = scmp.eq.s32.totalorder %s24, 0
    %p150 = por %p148, %p149
    %p151 = scmp.ne.s32.totalorder %s139, %s140
    %p152 = scmp.eq.s32.totalorder %s25, 1
    %p153 = por %p151, %p152
    %p155 = scmp.ne.s32.totalorder %s140, %s154
    %p156 = scmp.eq.s32.totalorder %s25, 0
    %p157 = por %p155, %p156
    %s159 = sadd.s32 %s158, 1
    %p162 = scmp.eq.s32.totalorder %s19, 1
    %p163 = scmp.ne.s32.totalorder %s158, %s160
    %p164 = scmp.eq.s32.totalorder %s19, 0
    %p165 = por %p163, %p164
    %p166 = scmp.ne.s32.totalorder %s158, %s160
    %p167 = scmp.eq.s32.totalorder %s24, 1
    %p168 = por %p166, %p167
    %p169 = scmp.ne.s32.totalorder %s160, %s161
    %p170 = scmp.eq.s32.totalorder %s24, 0
    %p171 = por %p169, %p170
    %p172 = scmp.ne.s32.totalorder %s160, %s161
    %p173 = scmp.eq.s32.totalorder %s25, 1
    %p174 = por %p172, %p173
    %p176 = scmp.ne.s32.totalorder %s161, %s175
    %p177 = scmp.eq.s32.totalorder %s25, 0
    %p178 = por %p176, %p177
    %s180 = sadd.s32 %s179, 1
    %p183 = scmp.eq.s32.totalorder %s19, 1
    %p184 = scmp.ne.s32.totalorder %s179, %s181
    %p185 = scmp.eq.s32.totalorder %s19, 0
    %p186 = por %p184, %p185
    %p187 = scmp.ne.s32.totalorder %s179, %s181
    %p188 = scmp.eq.s32.totalorder %s24, 1
    %p189 = por %p187, %p188
    %p190 = scmp.ne.s32.totalorder %s181, %s182
    %p191 = scmp.eq.s32.totalorder %s24, 0
    %p192 = por %p190, %p191
    %p193 = scmp.ne.s32.totalorder %s181, %s182
    %p194 = scmp.eq.s32.totalorder %s25, 1
    %p195 = por %p193, %p194
    %p197 = scmp.ne.s32.totalorder %s182, %s196
    %p198 = scmp.eq.s32.totalorder %s25, 0
    %p199 = por %p197, %p198
    %s201 = sadd.s32 %s200, 1
    %p204 = scmp.eq.s32.totalorder %s19, 1
    %p205 = scmp.ne.s32.totalorder %s200, %s202
    %p206 = scmp.eq.s32.totalorder %s19, 0
    %p207 = por %p205, %p206
    %p208 = scmp.ne.s32.totalorder %s200, %s202
    %p209 = scmp.eq.s32.totalorder %s24, 1
    %p210 = por %p208, %p209
    %p211 = scmp.ne.s32.totalorder %s202, %s203
    %p212 = scmp.eq.s32.totalorder %s24, 0
    %p213 = por %p211, %p212
    %p214 = scmp.ne.s32.totalorder %s202, %s203
    %p215 = scmp.eq.s32.totalorder %s25, 1
    %p216 = por %p214, %p215
    %p218 = scmp.ne.s32.totalorder %s203, %s217
    %p219 = scmp.eq.s32.totalorder %s25, 0
    %p220 = por %p218, %p219
    %s222 = sadd.s32 %s221, 1
    %p225 = scmp.eq.s32.totalorder %s19, 1
    %p226 = scmp.ne.s32.totalorder %s221, %s223
    %p227 = scmp.eq.s32.totalorder %s19, 0
    %p228 = por %p226, %p227
    %p229 = scmp.ne.s32.totalorder %s221, %s223
    %p230 = scmp.eq.s32.totalorder %s24, 1
    %p231 = por %p229, %p230
    %p232 = scmp.ne.s32.totalorder %s223, %s224
    %p233 = scmp.eq.s32.totalorder %s24, 0
    %p234 = por %p232, %p233
    %p235 = scmp.ne.s32.totalorder %s223, %s224
    %p236 = scmp.eq.s32.totalorder %s25, 1
    %p237 = por %p235, %p236
    %p239 = scmp.ne.s32.totalorder %s224, %s238
    %p240 = scmp.eq.s32.totalorder %s25, 0
    %p241 = por %p239, %p240
    %s243 = sadd.s32 %s242, 1
    %p246 = scmp.eq.s32.totalorder %s19, 1
    %p247 = scmp.ne.s32.totalorder %s242, %s244
    %p248 = scmp.eq.s32.totalorder %s19, 0
    %p249 = por %p247, %p248
    %p250 = scmp.ne.s32.totalorder %s242, %s244
    %p251 = scmp.eq.s32.totalorder %s24, 1
    %p252 = por %p250, %p251
    %p253 = scmp.ne.s32.totalorder %s244, %s245
    %p254 = scmp.eq.s32.totalorder %s24, 0
    %p255 = por %p253, %p254
    %p256 = scmp.ne.s32.totalorder %s244, %s245
    %p257 = scmp.eq.s32.totalorder %s25, 1
    %p258 = por %p256, %p257
    %p260 = scmp.ne.s32.totalorder %s245, %s259
    %p261 = scmp.eq.s32.totalorder %s25, 0
    %p262 = por %p260, %p261
    %s263 = ssub.s32 %s19, %s26
    %p264 = scmp.eq.s32.totalorder %s263, 0
    %s266 = sadd.s32 %s265, 1
    %s267 = scalar_select %p264, %s265, %s266
    %p270 = pneg %p264
    %p271 = scmp.eq.s32.totalorder %s19, 1
    %p272 = por %p270, %p271
    %p273 = scmp.ne.s32.totalorder %s265, %s268
    %p274 = scmp.eq.s32.totalorder %s19, 0
    %p275 = por %p273, %p274
    %p276 = scmp.ne.s32.totalorder %s265, %s268
    %p277 = scmp.eq.s32.totalorder %s24, 1
    %p278 = por %p276, %p277
    %p279 = scmp.ne.s32.totalorder %s268, %s269
    %p280 = scmp.eq.s32.totalorder %s24, 0
    %p281 = por %p279, %p280
    %p282 = scmp.ne.s32.totalorder %s268, %s269
    %p283 = scmp.eq.s32.totalorder %s25, 1
    %p284 = por %p282, %p283
    %p286 = scmp.ne.s32.totalorder %s269, %s285
    %p287 = scmp.eq.s32.totalorder %s25, 0
    %p288 = por %p286, %p287
    %p289 = scmp.le.s32.totalorder 1, %s19
    %p290 = scmp.lt.s32.totalorder %s19, 3
    %p291 = pnand %p289, %p290
    %p292 = pneg %p291
    // Predicated region
    $region9: #{haim_forward.5} parent=5 // pred_check
      _
    $region10: #{haim_forward.5} parent=5 // pred_check_branch
      %294 = sbr.rel (%p291) target = $region12
    $region11: #{haim_forward.5} parent=5 // pred_region
      %s295 = ssub.s32 %s19, 1
      // Predicated region
      $region13: #{haim_forward.5} parent=11 // pred_check
        %p296 = pneg %p66
      $region14: #{haim_forward.5} parent=11 // pred_check_branch
        %298 = sbr.rel (%p296) target = $region16
      $region15: #{haim_forward.5} parent=11 // pred_region
        _
      $region16: #{haim_forward.5} parent=11 // pred_fallthru
        _
      // Predicated region
      $region17: #{haim_forward.5} parent=11 // pred_check
        %p299 = pneg %p87
      $region18: #{haim_forward.5} parent=11 // pred_check_branch
        %301 = sbr.rel (%p299) target = $region20
      $region19: #{haim_forward.5} parent=11 // pred_region
        _
      $region20: #{haim_forward.5} parent=11 // pred_fallthru
        _
      // Predicated region
      $region21: #{haim_forward.5} parent=11 // pred_check
        %p302 = pneg %p108
      $region22: #{haim_forward.5} parent=11 // pred_check_branch
        %304 = sbr.rel (%p302) target = $region24
      $region23: #{haim_forward.5} parent=11 // pred_region
        _
      $region24: #{haim_forward.5} parent=11 // pred_fallthru
        _
      // Predicated region
      $region25: #{haim_forward.5} parent=11 // pred_check
        %p305 = pneg %p129
      $region26: #{haim_forward.5} parent=11 // pred_check_branch
        %307 = sbr.rel (%p305) target = $region28
      $region27: #{haim_forward.5} parent=11 // pred_region
        _
      $region28: #{haim_forward.5} parent=11 // pred_fallthru
        _
      // Predicated region
      $region29: #{haim_forward.5} parent=11 // pred_check
        %p308 = pneg %p150
      $region30: #{haim_forward.5} parent=11 // pred_check_branch
        %310 = sbr.rel (%p308) target = $region32
      $region31: #{haim_forward.5} parent=11 // pred_region
        _
      $region32: #{haim_forward.5} parent=11 // pred_fallthru
        _
      // Predicated region
      $region33: #{haim_forward.5} parent=11 // pred_check
        %p311 = pneg %p171
      $region34: #{haim_forward.5} parent=11 // pred_check_branch
        %313 = sbr.rel (%p311) target = $region36
      $region35: #{haim_forward.5} parent=11 // pred_region
        _
      $region36: #{haim_forward.5} parent=11 // pred_fallthru
        _
      // Predicated region
      $region37: #{haim_forward.5} parent=11 // pred_check
        %p314 = pneg %p192
      $region38: #{haim_forward.5} parent=11 // pred_check_branch
        %316 = sbr.rel (%p314) target = $region40
      $region39: #{haim_forward.5} parent=11 // pred_region
        _
      $region40: #{haim_forward.5} parent=11 // pred_fallthru
        _
      // Predicated region
      $region41: #{haim_forward.5} parent=11 // pred_check
        %p317 = pneg %p213
      $region42: #{haim_forward.5} parent=11 // pred_check_branch
        %319 = sbr.rel (%p317) target = $region44
      $region43: #{haim_forward.5} parent=11 // pred_region
        _
      $region44: #{haim_forward.5} parent=11 // pred_fallthru
        _
      // Predicated region
      $region45: #{haim_forward.5} parent=11 // pred_check
        %p320 = pneg %p234
      $region46: #{haim_forward.5} parent=11 // pred_check_branch
        %322 = sbr.rel (%p320) target = $region48
      $region47: #{haim_forward.5} parent=11 // pred_region
        _
      $region48: #{haim_forward.5} parent=11 // pred_fallthru
        _
      // Predicated region
      $region49: #{haim_forward.5} parent=11 // pred_check
        %p323 = pneg %p255
      $region50: #{haim_forward.5} parent=11 // pred_check_branch
        %325 = sbr.rel (%p323) target = $region52
      $region51: #{haim_forward.5} parent=11 // pred_region
        _
      $region52: #{haim_forward.5} parent=11 // pred_fallthru
        _
    $region12: #{haim_forward.5} parent=5 // pred_fallthru
      _
    %p326 = scmp.lt.s32.totalorder %s19, 2
    // Predicated region
    $region53: #{haim_forward.5} parent=5 // pred_check
      %p327 = pneg %p326
    $region54: #{haim_forward.5} parent=5 // pred_check_branch
      %329 = sbr.rel (%p327) target = $region56
    $region55: #{haim_forward.5} parent=5 // pred_region
      // Predicated region
      $region57: #{haim_forward.5} parent=55 // pred_check
        %p330 = pneg %p39
      $region58: #{haim_forward.5} parent=55 // pred_check_branch
        %332 = sbr.rel (%p330) target = $region60
      $region59: #{haim_forward.5} parent=55 // pred_region
        %p333 = scmp.lt.s32.totalorder %s19, 1
        %s334 = scalar_select %p333, %s19, 1
        %s335 = smul.addr %s334, 8
        %s336 = smul.addr %s335, 8
        %s337 = scalar_lea.vmem %s0, %s336
      $region60: #{haim_forward.5} parent=55 // pred_fallthru
        _
    $region56: #{haim_forward.5} parent=5 // pred_fallthru
      _
    %p338 = scmp.le.s32.totalorder 1, %s19
    %p339 = scmp.lt.s32.totalorder %s19, 3
    %p340 = pnand %p338, %p339
    %p341 = pneg %p340
    // Predicated region
    $region61: #{haim_forward.5} parent=5 // pred_check
      _
    $region62: #{haim_forward.5} parent=5 // pred_check_branch
      %343 = sbr.rel (%p340) target = $region64
    $region63: #{haim_forward.5} parent=5 // pred_region
      %s344 = ssub.s32 %s19, 1
      %p345 = scmp.lt.s32.totalorder %s24, 1
      %s346 = scalar_select %p345, %s24, 1
      %s347 = smul.addr %s346, 8
      %s348 = smul.addr %s347, 8
      %s349 = scalar_lea.vmem %s0, %s348
      %p350 = pneg %p45
      %p351 = pneg %p42
      %p352 = pneg %p66
      %p353 = pneg %p63
      %p354 = pneg %p87
      %p355 = pneg %p84
      %p356 = pneg %p108
      %p357 = pneg %p105
      %p358 = pneg %p129
      %p359 = pneg %p126
      %p360 = pneg %p150
      %p361 = pneg %p147
      %p362 = pneg %p171
      %p363 = pneg %p168
      %p364 = pneg %p192
      %p365 = pneg %p189
      %p366 = pneg %p213
      %p367 = pneg %p210
      %p368 = pneg %p234
      %p369 = pneg %p231
      %p370 = pneg %p255
      %p371 = pneg %p252
      %p372 = pneg %p281
      %p373 = pneg %p278
      %p374 = scmp.lt.s32.totalorder %s24, 1
      %s375 = scalar_select %p374, %s24, 1
      %s376 = smul.addr %s375, 8
      %s377 = smul.addr %s376, 8
      %s378 = scalar_lea.vmem %s11, %s377
      %p379 = scmp.lt.s32.totalorder %s24, 1
      %s380 = scalar_select %p379, %s24, 1
      %s381 = smul.addr %s380, 8
      %s382 = smul.addr %s381, 8
      %s383 = scalar_lea.vmem %s0, %s382
      %p384 = scmp.lt.s32.totalorder %s24, 1
      %s385 = scalar_select %p384, %s24, 1
      %s386 = smul.addr %s385, 8
      %s387 = smul.addr %s386, 8
      %s388 = scalar_lea.vmem %s11, %s387
      %v389 = vld [vmem:[%s383] sm:$0xff]
      %v390 = vld [vmem:[%s383 + $0x8] sm:$0xff]
      %v391 = vld [vmem:[%s383 + $0x10] sm:$0xff]
      %v392 = vld [vmem:[%s383 + $0x18] sm:$0xff]
      %v393 = vld [vmem:[%s383 + $0x20] sm:$0xff]
      %v394 = vld [vmem:[%s383 + $0x28] sm:$0xff]
      %v395 = vld [vmem:[%s383 + $0x30] sm:$0xff]
      %v396 = vld [vmem:[%s383 + $0x38] sm:$0xff]
      %v397 = vld [vmem:[%s1] sm:$0xff]
      %v398 = vld [vmem:[%s1 + $0x8] sm:$0xff]
      %v399 = vld [vmem:[%s1 + $0x10] sm:$0xff]
      %v400 = vld [vmem:[%s1 + $0x18] sm:$0xff]
      %v401 = vld [vmem:[%s1 + $0x20] sm:$0xff]
      %v402 = vld [vmem:[%s1 + $0x28] sm:$0xff]
      %v403 = vld [vmem:[%s1 + $0x30] sm:$0xff]
      %v404 = vld [vmem:[%s1 + $0x38] sm:$0xff]
      %406 = vset.pattern.permute.xlu0 0
      %407 = vperm.xlu0 %406, %v397
      %v408 = vpop.permute.xlu0 %407
      %411 = vset.pattern.permute.xlu0 0
      %412 = vperm.xlu0 %411, %v398
      %v413 = vpop.permute.xlu0 %412
      %416 = vset.pattern.permute.xlu0 0
      %417 = vperm.xlu0 %416, %v399
      %v418 = vpop.permute.xlu0 %417
      %421 = vset.pattern.permute.xlu0 0
      %422 = vperm.xlu0 %421, %v400
      %v423 = vpop.permute.xlu0 %422
      %426 = vset.pattern.permute.xlu0 0
      %427 = vperm.xlu0 %426, %v401
      %v428 = vpop.permute.xlu0 %427
      %431 = vset.pattern.permute.xlu0 0
      %432 = vperm.xlu0 %431, %v402
      %v433 = vpop.permute.xlu0 %432
      %436 = vset.pattern.permute.xlu0 0
      %437 = vperm.xlu0 %436, %v403
      %v438 = vpop.permute.xlu0 %437
      %441 = vset.pattern.permute.xlu0 0
      %442 = vperm.xlu0 %441, %v404
      %v443 = vpop.permute.xlu0 %442
      %v445 = vmul.f32 %v389, %v408
      %v446 = vmul.f32 %v390, %v413
      %v447 = vmul.f32 %v391, %v418
      %v448 = vmul.f32 %v392, %v423
      %v449 = vmul.f32 %v393, %v428
      %v450 = vmul.f32 %v394, %v433
      %v451 = vmul.f32 %v395, %v438
      %v452 = vmul.f32 %v396, %v443
      %v453 = vld [vmem:[%s2] sm:$0xff]
      %v454 = vld [vmem:[%s2 + $0x8] sm:$0xff]
      %v455 = vld [vmem:[%s2 + $0x10] sm:$0xff]
      %v456 = vld [vmem:[%s2 + $0x18] sm:$0xff]
      %v457 = vld [vmem:[%s2 + $0x20] sm:$0xff]
      %v458 = vld [vmem:[%s2 + $0x28] sm:$0xff]
      %v459 = vld [vmem:[%s2 + $0x30] sm:$0xff]
      %v460 = vld [vmem:[%s2 + $0x38] sm:$0xff]
      %462 = vset.pattern.permute.xlu0 0
      %463 = vperm.xlu0 %462, %v453
      %v464 = vpop.permute.xlu0 %463
      %467 = vset.pattern.permute.xlu0 0
      %468 = vperm.xlu0 %467, %v454
      %v469 = vpop.permute.xlu0 %468
      %472 = vset.pattern.permute.xlu0 0
      %473 = vperm.xlu0 %472, %v455
      %v474 = vpop.permute.xlu0 %473
      %477 = vset.pattern.permute.xlu0 0
      %478 = vperm.xlu0 %477, %v456
      %v479 = vpop.permute.xlu0 %478
      %482 = vset.pattern.permute.xlu0 0
      %483 = vperm.xlu0 %482, %v457
      %v484 = vpop.permute.xlu0 %483
      %487 = vset.pattern.permute.xlu0 0
      %488 = vperm.xlu0 %487, %v458
      %v489 = vpop.permute.xlu0 %488
      %492 = vset.pattern.permute.xlu0 0
      %493 = vperm.xlu0 %492, %v459
      %v494 = vpop.permute.xlu0 %493
      %497 = vset.pattern.permute.xlu0 0
      %498 = vperm.xlu0 %497, %v460
      %v499 = vpop.permute.xlu0 %498
      %v501 = vadd.f32 %v445, %v464
      %v502 = vadd.f32 %v446, %v469
      %v503 = vadd.f32 %v447, %v474
      %v504 = vadd.f32 %v448, %v479
      %v505 = vadd.f32 %v449, %v484
      %v506 = vadd.f32 %v450, %v489
      %v507 = vadd.f32 %v451, %v494
      %v508 = vadd.f32 %v452, %v499
      %v509 = vmax.f32 %v501, 0.0
      %v510 = vmax.f32 %v502, 0.0
      %v511 = vmax.f32 %v503, 0.0
      %v512 = vmax.f32 %v504, 0.0
      %v513 = vmax.f32 %v505, 0.0
      %v514 = vmax.f32 %v506, 0.0
      %v515 = vmax.f32 %v507, 0.0
      %v516 = vmax.f32 %v508, 0.0
      %v517 = vld [vmem:[%s3] sm:$0xff]
      %v518 = vld [vmem:[%s3 + $0x8] sm:$0xff]
      %v519 = vld [vmem:[%s3 + $0x10] sm:$0xff]
      %v520 = vld [vmem:[%s3 + $0x18] sm:$0xff]
      %v521 = vld [vmem:[%s3 + $0x20] sm:$0xff]
      %v522 = vld [vmem:[%s3 + $0x28] sm:$0xff]
      %v523 = vld [vmem:[%s3 + $0x30] sm:$0xff]
      %v524 = vld [vmem:[%s3 + $0x38] sm:$0xff]
      %526 = vset.pattern.permute.xlu0 0
      %527 = vperm.xlu0 %526, %v517
      %v528 = vpop.permute.xlu0 %527
      %531 = vset.pattern.permute.xlu0 0
      %532 = vperm.xlu0 %531, %v518
      %v533 = vpop.permute.xlu0 %532
      %536 = vset.pattern.permute.xlu0 0
      %537 = vperm.xlu0 %536, %v519
      %v538 = vpop.permute.xlu0 %537
      %541 = vset.pattern.permute.xlu0 0
      %542 = vperm.xlu0 %541, %v520
      %v543 = vpop.permute.xlu0 %542
      %546 = vset.pattern.permute.xlu0 0
      %547 = vperm.xlu0 %546, %v521
      %v548 = vpop.permute.xlu0 %547
      %551 = vset.pattern.permute.xlu0 0
      %552 = vperm.xlu0 %551, %v522
      %v553 = vpop.permute.xlu0 %552
      %556 = vset.pattern.permute.xlu0 0
      %557 = vperm.xlu0 %556, %v523
      %v558 = vpop.permute.xlu0 %557
      %561 = vset.pattern.permute.xlu0 0
      %562 = vperm.xlu0 %561, %v524
      %v563 = vpop.permute.xlu0 %562
      %v565 = vmul.f32 %v509, %v528
      %v566 = vmul.f32 %v510, %v533
      %v567 = vmul.f32 %v511, %v538
      %v568 = vmul.f32 %v512, %v543
      %v569 = vmul.f32 %v513, %v548
      %v570 = vmul.f32 %v514, %v553
      %v571 = vmul.f32 %v515, %v558
      %v572 = vmul.f32 %v516, %v563
      %vm573 = vcmask 523264
      %v574 = vsel %vm573, %v565, 0.0
      %v575 = vsel %vm573, %v566, 0.0
      %v576 = vadd.f32 %v574, %v575
      %v577 = vsel %vm573, %v567, 0.0
      %v578 = vadd.f32 %v576, %v577
      %v579 = vsel %vm573, %v568, 0.0
      %v580 = vadd.f32 %v578, %v579
      %v581 = vsel %vm573, %v569, 0.0
      %v582 = vadd.f32 %v580, %v581
      %v583 = vsel %vm573, %v570, 0.0
      %v584 = vadd.f32 %v582, %v583
      %v585 = vsel %vm573, %v571, 0.0
      %v586 = vadd.f32 %v584, %v585
      %v587 = vsel %vm573, %v572, 0.0
      %v588 = vadd.f32 %v586, %v587
      %v589 = vrot.slane %v588, 4
      %v590 = vadd.f32 %v588, %v589
      %v591 = vrot.slane %v590, 2
      %v592 = vadd.f32 %v590, %v591
      %v593 = vrot.slane %v592, 1
      %v594 = vadd.f32 %v592, %v593
      %v595 = vld [vmem:[#allocation2] sm:$0x1]
      %597 = vset.pattern.permute.xlu0 0
      %598 = vperm.xlu0 %597, %v595
      %v599 = vpop.permute.xlu0 %598
      %v601 = vperm.slane %v599, 0
      %v602 = vadd.f32 %v594, %v601
      %v603 = vsel %vm573, %v602, -inf
      %604 = vmax.xlane.f32.xlu0 %v603
      %v605 = vpop.xlane.xlu0 %604
      %v606 = vsub.f32 %v602, %v605
      %v607 = vmul.f32 %v606, 1.442695
      %v608 = vpow.pop %v607
      %v609 = vsel %vm573, %v608, 0.0
      %610 = vadd.xlane.f32.xlu0 %v609
      %v611 = vpop.xlane.xlu0 %610
      %v612 = vrcp.pop %v611
      %v613 = vmul.f32 %v611, %v612
      %v614 = vsub.f32 1.0, %v613
      %v615 = vmul.f32 %v612, %v614
      %v616 = vadd.f32 %v612, %v615
      %vm617 = vweird.f32 %v611
      %vm618 = vweird.f32 %v612
      %vm619 = vmor %vm617, %vm618
      %v620 = vsel %vm619, %v612, %v616
      %v621 = vand.u32 2147483647, %v611
      %vm622 = vcmp.eq.f32.partialorder %v621, 8.507059e+37
      %v623 = vand.u32 %v611, 2147483648
      %v624 = vor.u32 1.1754944e-38, %v623
      %v625 = vsel %vm622, %v624, %v620
      %v626 = vmul.f32 %v608, %v625
      %v627 = vmul.f32 %v509, %v626
      %v628 = vmul.f32 %v510, %v626
      %v629 = vmul.f32 %v511, %v626
      %v630 = vmul.f32 %v512, %v626
      %v631 = vmul.f32 %v513, %v626
      %v632 = vmul.f32 %v514, %v626
      %v633 = vmul.f32 %v515, %v626
      %v634 = vmul.f32 %v516, %v626
      %v635 = vsel %vm573, %v627, 0.0
      %636 = vadd.xlane.f32.xlu0 %v635
      %v637 = vpop.xlane.xlu0 %636
      %v638 = vsel %vm573, %v628, 0.0
      %639 = vadd.xlane.f32.xlu0 %v638
      %v640 = vpop.xlane.xlu0 %639
      %v641 = vsel %vm573, %v629, 0.0
      %642 = vadd.xlane.f32.xlu0 %v641
      %v643 = vpop.xlane.xlu0 %642
      %v644 = vsel %vm573, %v630, 0.0
      %645 = vadd.xlane.f32.xlu0 %v644
      %v646 = vpop.xlane.xlu0 %645
      %v647 = vsel %vm573, %v631, 0.0
      %648 = vadd.xlane.f32.xlu0 %v647
      %v649 = vpop.xlane.xlu0 %648
      %v650 = vsel %vm573, %v632, 0.0
      %651 = vadd.xlane.f32.xlu0 %v650
      %v652 = vpop.xlane.xlu0 %651
      %v653 = vsel %vm573, %v633, 0.0
      %654 = vadd.xlane.f32.xlu0 %v653
      %v655 = vpop.xlane.xlu0 %654
      %v656 = vsel %vm573, %v634, 0.0
      %657 = vadd.xlane.f32.xlu0 %v656
      %v658 = vpop.xlane.xlu0 %657
      %v659 = vld [vmem:[%s5] sm:$0xff]
      %v660 = vld [vmem:[%s5 + $0x8] sm:$0xff]
      %v661 = vld [vmem:[%s6] sm:$0xff]
      %v662 = vld [vmem:[%s6 + $0x8] sm:$0xff]
      %v664 = vsel %vm573, %v659, 0
      %v667 = vsel %vm573, %v660, 0
      %669 = vmatpush.msra.mxu0 0.0
      %670 = vmatpush.msra.mxu0 0.0
      %671 = vmatpush.msra.mxu0 0.0
      %672 = vmatpush.msra.mxu0 0.0
      %673 = vmatpush.msra.mxu0 0.0
      %674 = vmatpush.msra.mxu0 0.0
      %675 = vmatpush.msra.mxu0 0.0
      %676 = vmatpush.msra.mxu0 0.0
      %677 = vmatpush.msra.mxu0 %v658
      %678 = vmatpush.msra.mxu0 %v655
      %679 = vmatpush.msra.mxu0 %v652
      %680 = vmatpush.msra.mxu0 %v649
      %681 = vmatpush.msra.mxu0 %v646
      %682 = vmatpush.msra.mxu0 %v643
      %683 = vmatpush.msra.mxu0 %v640
      %684 = vmatpush.msra.mxu0 %v637
      %685 = vmatmul.f32.gmra.mxu0 %v664
      %v686 = vpop.f32.mrf.mxu0
      %v687 = vadd.f32 %v661, %v686
      %688 = vmatmul.f32.gmra.mxu0 %v667
      %v689 = vpop.f32.mrf.mxu0
      %v690 = vadd.f32 %v662, %v689
      %691 = vdwg.mxu0
      %vm692 = vcmask 7168
      %v693 = vsel %vm692, %v687, 0.0
      %v694 = vsel %vm692, %v690, 0.0
      %v695 = vadd.f32 %v693, %v694
      %696 = vadd.xlane.f32.xlu0 %v695
      %v697 = vpop.xlane.xlu0 %696
      %v698 = vrot.slane %v697, 4
      %v699 = vadd.f32 %v697, %v698
      %v700 = vrot.slane %v699, 2
      %v701 = vadd.f32 %v699, %v700
      %v702 = vrot.slane %v701, 1
      %v703 = vadd.f32 %v701, %v702
      %s704 = vtos %v703
      %v705 = vstv %s704
      %v706 = vrcp.pop 16.0
      %v707 = vmul.f32 16.0, %v706
      %v708 = vsub.f32 1.0, %v707
      %v709 = vmul.f32 %v706, %v708
      %v710 = vadd.f32 %v706, %v709
      %vm711 = vweird.f32 %v706
      %v712 = vsel %vm711, %v706, %v710
      %v713 = vmul.f32 %v705, %v712
      %v714 = vsub.f32 %v687, %v713
      %v715 = vsub.f32 %v690, %v713
      %v716 = vmul.f32 %v714, %v714
      %v717 = vmul.f32 %v715, %v715
      %v718 = vsel %vm692, %v716, 0.0
      %v719 = vsel %vm692, %v717, 0.0
      %v720 = vadd.f32 %v718, %v719
      %721 = vadd.xlane.f32.xlu0 %v720
      %v722 = vpop.xlane.xlu0 %721
      %v723 = vrot.slane %v722, 4
      %v724 = vadd.f32 %v722, %v723
      %v725 = vrot.slane %v724, 2
      %v726 = vadd.f32 %v724, %v725
      %v727 = vrot.slane %v726, 1
      %v728 = vadd.f32 %v726, %v727
      %s729 = vtos %v728
      %v730 = vstv %s729
      %v731 = vmul.f32 %v730, %v712
      %v732 = vadd.f32 %v731, 1e-05
      %v733 = vrsqrt.pop %v732
      %v734 = vmul.f32 %v733, %v732
      %v735 = vmul.f32 %v734, %v733
      %v736 = vmul.f32 0.5, %v735
      %v737 = vsub.f32 1.5, %v736
      %v738 = vmul.f32 %v733, %v737
      %vm739 = vweird.f32 %v732
      %vm740 = vweird.f32 %v733
      %vm741 = vmor %vm739, %vm740
      %v742 = vsel %vm741, %v733, %v738
      %v743 = vmul.f32 %v714, %v742
      %v744 = vmul.f32 %v715, %v742
      %v745 = vld [vmem:[%s7] sm:$0xff]
      %v746 = vld [vmem:[%s7 + $0x8] sm:$0xff]
      %v747 = vmul.f32 %v743, %v745
      %v748 = vmul.f32 %v744, %v746
      %v749 = vld [vmem:[%s8] sm:$0xff]
      %v750 = vld [vmem:[%s8 + $0x8] sm:$0xff]
      %v751 = vadd.f32 %v747, %v749
      %v752 = vadd.f32 %v748, %v750
      %v753 = vmax.f32 %v751, 0.0
      %v754 = vmax.f32 %v752, 0.0
      %v755 = vld [vmem:[%s9] sm:$0xff]
      %v756 = vld [vmem:[%s9 + $0x8] sm:$0xff]
      %v757 = vld [vmem:[%s9 + $0x10] sm:$0xff]
      %v758 = vld [vmem:[%s9 + $0x18] sm:$0xff]
      %v759 = vld [vmem:[%s9 + $0x20] sm:$0xff]
      %v760 = vld [vmem:[%s9 + $0x28] sm:$0xff]
      %v761 = vld [vmem:[%s9 + $0x30] sm:$0xff]
      %v762 = vld [vmem:[%s9 + $0x38] sm:$0xff]
      %v763 = vld [vmem:[%s10] sm:$0xff]
      %v764 = vld [vmem:[%s10 + $0x8] sm:$0xff]
      %v765 = vld [vmem:[%s10 + $0x10] sm:$0xff]
      %v766 = vld [vmem:[%s10 + $0x18] sm:$0xff]
      %v767 = vld [vmem:[%s10 + $0x20] sm:$0xff]
      %v768 = vld [vmem:[%s10 + $0x28] sm:$0xff]
      %v769 = vld [vmem:[%s10 + $0x30] sm:$0xff]
      %v770 = vld [vmem:[%s10 + $0x38] sm:$0xff]
      %vm771 = vcmask 130048
      %v773 = vsel %vm771, %v755, 0
      %v776 = vsel %vm771, %v756, 0
      %v779 = vsel %vm771, %v757, 0
      %v782 = vsel %vm771, %v758, 0
      %v785 = vsel %vm771, %v759, 0
      %v788 = vsel %vm771, %v760, 0
      %v791 = vsel %vm771, %v761, 0
      %v794 = vsel %vm771, %v762, 0
      %796 = vmatpush.msra.mxu0 0.0
      %797 = vmatpush.msra.mxu0 0.0
      %798 = vmatpush.msra.mxu0 0.0
      %799 = vmatpush.msra.mxu0 0.0
      %800 = vmatpush.msra.mxu0 0.0
      %801 = vmatpush.msra.mxu0 0.0
      %802 = vmatpush.msra.mxu0 0.0
      %803 = vmatpush.msra.mxu0 0.0
      %804 = vmatpush.msra.mxu0 0.0
      %805 = vmatpush.msra.mxu0 0.0
      %806 = vmatpush.msra.mxu0 0.0
      %807 = vmatpush.msra.mxu0 0.0
      %808 = vmatpush.msra.mxu0 0.0
      %809 = vmatpush.msra.mxu0 0.0
      %810 = vmatpush.msra.mxu0 %v754
      %811 = vmatpush.msra.mxu0 %v753
      %812 = vmatmul.f32.gmra.mxu0 %v773
      %v813 = vpop.f32.mrf.mxu0
      %v814 = vadd.f32 %v763, %v813
      %815 = vmatmul.f32.gmra.mxu0 %v776
      %v816 = vpop.f32.mrf.mxu0
      %v817 = vadd.f32 %v764, %v816
      %818 = vmatmul.f32.gmra.mxu0 %v779
      %v819 = vpop.f32.mrf.mxu0
      %v820 = vadd.f32 %v765, %v819
      %821 = vmatmul.f32.gmra.mxu0 %v782
      %v822 = vpop.f32.mrf.mxu0
      %v823 = vadd.f32 %v766, %v822
      %824 = vmatmul.f32.gmra.mxu0 %v785
      %v825 = vpop.f32.mrf.mxu0
      %v826 = vadd.f32 %v767, %v825
      %827 = vmatmul.f32.gmra.mxu0 %v788
      %v828 = vpop.f32.mrf.mxu0
      %v829 = vadd.f32 %v768, %v828
      %830 = vmatmul.f32.gmra.mxu0 %v791
      %v831 = vpop.f32.mrf.mxu0
      %v832 = vadd.f32 %v769, %v831
      %833 = vmatmul.f32.gmra.mxu0 %v794
      %v834 = vpop.f32.mrf.mxu0
      %v835 = vadd.f32 %v770, %v834
      %836 = vdwg.mxu0
      %838 = vset.pattern.permute.xlu0 0
      %839 = vperm.xlu0 %838, %v814
      %v840 = vpop.permute.xlu0 %839
      %843 = vset.pattern.permute.xlu0 0
      %844 = vperm.xlu0 %843, %v817
      %v845 = vpop.permute.xlu0 %844
      %848 = vset.pattern.permute.xlu0 0
      %849 = vperm.xlu0 %848, %v820
      %v850 = vpop.permute.xlu0 %849
      %853 = vset.pattern.permute.xlu0 0
      %854 = vperm.xlu0 %853, %v823
      %v855 = vpop.permute.xlu0 %854
      %858 = vset.pattern.permute.xlu0 0
      %859 = vperm.xlu0 %858, %v826
      %v860 = vpop.permute.xlu0 %859
      %863 = vset.pattern.permute.xlu0 0
      %864 = vperm.xlu0 %863, %v829
      %v865 = vpop.permute.xlu0 %864
      %868 = vset.pattern.permute.xlu0 0
      %869 = vperm.xlu0 %868, %v832
      %v870 = vpop.permute.xlu0 %869
      %873 = vset.pattern.permute.xlu0 0
      %874 = vperm.xlu0 %873, %v835
      %v875 = vpop.permute.xlu0 %874
      %v877 = vadd.f32 %v509, %v840
      %v878 = vadd.f32 %v510, %v845
      %v879 = vadd.f32 %v511, %v850
      %v880 = vadd.f32 %v512, %v855
      %v881 = vadd.f32 %v513, %v860
      %v882 = vadd.f32 %v514, %v865
      %v883 = vadd.f32 %v515, %v870
      %v884 = vadd.f32 %v516, %v875
      %v885 = vmul.f32 %v509, %v877
      %v886 = vmul.f32 %v510, %v878
      %v887 = vmul.f32 %v511, %v879
      %v888 = vmul.f32 %v512, %v880
      %v889 = vmul.f32 %v513, %v881
      %v890 = vmul.f32 %v514, %v882
      %v891 = vmul.f32 %v515, %v883
      %v892 = vmul.f32 %v516, %v884
      %893 = vst.msk [vmem:[%s388] sm:$0xff] %vm573, %v885
      %894 = vst.msk [vmem:[%s388 + $0x8] sm:$0xff] %vm573, %v886
      %895 = vst.msk [vmem:[%s388 + $0x10] sm:$0xff] %vm573, %v887
      %896 = vst.msk [vmem:[%s388 + $0x18] sm:$0xff] %vm573, %v888
      %897 = vst.msk [vmem:[%s388 + $0x20] sm:$0xff] %vm573, %v889
      %898 = vst.msk [vmem:[%s388 + $0x28] sm:$0xff] %vm573, %v890
      %899 = vst.msk [vmem:[%s388 + $0x30] sm:$0xff] %vm573, %v891
      %900 = vst.msk [vmem:[%s388 + $0x38] sm:$0xff] %vm573, %v892
      %p901 = scmp.lt.s32.totalorder %s24, 1
      %s902 = scalar_select %p901, %s24, 1
      %s903 = smul.addr %s902, 8
      %s904 = smul.addr %s903, 8
      %s905 = scalar_lea.vmem %s11, %s904
      // Predicated region
      $region65: #{haim_forward.5} parent=63 // pred_check
        %p906 = pneg %p278
      $region66: #{haim_forward.5} parent=63 // pred_check_branch
        %908 = sbr.rel (%p906) target = $region68
      $region67: #{haim_forward.5} parent=63 // pred_region
        _
      $region68: #{haim_forward.5} parent=63 // pred_fallthru
        _
    $region64: #{haim_forward.5} parent=5 // pred_fallthru
      _
    %p909 = scmp.le.s32.totalorder 2, %s19
    // Predicated region
    $region69: #{haim_forward.5} parent=5 // pred_check
      %p910 = pneg %p909
    $region70: #{haim_forward.5} parent=5 // pred_check_branch
      %912 = sbr.rel (%p910) target = $region72
    $region71: #{haim_forward.5} parent=5 // pred_region
      %s913 = ssub.s32 %s19, 2
      // Predicated region
      $region73: #{haim_forward.5} parent=71 // pred_check
        %p914 = pneg %p284
      $region74: #{haim_forward.5} parent=71 // pred_check_branch
        %916 = sbr.rel (%p914) target = $region76
      $region75: #{haim_forward.5} parent=71 // pred_region
        %p917 = scmp.lt.s32.totalorder %s25, 1
        %s918 = scalar_select %p917, %s25, 1
        %s919 = smul.addr %s918, 8
        %s920 = smul.addr %s919, 8
        %s921 = scalar_lea.vmem %s11, %s920
      $region76: #{haim_forward.5} parent=71 // pred_fallthru
        _
    $region72: #{haim_forward.5} parent=5 // pred_fallthru
      _
  $region6: #{haim_forward.5} parent=0 // loop_footer
    %s23 = sadd.s32 1, %s19
  $region7: #{haim_forward.5} parent=0 // loop_footer_branch
    %18 = sbr.rel target = $region3
  $region8: #{haim_forward.5} parent=0 // loop_exit
    _

</llo_original>
